<compile_context>
chip_gen: v7x
topology: tpu7x:2x2x1
jax: 0.10.0
libtpu: 0.0.40
codegen_flags: <defaults>
</compile_context>

<pallas_src>
import functools
import math

import jax
import jax.numpy as jnp
from jax.experimental import pallas as pl
from jax.experimental.pallas import tpu as pltpu


def _round_up(x, m):
    return (x + m - 1) // m * m


# ----------------------------------------------------------------------------
# Fused conv kernel: one output row (all Wo pixels) per grid step.
# ----------------------------------------------------------------------------
def _conv_row_kernel(*refs, kh, kw_g, s_h, wo, cg, negative_slope):
    """refs = (x_view_0 .. x_view_{kh//s_h-1}, w_ref, b_ref, o_ref)

    x_view_m : (1, s_h, Wg, Cg)  padded-input rows [s_h*(ho+m), s_h*(ho+m+1))
    w_ref    : (kh, kw_g, Cg, TN)  bf16 (Cout zero-padded to lane-dense TN)
    b_ref    : (1, TN)             f32
    o_ref    : (1, 1, Wo, TN)      f32
    """
    n_views = kh // s_h
    x_refs = refs[:n_views]
    w_ref, b_ref, o_ref = refs[n_views:]
    tn = o_ref.shape[-1]

    # The kh padded-input rows feeding this output row (VMEM -> vregs once).
    rows = []
    for m in range(n_views):
        blk = x_refs[m][...]                      # (1, s_h, Wg, Cg)
        for r in range(s_h):
            rows.append(blk[0, r])                # (Wg, Cg)

    acc = jnp.zeros((wo, tn), jnp.float32)
    for i in range(kh):                           # row taps (unrolled, <= 4)
        row = rows[i]
        for j in range(kw_g):                     # column taps (unrolled, <= 3)
            xt = row[j:j + wo, :]                 # (Wo, Cg) static slice
            w_tap = w_ref[i, j]                   # (Cg, TN) bf16
            if cg < 8:
                # Degenerate contraction (e.g. Cin == 1): keep it on the VPU.
                for c in range(cg):
                    acc = acc + (xt[:, c:c + 1].astype(jnp.float32)
                                 * w_tap[c:c + 1, :].astype(jnp.float32))
            else:
                acc = acc + jnp.dot(xt.astype(jnp.bfloat16), w_tap,
                                    preferred_element_type=jnp.float32)
    acc = acc + b_ref[...]                        # f32 bias
    if negative_slope is not None:                # f32 LeakyReLU
        acc = jnp.where(acc >= 0, acc, negative_slope * acc)
    o_ref[0, 0] = acc.astype(o_ref.dtype)


def conv2d_pallas(x_nhwc, weight, bias, *, kernel, stride, pad, negative_slope=None):
    """Fused Conv2d(+bias, +optional LeakyReLU).  weight: (kh, kw, Cin, Cout)."""
    B, H, W, cin = x_nhwc.shape
    kh = kw = kernel
    cout = weight.shape[-1]
    Ho = (H + 2 * pad - kh) // stride + 1
    Wo = (W + 2 * pad - kw) // stride + 1
    Hp, Wp = H + 2 * pad, W + 2 * pad

    xp = jnp.pad(x_nhwc, ((0, 0), (pad, pad), (pad, pad), (0, 0)))

    if stride == 1:
        xg, wg = xp, weight
        Wg, Cg, kw_g, s_h = Wp, cin, kw, 1
    elif stride == 2 and kw % 2 == 0 and Wp % 2 == 0 and Hp % 2 == 0:
        # Free reshape: k=4,s=2 along W  ==  k=2,s=1 over (W/2, 2*Cin) groups.
        xg = xp.reshape(B, Hp, Wp // 2, 2 * cin)
        wg = weight.reshape(kh, kw // 2, 2 * cin, cout)
        Wg, Cg, kw_g, s_h = Wp // 2, 2 * cin, kw // 2, 2
    else:
        raise NotImplementedError("only the k3/s1 and k4/s2 convs of this module")
    assert kh % s_h == 0
    n_views = kh // s_h

    Np = _round_up(cout, 128)                      # lane-dense output channels
    TN = 256 if Np % 256 == 0 else 128             # 2x256 MXU friendly when possible
    wg = jnp.pad(wg, ((0, 0), (0, 0), (0, 0), (0, Np - cout))).astype(jnp.bfloat16)
    bg = jnp.pad(bias, (0, Np - cout)).astype(jnp.float32).reshape(1, Np)

    grid = (B, Ho, Np // TN)

    # kh//s_h shifted views of the same padded input supply the row taps
    # (halo handled purely by index_map offsets -> no overlap/OOB issues).
    in_specs = [
        pl.BlockSpec((1, s_h, Wg, Cg), (lambda b, h, n, m=m: (b, h + m, 0, 0)))
        for m in range(n_views)
    ]
    in_specs += [
        pl.BlockSpec((kh, kw_g, Cg, TN), lambda b, h, n: (0, 0, 0, n)),
        pl.BlockSpec((1, TN), lambda b, h, n: (0, n)),
    ]
    out_spec = pl.BlockSpec((1, 1, Wo, TN), lambda b, h, n: (b, h, 0, n))

    flops = 2 * B * Ho * Wo * kh * kw * cin * cout
    bytes_accessed = (n_views * int(xg.size) * 4 + int(wg.size) * 2
                      + int(bg.size) * 4 + B * Ho * Wo * Np * 4)

    out = pl.pallas_call(
        functools.partial(_conv_row_kernel, kh=kh, kw_g=kw_g, s_h=s_h, wo=Wo,
                          cg=Cg, negative_slope=negative_slope),
        out_shape=jax.ShapeDtypeStruct((B, Ho, Wo, Np), jnp.float32),
        grid=grid,
        in_specs=in_specs,
        out_specs=out_spec,
        compiler_params=pltpu.CompilerParams(
            dimension_semantics=("parallel", "parallel", "parallel"),
            vmem_limit_bytes=32 * 1024 * 1024),
        cost_estimate=pl.CostEstimate(flops=flops, transcendentals=0,
                                      bytes_accessed=bytes_accessed),
    )(*([xg] * n_views + [wg, bg]))
    # TODO(synk): for very large feature maps, tile several output rows per grid
    # step to amortize the ~0.35us per-step overhead further.
    return out[..., :cout]


# ----------------------------------------------------------------------------
# Module pieces (match the PyTorch forward semantics)
# ----------------------------------------------------------------------------
def input_proj(image_nchw, w, b):
    # InputProj: Conv2d(dd_in, embed, 3, 1, pad=1) + LeakyReLU(0.01),
    # then flatten(2).transpose(1, 2) -> (B, H*W, C)
    x = jnp.transpose(image_nchw, (0, 2, 3, 1))            # NCHW -> NHWC
    y = conv2d_pallas(x, w, b, kernel=3, stride=1, pad=1, negative_slope=0.01)
    B, H, W, C = y.shape
    return y.reshape(B, H * W, C)


def downsample(x_blc, w, b, last=False):
    # PyTorch Downsample: (B, L, C) -> NCHW -> Conv2d(k=4, s=2, p=1)
    B, L, C = x_blc.shape
    H = int(math.sqrt(L))
    W = int(math.sqrt(L))
    x = x_blc.reshape(B, H, W, C)                          # same tensor in NHWC
    y = conv2d_pallas(x, w, b, kernel=4, stride=2, pad=1)
    if last:
        return jnp.transpose(y, (0, 3, 1, 2))              # NCHW conv output
    Bo, Ho, Wo, Co = y.shape
    return y.reshape(Bo, Ho * Wo, Co)                      # flatten(2).transpose(1,2)


def conver_bshw(x_blc):
    B, L, C = x_blc.shape
    H = int(math.sqrt(L))
    W = int(math.sqrt(L))
    return jnp.transpose(x_blc.reshape(B, H, W, C), (0, 3, 1, 2))


def init_params(key, dd_in, embed_dim):
    def conv_init(k, kh, kw, cin, cout):
        kw_, kb_ = jax.random.split(k)
        scale = 1.0 / math.sqrt(kh * kw * cin)
        w = jax.random.normal(kw_, (kh, kw, cin, cout), jnp.float32) * scale
        b = jax.random.normal(kb_, (cout,), jnp.float32) * scale
        return w, b

    ks = jax.random.split(key, 5)
    return {
        "input_proj": conv_init(ks[0], 3, 3, dd_in, embed_dim),
        "down0": conv_init(ks[1], 4, 4, embed_dim, embed_dim * 2),
        "down1": conv_init(ks[2], 4, 4, embed_dim * 2, embed_dim * 4),
        "down2": conv_init(ks[3], 4, 4, embed_dim * 4, embed_dim * 8),
        "down3": conv_init(ks[4], 4, 4, embed_dim * 8, embed_dim * 16),
    }


def image_encoder_forward(image_nchw, params):
    y = input_proj(image_nchw, *params["input_proj"])       # (B, H*W, embed)
    # pos_drop: Dropout(p=0.0) -> identity in forward semantics.
    # TODO(synk): BasicUformerLayer (LeWin transformer blocks) source was not
    # provided with the module; treated as identity (dim == output_dim).
    conv0 = y
    pool0 = downsample(conv0, *params["down0"])              # (B, L/4,  2*embed)
    conv1 = pool0
    pool1 = downsample(conv1, *params["down1"])              # (B, L/16, 4*embed)
    conv2 = pool1
    pool2 = downsample(conv2, *params["down2"])              # (B, L/64, 8*embed)
    conv3 = pool2
    pool3 = downsample(conv3, *params["down3"], last=True)   # NCHW (B,16e,H/16,W/16)
    conv1 = conver_bshw(conv1)
    conv2 = conver_bshw(conv2)
    conv3 = conver_bshw(conv3)
    return [conv1, conv2, conv3, pool3]


if __name__ == "__main__":
    key = jax.random.PRNGKey(0)
    k_img, k_par = jax.random.split(key)

    B, dd_in, img_size, embed_dim = 2, 1, 16, 8
    image = jax.random.normal(k_img, (B, dd_in, img_size, img_size), jnp.float32)
    params = init_params(k_par, dd_in, embed_dim)

    outs = jax.jit(image_encoder_forward)(image, params)
    outs = jax.block_until_ready(outs)

    expected = [
        (B, 2 * embed_dim, img_size // 2, img_size // 2),
        (B, 4 * embed_dim, img_size // 4, img_size // 4),
        (B, 8 * embed_dim, img_size // 8, img_size // 8),
        (B, 16 * embed_dim, img_size // 16, img_size // 16),
    ]
    assert [tuple(o.shape) for o in outs] == expected, [o.shape for o in outs]
    assert all(bool(jnp.all(jnp.isfinite(o))) for o in outs)
    print("KERNEL_OK")
</pallas_src>

<mosaic_0001>
module attributes {stable_mosaic.version = 11 : i64} {
  func.func @_conv_row_kernel(%arg0: i32, %arg1: i32, %arg2: i32, %arg3: memref<1x1x18x1xf32, #tpu.memory_space<vmem>>, %arg4: memref<1x1x18x1xf32, #tpu.memory_space<vmem>>, %arg5: memref<1x1x18x1xf32, #tpu.memory_space<vmem>>, %arg6: memref<3x3x1x128xbf16, #tpu.memory_space<vmem>>, %arg7: memref<1x128xf32, #tpu.memory_space<vmem>>, %arg8: memref<1x1x16x128xf32, #tpu.memory_space<vmem>>) attributes {dimension_semantics = [#tpu.dimension_semantics<parallel>, #tpu.dimension_semantics<parallel>, #tpu.dimension_semantics<parallel>], iteration_bounds = array<i64: 2, 16, 1>, scalar_prefetch = 0 : i64, scratch_operands = 0 : i64, tpu.core_type = #tpu.core_type<tc>, window_params = [{transform_indices = @transform_0, window_bounds = array<i64: 1, 1, 18, 1>}, {transform_indices = @transform_1, window_bounds = array<i64: 1, 1, 18, 1>}, {transform_indices = @transform_2, window_bounds = array<i64: 1, 1, 18, 1>}, {transform_indices = @transform_3, window_bounds = array<i64: 3, 3, 1, 128>}, {transform_indices = @transform_4, window_bounds = array<i64: 1, 128>}, {transform_indices = @transform_5, window_bounds = array<i64: 1, 1, 16, 128>}]} {
    %c0 = arith.constant 0 : index
    %c0_0 = arith.constant 0 : index
    %c0_1 = arith.constant 0 : index
    %c0_2 = arith.constant 0 : index
    %0 = vector.load %arg3[%c0, %c0_0, %c0_1, %c0_2] : memref<1x1x18x1xf32, #tpu.memory_space<vmem>>, vector<1x1x18x1xf32>
    %1 = vector.shape_cast %0 : vector<1x1x18x1xf32> to vector<18x1xf32>
    %c0_3 = arith.constant 0 : index
    %c0_4 = arith.constant 0 : index
    %c0_5 = arith.constant 0 : index
    %c0_6 = arith.constant 0 : index
    %2 = vector.load %arg4[%c0_3, %c0_4, %c0_5, %c0_6] : memref<1x1x18x1xf32, #tpu.memory_space<vmem>>, vector<1x1x18x1xf32>
    %3 = vector.shape_cast %2 : vector<1x1x18x1xf32> to vector<18x1xf32>
    %c0_7 = arith.constant 0 : index
    %c0_8 = arith.constant 0 : index
    %c0_9 = arith.constant 0 : index
    %c0_10 = arith.constant 0 : index
    %4 = vector.load %arg5[%c0_7, %c0_8, %c0_9, %c0_10] : memref<1x1x18x1xf32, #tpu.memory_space<vmem>>, vector<1x1x18x1xf32>
    %5 = vector.shape_cast %4 : vector<1x1x18x1xf32> to vector<18x1xf32>
    %cst = arith.constant 0.000000e+00 : f32
    %6 = vector.broadcast %cst : f32 to vector<16x128xf32>
    %7 = vector.extract_strided_slice %1 {offsets = [0, 0], sizes = [16, 1], strides = [1, 1]} : vector<18x1xf32> to vector<16x1xf32>
    %c0_11 = arith.constant 0 : index
    %c0_12 = arith.constant 0 : index
    %c0_13 = arith.constant 0 : index
    %c0_14 = arith.constant 0 : index
    %8 = vector.load %arg6[%c0_11, %c0_12, %c0_13, %c0_14] : memref<3x3x1x128xbf16, #tpu.memory_space<vmem>>, vector<1x1x1x128xbf16>
    %9 = vector.shape_cast %8 : vector<1x1x1x128xbf16> to vector<1x128xbf16>
    %10 = arith.extf %9 : vector<1x128xbf16> to vector<1x128xf32>
    %11 = vector.broadcast %7 : vector<16x1xf32> to vector<16x128xf32>
    %12 = vector.broadcast %10 : vector<1x128xf32> to vector<16x128xf32>
    %13 = arith.mulf %11, %12 : vector<16x128xf32>
    %14 = arith.addf %6, %13 : vector<16x128xf32>
    %15 = vector.extract_strided_slice %1 {offsets = [1, 0], sizes = [16, 1], strides = [1, 1]} : vector<18x1xf32> to vector<16x1xf32>
    %c0_15 = arith.constant 0 : index
    %c1 = arith.constant 1 : index
    %c0_16 = arith.constant 0 : index
    %c0_17 = arith.constant 0 : index
    %16 = vector.load %arg6[%c0_15, %c1, %c0_16, %c0_17] : memref<3x3x1x128xbf16, #tpu.memory_space<vmem>>, vector<1x1x1x128xbf16>
    %17 = vector.shape_cast %16 : vector<1x1x1x128xbf16> to vector<1x128xbf16>
    %18 = arith.extf %17 : vector<1x128xbf16> to vector<1x128xf32>
    %19 = vector.broadcast %15 : vector<16x1xf32> to vector<16x128xf32>
    %20 = vector.broadcast %18 : vector<1x128xf32> to vector<16x128xf32>
    %21 = arith.mulf %19, %20 : vector<16x128xf32>
    %22 = arith.addf %14, %21 : vector<16x128xf32>
    %23 = vector.extract_strided_slice %1 {offsets = [2, 0], sizes = [16, 1], strides = [1, 1]} : vector<18x1xf32> to vector<16x1xf32>
    %c0_18 = arith.constant 0 : index
    %c2 = arith.constant 2 : index
    %c0_19 = arith.constant 0 : index
    %c0_20 = arith.constant 0 : index
    %24 = vector.load %arg6[%c0_18, %c2, %c0_19, %c0_20] : memref<3x3x1x128xbf16, #tpu.memory_space<vmem>>, vector<1x1x1x128xbf16>
    %25 = vector.shape_cast %24 : vector<1x1x1x128xbf16> to vector<1x128xbf16>
    %26 = arith.extf %25 : vector<1x128xbf16> to vector<1x128xf32>
    %27 = vector.broadcast %23 : vector<16x1xf32> to vector<16x128xf32>
    %28 = vector.broadcast %26 : vector<1x128xf32> to vector<16x128xf32>
    %29 = arith.mulf %27, %28 : vector<16x128xf32>
    %30 = arith.addf %22, %29 : vector<16x128xf32>
    %31 = vector.extract_strided_slice %3 {offsets = [0, 0], sizes = [16, 1], strides = [1, 1]} : vector<18x1xf32> to vector<16x1xf32>
    %c1_21 = arith.constant 1 : index
    %c0_22 = arith.constant 0 : index
    %c0_23 = arith.constant 0 : index
    %c0_24 = arith.constant 0 : index
    %32 = vector.load %arg6[%c1_21, %c0_22, %c0_23, %c0_24] : memref<3x3x1x128xbf16, #tpu.memory_space<vmem>>, vector<1x1x1x128xbf16>
    %33 = vector.shape_cast %32 : vector<1x1x1x128xbf16> to vector<1x128xbf16>
    %34 = arith.extf %33 : vector<1x128xbf16> to vector<1x128xf32>
    %35 = vector.broadcast %31 : vector<16x1xf32> to vector<16x128xf32>
    %36 = vector.broadcast %34 : vector<1x128xf32> to vector<16x128xf32>
    %37 = arith.mulf %35, %36 : vector<16x128xf32>
    %38 = arith.addf %30, %37 : vector<16x128xf32>
    %39 = vector.extract_strided_slice %3 {offsets = [1, 0], sizes = [16, 1], strides = [1, 1]} : vector<18x1xf32> to vector<16x1xf32>
    %c1_25 = arith.constant 1 : index
    %c1_26 = arith.constant 1 : index
    %c0_27 = arith.constant 0 : index
    %c0_28 = arith.constant 0 : index
    %40 = vector.load %arg6[%c1_25, %c1_26, %c0_27, %c0_28] : memref<3x3x1x128xbf16, #tpu.memory_space<vmem>>, vector<1x1x1x128xbf16>
    %41 = vector.shape_cast %40 : vector<1x1x1x128xbf16> to vector<1x128xbf16>
    %42 = arith.extf %41 : vector<1x128xbf16> to vector<1x128xf32>
    %43 = vector.broadcast %39 : vector<16x1xf32> to vector<16x128xf32>
    %44 = vector.broadcast %42 : vector<1x128xf32> to vector<16x128xf32>
    %45 = arith.mulf %43, %44 : vector<16x128xf32>
    %46 = arith.addf %38, %45 : vector<16x128xf32>
    %47 = vector.extract_strided_slice %3 {offsets = [2, 0], sizes = [16, 1], strides = [1, 1]} : vector<18x1xf32> to vector<16x1xf32>
    %c1_29 = arith.constant 1 : index
    %c2_30 = arith.constant 2 : index
    %c0_31 = arith.constant 0 : index
    %c0_32 = arith.constant 0 : index
    %48 = vector.load %arg6[%c1_29, %c2_30, %c0_31, %c0_32] : memref<3x3x1x128xbf16, #tpu.memory_space<vmem>>, vector<1x1x1x128xbf16>
    %49 = vector.shape_cast %48 : vector<1x1x1x128xbf16> to vector<1x128xbf16>
    %50 = arith.extf %49 : vector<1x128xbf16> to vector<1x128xf32>
    %51 = vector.broadcast %47 : vector<16x1xf32> to vector<16x128xf32>
    %52 = vector.broadcast %50 : vector<1x128xf32> to vector<16x128xf32>
    %53 = arith.mulf %51, %52 : vector<16x128xf32>
    %54 = arith.addf %46, %53 : vector<16x128xf32>
    %55 = vector.extract_strided_slice %5 {offsets = [0, 0], sizes = [16, 1], strides = [1, 1]} : vector<18x1xf32> to vector<16x1xf32>
    %c2_33 = arith.constant 2 : index
    %c0_34 = arith.constant 0 : index
    %c0_35 = arith.constant 0 : index
    %c0_36 = arith.constant 0 : index
    %56 = vector.load %arg6[%c2_33, %c0_34, %c0_35, %c0_36] : memref<3x3x1x128xbf16, #tpu.memory_space<vmem>>, vector<1x1x1x128xbf16>
    %57 = vector.shape_cast %56 : vector<1x1x1x128xbf16> to vector<1x128xbf16>
    %58 = arith.extf %57 : vector<1x128xbf16> to vector<1x128xf32>
    %59 = vector.broadcast %55 : vector<16x1xf32> to vector<16x128xf32>
    %60 = vector.broadcast %58 : vector<1x128xf32> to vector<16x128xf32>
    %61 = arith.mulf %59, %60 : vector<16x128xf32>
    %62 = arith.addf %54, %61 : vector<16x128xf32>
    %63 = vector.extract_strided_slice %5 {offsets = [1, 0], sizes = [16, 1], strides = [1, 1]} : vector<18x1xf32> to vector<16x1xf32>
    %c2_37 = arith.constant 2 : index
    %c1_38 = arith.constant 1 : index
    %c0_39 = arith.constant 0 : index
    %c0_40 = arith.constant 0 : index
    %64 = vector.load %arg6[%c2_37, %c1_38, %c0_39, %c0_40] : memref<3x3x1x128xbf16, #tpu.memory_space<vmem>>, vector<1x1x1x128xbf16>
    %65 = vector.shape_cast %64 : vector<1x1x1x128xbf16> to vector<1x128xbf16>
    %66 = arith.extf %65 : vector<1x128xbf16> to vector<1x128xf32>
    %67 = vector.broadcast %63 : vector<16x1xf32> to vector<16x128xf32>
    %68 = vector.broadcast %66 : vector<1x128xf32> to vector<16x128xf32>
    %69 = arith.mulf %67, %68 : vector<16x128xf32>
    %70 = arith.addf %62, %69 : vector<16x128xf32>
    %71 = vector.extract_strided_slice %5 {offsets = [2, 0], sizes = [16, 1], strides = [1, 1]} : vector<18x1xf32> to vector<16x1xf32>
    %c2_41 = arith.constant 2 : index
    %c2_42 = arith.constant 2 : index
    %c0_43 = arith.constant 0 : index
    %c0_44 = arith.constant 0 : index
    %72 = vector.load %arg6[%c2_41, %c2_42, %c0_43, %c0_44] : memref<3x3x1x128xbf16, #tpu.memory_space<vmem>>, vector<1x1x1x128xbf16>
    %73 = vector.shape_cast %72 : vector<1x1x1x128xbf16> to vector<1x128xbf16>
    %74 = arith.extf %73 : vector<1x128xbf16> to vector<1x128xf32>
    %75 = vector.broadcast %71 : vector<16x1xf32> to vector<16x128xf32>
    %76 = vector.broadcast %74 : vector<1x128xf32> to vector<16x128xf32>
    %77 = arith.mulf %75, %76 : vector<16x128xf32>
    %78 = arith.addf %70, %77 : vector<16x128xf32>
    %c0_45 = arith.constant 0 : index
    %c0_46 = arith.constant 0 : index
    %79 = vector.load %arg7[%c0_45, %c0_46] : memref<1x128xf32, #tpu.memory_space<vmem>>, vector<1x128xf32>
    %80 = vector.broadcast %79 : vector<1x128xf32> to vector<16x128xf32>
    %81 = arith.addf %78, %80 : vector<16x128xf32>
    %cst_47 = arith.constant 0.000000e+00 : f32
    %82 = vector.broadcast %cst_47 : f32 to vector<16x128xf32>
    %83 = arith.cmpf oge, %81, %82 : vector<16x128xf32>
    %cst_48 = arith.constant 0.00999999977 : f32
    %84 = vector.broadcast %cst_48 : f32 to vector<16x128xf32>
    %85 = arith.mulf %84, %81 : vector<16x128xf32>
    %86 = arith.select %83, %81, %85 : vector<16x128xi1>, vector<16x128xf32>
    %c0_49 = arith.constant 0 : index
    %c0_50 = arith.constant 0 : index
    %c0_51 = arith.constant 0 : index
    %c0_52 = arith.constant 0 : index
    %87 = vector.load %arg8[%c0_49, %c0_50, %c0_51, %c0_52] : memref<1x1x16x128xf32, #tpu.memory_space<vmem>>, vector<1x1x16x128xf32>
    %88 = vector.shape_cast %87 : vector<1x1x16x128xf32> to vector<16x128xf32>
    %89 = vector.shape_cast %86 : vector<16x128xf32> to vector<1x1x16x128xf32>
    tpu.vector_store %arg8[%c0_49, %c0_50, %c0_51, %c0_52], %89 {strides = array<i32>} : memref<1x1x16x128xf32, #tpu.memory_space<vmem>>, vector<1x1x16x128xf32>,
    return
  }
  func.func @transform_0(%arg0: i32, %arg1: i32, %arg2: i32) -> (i32, i32, i32, i32) {
    %c0_i32 = arith.constant 0 : i32
    %0 = arith.addi %arg1, %c0_i32 : i32
    %c0_i32_0 = arith.constant 0 : i32
    %c0_i32_1 = arith.constant 0 : i32
    %c0_i32_2 = arith.constant 0 : i32
    return %arg0, %0, %c0_i32_0, %c0_i32_1 : i32, i32, i32, i32
  }
  func.func @transform_1(%arg0: i32, %arg1: i32, %arg2: i32) -> (i32, i32, i32, i32) {
    %c1_i32 = arith.constant 1 : i32
    %0 = arith.addi %arg1, %c1_i32 : i32
    %c0_i32 = arith.constant 0 : i32
    %c0_i32_0 = arith.constant 0 : i32
    %c0_i32_1 = arith.constant 0 : i32
    return %arg0, %0, %c0_i32, %c0_i32_0 : i32, i32, i32, i32
  }
  func.func @transform_2(%arg0: i32, %arg1: i32, %arg2: i32) -> (i32, i32, i32, i32) {
    %c2_i32 = arith.constant 2 : i32
    %0 = arith.addi %arg1, %c2_i32 : i32
    %c0_i32 = arith.constant 0 : i32
    %c0_i32_0 = arith.constant 0 : i32
    %c0_i32_1 = arith.constant 0 : i32
    return %arg0, %0, %c0_i32, %c0_i32_0 : i32, i32, i32, i32
  }
  func.func @transform_3(%arg0: i32, %arg1: i32, %arg2: i32) -> (i32, i32, i32, i32) {
    %c0_i32 = arith.constant 0 : i32
    %c0_i32_0 = arith.constant 0 : i32
    %c0_i32_1 = arith.constant 0 : i32
    %c0_i32_2 = arith.constant 0 : i32
    return %c0_i32, %c0_i32_0, %c0_i32_1, %arg2 : i32, i32, i32, i32
  }
  func.func @transform_4(%arg0: i32, %arg1: i32, %arg2: i32) -> (i32, i32) {
    %c0_i32 = arith.constant 0 : i32
    %c0_i32_0 = arith.constant 0 : i32
    return %c0_i32, %arg2 : i32, i32
  }
  func.func @transform_5(%arg0: i32, %arg1: i32, %arg2: i32) -> (i32, i32, i32, i32) {
    %c0_i32 = arith.constant 0 : i32
    %c0_i32_0 = arith.constant 0 : i32
    return %arg0, %arg1, %c0_i32, %arg2 : i32, i32, i32, i32
  }
}

module attributes {stable_mosaic.version = 11 : i64} {
  func.func @_conv_row_kernel(%arg0: i32, %arg1: i32, %arg2: i32, %arg3: memref<1x2x9x16xf32, #tpu.memory_space<vmem>>, %arg4: memref<1x2x9x16xf32, #tpu.memory_space<vmem>>, %arg5: memref<4x2x16x128xbf16, #tpu.memory_space<vmem>>, %arg6: memref<1x128xf32, #tpu.memory_space<vmem>>, %arg7: memref<1x1x8x128xf32, #tpu.memory_space<vmem>>) attributes {dimension_semantics = [#tpu.dimension_semantics<parallel>, #tpu.dimension_semantics<parallel>, #tpu.dimension_semantics<parallel>], iteration_bounds = array<i64: 2, 8, 1>, scalar_prefetch = 0 : i64, scratch_operands = 0 : i64, tpu.core_type = #tpu.core_type<tc>, window_params = [{transform_indices = @transform_0, window_bounds = array<i64: 1, 2, 9, 16>}, {transform_indices = @transform_1, window_bounds = array<i64: 1, 2, 9, 16>}, {transform_indices = @transform_2, window_bounds = array<i64: 4, 2, 16, 128>}, {transform_indices = @transform_3, window_bounds = array<i64: 1, 128>}, {transform_indices = @transform_4, window_bounds = array<i64: 1, 1, 8, 128>}]} {
    %c0 = arith.constant 0 : index
    %c0_0 = arith.constant 0 : index
    %c0_1 = arith.constant 0 : index
    %c0_2 = arith.constant 0 : index
    %0 = vector.load %arg3[%c0, %c0_0, %c0_1, %c0_2] : memref<1x2x9x16xf32, #tpu.memory_space<vmem>>, vector<1x2x9x16xf32>
    %1 = vector.extract_strided_slice %0 {offsets = [0, 0, 0, 0], sizes = [1, 1, 9, 16], strides = [1, 1, 1, 1]} : vector<1x2x9x16xf32> to vector<1x1x9x16xf32>
    %2 = vector.shape_cast %1 : vector<1x1x9x16xf32> to vector<9x16xf32>
    %3 = vector.extract_strided_slice %0 {offsets = [0, 1, 0, 0], sizes = [1, 1, 9, 16], strides = [1, 1, 1, 1]} : vector<1x2x9x16xf32> to vector<1x1x9x16xf32>
    %4 = vector.shape_cast %3 : vector<1x1x9x16xf32> to vector<9x16xf32>
    %c0_3 = arith.constant 0 : index
    %c0_4 = arith.constant 0 : index
    %c0_5 = arith.constant 0 : index
    %c0_6 = arith.constant 0 : index
    %5 = vector.load %arg4[%c0_3, %c0_4, %c0_5, %c0_6] : memref<1x2x9x16xf32, #tpu.memory_space<vmem>>, vector<1x2x9x16xf32>
    %6 = vector.extract_strided_slice %5 {offsets = [0, 0, 0, 0], sizes = [1, 1, 9, 16], strides = [1, 1, 1, 1]} : vector<1x2x9x16xf32> to vector<1x1x9x16xf32>
    %7 = vector.shape_cast %6 : vector<1x1x9x16xf32> to vector<9x16xf32>
    %8 = vector.extract_strided_slice %5 {offsets = [0, 1, 0, 0], sizes = [1, 1, 9, 16], strides = [1, 1, 1, 1]} : vector<1x2x9x16xf32> to vector<1x1x9x16xf32>
    %9 = vector.shape_cast %8 : vector<1x1x9x16xf32> to vector<9x16xf32>
    %cst = arith.constant 0.000000e+00 : f32
    %10 = vector.broadcast %cst : f32 to vector<8x128xf32>
    %11 = vector.extract_strided_slice %2 {offsets = [0, 0], sizes = [8, 16], strides = [1, 1]} : vector<9x16xf32> to vector<8x16xf32>
    %c0_7 = arith.constant 0 : index
    %c0_8 = arith.constant 0 : index
    %c0_9 = arith.constant 0 : index
    %c0_10 = arith.constant 0 : index
    %12 = vector.load %arg5[%c0_7, %c0_8, %c0_9, %c0_10] : memref<4x2x16x128xbf16, #tpu.memory_space<vmem>>, vector<1x1x16x128xbf16>
    %13 = vector.shape_cast %12 : vector<1x1x16x128xbf16> to vector<16x128xbf16>
    %14 = arith.truncf %11 : vector<8x16xf32> to vector<8x16xbf16>
    %cst_11 = arith.constant dense<0.000000e+00> : vector<8x128xf32>
    %15 = tpu.matmul %14, %13, %cst_11 {dimension_numbers = #tpu.dot_dimension_numbers<[1], [0], [0], [1], [0, 0, 1, 1], [], []>} : vector<8x16xbf16>, vector<16x128xbf16>, vector<8x128xf32> -> vector<8x128xf32>
    %16 = arith.addf %10, %15 : vector<8x128xf32>
    %17 = vector.extract_strided_slice %2 {offsets = [1, 0], sizes = [8, 16], strides = [1, 1]} : vector<9x16xf32> to vector<8x16xf32>
    %c0_12 = arith.constant 0 : index
    %c1 = arith.constant 1 : index
    %c0_13 = arith.constant 0 : index
    %c0_14 = arith.constant 0 : index
    %18 = vector.load %arg5[%c0_12, %c1, %c0_13, %c0_14] : memref<4x2x16x128xbf16, #tpu.memory_space<vmem>>, vector<1x1x16x128xbf16>
    %19 = vector.shape_cast %18 : vector<1x1x16x128xbf16> to vector<16x128xbf16>
    %20 = arith.truncf %17 : vector<8x16xf32> to vector<8x16xbf16>
    %cst_15 = arith.constant dense<0.000000e+00> : vector<8x128xf32>
    %21 = tpu.matmul %20, %19, %cst_15 {dimension_numbers = #tpu.dot_dimension_numbers<[1], [0], [0], [1], [0, 0, 1, 1], [], []>} : vector<8x16xbf16>, vector<16x128xbf16>, vector<8x128xf32> -> vector<8x128xf32>
    %22 = arith.addf %16, %21 : vector<8x128xf32>
    %23 = vector.extract_strided_slice %4 {offsets = [0, 0], sizes = [8, 16], strides = [1, 1]} : vector<9x16xf32> to vector<8x16xf32>
    %c1_16 = arith.constant 1 : index
    %c0_17 = arith.constant 0 : index
    %c0_18 = arith.constant 0 : index
    %c0_19 = arith.constant 0 : index
    %24 = vector.load %arg5[%c1_16, %c0_17, %c0_18, %c0_19] : memref<4x2x16x128xbf16, #tpu.memory_space<vmem>>, vector<1x1x16x128xbf16>
    %25 = vector.shape_cast %24 : vector<1x1x16x128xbf16> to vector<16x128xbf16>
    %26 = arith.truncf %23 : vector<8x16xf32> to vector<8x16xbf16>
    %cst_20 = arith.constant dense<0.000000e+00> : vector<8x128xf32>
    %27 = tpu.matmul %26, %25, %cst_20 {dimension_numbers = #tpu.dot_dimension_numbers<[1], [0], [0], [1], [0, 0, 1, 1], [], []>} : vector<8x16xbf16>, vector<16x128xbf16>, vector<8x128xf32> -> vector<8x128xf32>
    %28 = arith.addf %22, %27 : vector<8x128xf32>
    %29 = vector.extract_strided_slice %4 {offsets = [1, 0], sizes = [8, 16], strides = [1, 1]} : vector<9x16xf32> to vector<8x16xf32>
    %c1_21 = arith.constant 1 : index
    %c1_22 = arith.constant 1 : index
    %c0_23 = arith.constant 0 : index
    %c0_24 = arith.constant 0 : index
    %30 = vector.load %arg5[%c1_21, %c1_22, %c0_23, %c0_24] : memref<4x2x16x128xbf16, #tpu.memory_space<vmem>>, vector<1x1x16x128xbf16>
    %31 = vector.shape_cast %30 : vector<1x1x16x128xbf16> to vector<16x128xbf16>
    %32 = arith.truncf %29 : vector<8x16xf32> to vector<8x16xbf16>
    %cst_25 = arith.constant dense<0.000000e+00> : vector<8x128xf32>
    %33 = tpu.matmul %32, %31, %cst_25 {dimension_numbers = #tpu.dot_dimension_numbers<[1], [0], [0], [1], [0, 0, 1, 1], [], []>} : vector<8x16xbf16>, vector<16x128xbf16>, vector<8x128xf32> -> vector<8x128xf32>
    %34 = arith.addf %28, %33 : vector<8x128xf32>
    %35 = vector.extract_strided_slice %7 {offsets = [0, 0], sizes = [8, 16], strides = [1, 1]} : vector<9x16xf32> to vector<8x16xf32>
    %c2 = arith.constant 2 : index
    %c0_26 = arith.constant 0 : index
    %c0_27 = arith.constant 0 : index
    %c0_28 = arith.constant 0 : index
    %36 = vector.load %arg5[%c2, %c0_26, %c0_27, %c0_28] : memref<4x2x16x128xbf16, #tpu.memory_space<vmem>>, vector<1x1x16x128xbf16>
    %37 = vector.shape_cast %36 : vector<1x1x16x128xbf16> to vector<16x128xbf16>
    %38 = arith.truncf %35 : vector<8x16xf32> to vector<8x16xbf16>
    %cst_29 = arith.constant dense<0.000000e+00> : vector<8x128xf32>
    %39 = tpu.matmul %38, %37, %cst_29 {dimension_numbers = #tpu.dot_dimension_numbers<[1], [0], [0], [1], [0, 0, 1, 1], [], []>} : vector<8x16xbf16>, vector<16x128xbf16>, vector<8x128xf32> -> vector<8x128xf32>
    %40 = arith.addf %34, %39 : vector<8x128xf32>
    %41 = vector.extract_strided_slice %7 {offsets = [1, 0], sizes = [8, 16], strides = [1, 1]} : vector<9x16xf32> to vector<8x16xf32>
    %c2_30 = arith.constant 2 : index
    %c1_31 = arith.constant 1 : index
    %c0_32 = arith.constant 0 : index
    %c0_33 = arith.constant 0 : index
    %42 = vector.load %arg5[%c2_30, %c1_31, %c0_32, %c0_33] : memref<4x2x16x128xbf16, #tpu.memory_space<vmem>>, vector<1x1x16x128xbf16>
    %43 = vector.shape_cast %42 : vector<1x1x16x128xbf16> to vector<16x128xbf16>
    %44 = arith.truncf %41 : vector<8x16xf32> to vector<8x16xbf16>
    %cst_34 = arith.constant dense<0.000000e+00> : vector<8x128xf32>
    %45 = tpu.matmul %44, %43, %cst_34 {dimension_numbers = #tpu.dot_dimension_numbers<[1], [0], [0], [1], [0, 0, 1, 1], [], []>} : vector<8x16xbf16>, vector<16x128xbf16>, vector<8x128xf32> -> vector<8x128xf32>
    %46 = arith.addf %40, %45 : vector<8x128xf32>
    %47 = vector.extract_strided_slice %9 {offsets = [0, 0], sizes = [8, 16], strides = [1, 1]} : vector<9x16xf32> to vector<8x16xf32>
    %c3 = arith.constant 3 : index
    %c0_35 = arith.constant 0 : index
    %c0_36 = arith.constant 0 : index
    %c0_37 = arith.constant 0 : index
    %48 = vector.load %arg5[%c3, %c0_35, %c0_36, %c0_37] : memref<4x2x16x128xbf16, #tpu.memory_space<vmem>>, vector<1x1x16x128xbf16>
    %49 = vector.shape_cast %48 : vector<1x1x16x128xbf16> to vector<16x128xbf16>
    %50 = arith.truncf %47 : vector<8x16xf32> to vector<8x16xbf16>
    %cst_38 = arith.constant dense<0.000000e+00> : vector<8x128xf32>
    %51 = tpu.matmul %50, %49, %cst_38 {dimension_numbers = #tpu.dot_dimension_numbers<[1], [0], [0], [1], [0, 0, 1, 1], [], []>} : vector<8x16xbf16>, vector<16x128xbf16>, vector<8x128xf32> -> vector<8x128xf32>
    %52 = arith.addf %46, %51 : vector<8x128xf32>
    %53 = vector.extract_strided_slice %9 {offsets = [1, 0], sizes = [8, 16], strides = [1, 1]} : vector<9x16xf32> to vector<8x16xf32>
    %c3_39 = arith.constant 3 : index
    %c1_40 = arith.constant 1 : index
    %c0_41 = arith.constant 0 : index
    %c0_42 = arith.constant 0 : index
    %54 = vector.load %arg5[%c3_39, %c1_40, %c0_41, %c0_42] : memref<4x2x16x128xbf16, #tpu.memory_space<vmem>>, vector<1x1x16x128xbf16>
    %55 = vector.shape_cast %54 : vector<1x1x16x128xbf16> to vector<16x128xbf16>
    %56 = arith.truncf %53 : vector<8x16xf32> to vector<8x16xbf16>
    %cst_43 = arith.constant dense<0.000000e+00> : vector<8x128xf32>
    %57 = tpu.matmul %56, %55, %cst_43 {dimension_numbers = #tpu.dot_dimension_numbers<[1], [0], [0], [1], [0, 0, 1, 1], [], []>} : vector<8x16xbf16>, vector<16x128xbf16>, vector<8x128xf32> -> vector<8x128xf32>
    %58 = arith.addf %52, %57 : vector<8x128xf32>
    %c0_44 = arith.constant 0 : index
    %c0_45 = arith.constant 0 : index
    %59 = vector.load %arg6[%c0_44, %c0_45] : memref<1x128xf32, #tpu.memory_space<vmem>>, vector<1x128xf32>
    %60 = vector.broadcast %59 : vector<1x128xf32> to vector<8x128xf32>
    %61 = arith.addf %58, %60 : vector<8x128xf32>
    %c0_46 = arith.constant 0 : index
    %c0_47 = arith.constant 0 : index
    %c0_48 = arith.constant 0 : index
    %c0_49 = arith.constant 0 : index
    %62 = vector.load %arg7[%c0_46, %c0_47, %c0_48, %c0_49] : memref<1x1x8x128xf32, #tpu.memory_space<vmem>>, vector<1x1x8x128xf32>
    %63 = vector.shape_cast %62 : vector<1x1x8x128xf32> to vector<8x128xf32>
    %64 = vector.shape_cast %61 : vector<8x128xf32> to vector<1x1x8x128xf32>
    tpu.vector_store %arg7[%c0_46, %c0_47, %c0_48, %c0_49], %64 {strides = array<i32>} : memref<1x1x8x128xf32, #tpu.memory_space<vmem>>, vector<1x1x8x128xf32>,
    return
  }
  func.func @transform_0(%arg0: i32, %arg1: i32, %arg2: i32) -> (i32, i32, i32, i32) {
    %c0_i32 = arith.constant 0 : i32
    %0 = arith.addi %arg1, %c0_i32 : i32
    %c0_i32_0 = arith.constant 0 : i32
    %c0_i32_1 = arith.constant 0 : i32
    %c0_i32_2 = arith.constant 0 : i32
    return %arg0, %0, %c0_i32_0, %c0_i32_1 : i32, i32, i32, i32
  }
  func.func @transform_1(%arg0: i32, %arg1: i32, %arg2: i32) -> (i32, i32, i32, i32) {
    %c1_i32 = arith.constant 1 : i32
    %0 = arith.addi %arg1, %c1_i32 : i32
    %c0_i32 = arith.constant 0 : i32
    %c0_i32_0 = arith.constant 0 : i32
    %c0_i32_1 = arith.constant 0 : i32
    return %arg0, %0, %c0_i32, %c0_i32_0 : i32, i32, i32, i32
  }
  func.func @transform_2(%arg0: i32, %arg1: i32, %arg2: i32) -> (i32, i32, i32, i32) {
    %c0_i32 = arith.constant 0 : i32
    %c0_i32_0 = arith.constant 0 : i32
    %c0_i32_1 = arith.constant 0 : i32
    %c0_i32_2 = arith.constant 0 : i32
    return %c0_i32, %c0_i32_0, %c0_i32_1, %arg2 : i32, i32, i32, i32
  }
  func.func @transform_3(%arg0: i32, %arg1: i32, %arg2: i32) -> (i32, i32) {
    %c0_i32 = arith.constant 0 : i32
    %c0_i32_0 = arith.constant 0 : i32
    return %c0_i32, %arg2 : i32, i32
  }
  func.func @transform_4(%arg0: i32, %arg1: i32, %arg2: i32) -> (i32, i32, i32, i32) {
    %c0_i32 = arith.constant 0 : i32
    %c0_i32_0 = arith.constant 0 : i32
    return %arg0, %arg1, %c0_i32, %arg2 : i32, i32, i32, i32
  }
}

module attributes {stable_mosaic.version = 11 : i64} {
  func.func @_conv_row_kernel(%arg0: i32, %arg1: i32, %arg2: i32, %arg3: memref<1x2x5x32xf32, #tpu.memory_space<vmem>>, %arg4: memref<1x2x5x32xf32, #tpu.memory_space<vmem>>, %arg5: memref<4x2x32x128xbf16, #tpu.memory_space<vmem>>, %arg6: memref<1x128xf32, #tpu.memory_space<vmem>>, %arg7: memref<1x1x4x128xf32, #tpu.memory_space<vmem>>) attributes {dimension_semantics = [#tpu.dimension_semantics<parallel>, #tpu.dimension_semantics<parallel>, #tpu.dimension_semantics<parallel>], iteration_bounds = array<i64: 2, 4, 1>, scalar_prefetch = 0 : i64, scratch_operands = 0 : i64, tpu.core_type = #tpu.core_type<tc>, window_params = [{transform_indices = @transform_0, window_bounds = array<i64: 1, 2, 5, 32>}, {transform_indices = @transform_1, window_bounds = array<i64: 1, 2, 5, 32>}, {transform_indices = @transform_2, window_bounds = array<i64: 4, 2, 32, 128>}, {transform_indices = @transform_3, window_bounds = array<i64: 1, 128>}, {transform_indices = @transform_4, window_bounds = array<i64: 1, 1, 4, 128>}]} {
    %c0 = arith.constant 0 : index
    %c0_0 = arith.constant 0 : index
    %c0_1 = arith.constant 0 : index
    %c0_2 = arith.constant 0 : index
    %0 = vector.load %arg3[%c0, %c0_0, %c0_1, %c0_2] : memref<1x2x5x32xf32, #tpu.memory_space<vmem>>, vector<1x2x5x32xf32>
    %1 = vector.extract_strided_slice %0 {offsets = [0, 0, 0, 0], sizes = [1, 1, 5, 32], strides = [1, 1, 1, 1]} : vector<1x2x5x32xf32> to vector<1x1x5x32xf32>
    %2 = vector.shape_cast %1 : vector<1x1x5x32xf32> to vector<5x32xf32>
    %3 = vector.extract_strided_slice %0 {offsets = [0, 1, 0, 0], sizes = [1, 1, 5, 32], strides = [1, 1, 1, 1]} : vector<1x2x5x32xf32> to vector<1x1x5x32xf32>
    %4 = vector.shape_cast %3 : vector<1x1x5x32xf32> to vector<5x32xf32>
    %c0_3 = arith.constant 0 : index
    %c0_4 = arith.constant 0 : index
    %c0_5 = arith.constant 0 : index
    %c0_6 = arith.constant 0 : index
    %5 = vector.load %arg4[%c0_3, %c0_4, %c0_5, %c0_6] : memref<1x2x5x32xf32, #tpu.memory_space<vmem>>, vector<1x2x5x32xf32>
    %6 = vector.extract_strided_slice %5 {offsets = [0, 0, 0, 0], sizes = [1, 1, 5, 32], strides = [1, 1, 1, 1]} : vector<1x2x5x32xf32> to vector<1x1x5x32xf32>
    %7 = vector.shape_cast %6 : vector<1x1x5x32xf32> to vector<5x32xf32>
    %8 = vector.extract_strided_slice %5 {offsets = [0, 1, 0, 0], sizes = [1, 1, 5, 32], strides = [1, 1, 1, 1]} : vector<1x2x5x32xf32> to vector<1x1x5x32xf32>
    %9 = vector.shape_cast %8 : vector<1x1x5x32xf32> to vector<5x32xf32>
    %cst = arith.constant 0.000000e+00 : f32
    %10 = vector.broadcast %cst : f32 to vector<4x128xf32>
    %11 = vector.extract_strided_slice %2 {offsets = [0, 0], sizes = [4, 32], strides = [1, 1]} : vector<5x32xf32> to vector<4x32xf32>
    %c0_7 = arith.constant 0 : index
    %c0_8 = arith.constant 0 : index
    %c0_9 = arith.constant 0 : index
    %c0_10 = arith.constant 0 : index
    %12 = vector.load %arg5[%c0_7, %c0_8, %c0_9, %c0_10] : memref<4x2x32x128xbf16, #tpu.memory_space<vmem>>, vector<1x1x32x128xbf16>
    %13 = vector.shape_cast %12 : vector<1x1x32x128xbf16> to vector<32x128xbf16>
    %14 = arith.truncf %11 : vector<4x32xf32> to vector<4x32xbf16>
    %cst_11 = arith.constant dense<0.000000e+00> : vector<4x128xf32>
    %15 = tpu.matmul %14, %13, %cst_11 {dimension_numbers = #tpu.dot_dimension_numbers<[1], [0], [0], [1], [0, 0, 1, 1], [], []>} : vector<4x32xbf16>, vector<32x128xbf16>, vector<4x128xf32> -> vector<4x128xf32>
    %16 = arith.addf %10, %15 : vector<4x128xf32>
    %17 = vector.extract_strided_slice %2 {offsets = [1, 0], sizes = [4, 32], strides = [1, 1]} : vector<5x32xf32> to vector<4x32xf32>
    %c0_12 = arith.constant 0 : index
    %c1 = arith.constant 1 : index
    %c0_13 = arith.constant 0 : index
    %c0_14 = arith.constant 0 : index
    %18 = vector.load %arg5[%c0_12, %c1, %c0_13, %c0_14] : memref<4x2x32x128xbf16, #tpu.memory_space<vmem>>, vector<1x1x32x128xbf16>
    %19 = vector.shape_cast %18 : vector<1x1x32x128xbf16> to vector<32x128xbf16>
    %20 = arith.truncf %17 : vector<4x32xf32> to vector<4x32xbf16>
    %cst_15 = arith.constant dense<0.000000e+00> : vector<4x128xf32>
    %21 = tpu.matmul %20, %19, %cst_15 {dimension_numbers = #tpu.dot_dimension_numbers<[1], [0], [0], [1], [0, 0, 1, 1], [], []>} : vector<4x32xbf16>, vector<32x128xbf16>, vector<4x128xf32> -> vector<4x128xf32>
    %22 = arith.addf %16, %21 : vector<4x128xf32>
    %23 = vector.extract_strided_slice %4 {offsets = [0, 0], sizes = [4, 32], strides = [1, 1]} : vector<5x32xf32> to vector<4x32xf32>
    %c1_16 = arith.constant 1 : index
    %c0_17 = arith.constant 0 : index
    %c0_18 = arith.constant 0 : index
    %c0_19 = arith.constant 0 : index
    %24 = vector.load %arg5[%c1_16, %c0_17, %c0_18, %c0_19] : memref<4x2x32x128xbf16, #tpu.memory_space<vmem>>, vector<1x1x32x128xbf16>
    %25 = vector.shape_cast %24 : vector<1x1x32x128xbf16> to vector<32x128xbf16>
    %26 = arith.truncf %23 : vector<4x32xf32> to vector<4x32xbf16>
    %cst_20 = arith.constant dense<0.000000e+00> : vector<4x128xf32>
    %27 = tpu.matmul %26, %25, %cst_20 {dimension_numbers = #tpu.dot_dimension_numbers<[1], [0], [0], [1], [0, 0, 1, 1], [], []>} : vector<4x32xbf16>, vector<32x128xbf16>, vector<4x128xf32> -> vector<4x128xf32>
    %28 = arith.addf %22, %27 : vector<4x128xf32>
    %29 = vector.extract_strided_slice %4 {offsets = [1, 0], sizes = [4, 32], strides = [1, 1]} : vector<5x32xf32> to vector<4x32xf32>
    %c1_21 = arith.constant 1 : index
    %c1_22 = arith.constant 1 : index
    %c0_23 = arith.constant 0 : index
    %c0_24 = arith.constant 0 : index
    %30 = vector.load %arg5[%c1_21, %c1_22, %c0_23, %c0_24] : memref<4x2x32x128xbf16, #tpu.memory_space<vmem>>, vector<1x1x32x128xbf16>
    %31 = vector.shape_cast %30 : vector<1x1x32x128xbf16> to vector<32x128xbf16>
    %32 = arith.truncf %29 : vector<4x32xf32> to vector<4x32xbf16>
    %cst_25 = arith.constant dense<0.000000e+00> : vector<4x128xf32>
    %33 = tpu.matmul %32, %31, %cst_25 {dimension_numbers = #tpu.dot_dimension_numbers<[1], [0], [0], [1], [0, 0, 1, 1], [], []>} : vector<4x32xbf16>, vector<32x128xbf16>, vector<4x128xf32> -> vector<4x128xf32>
    %34 = arith.addf %28, %33 : vector<4x128xf32>
    %35 = vector.extract_strided_slice %7 {offsets = [0, 0], sizes = [4, 32], strides = [1, 1]} : vector<5x32xf32> to vector<4x32xf32>
    %c2 = arith.constant 2 : index
    %c0_26 = arith.constant 0 : index
    %c0_27 = arith.constant 0 : index
    %c0_28 = arith.constant 0 : index
    %36 = vector.load %arg5[%c2, %c0_26, %c0_27, %c0_28] : memref<4x2x32x128xbf16, #tpu.memory_space<vmem>>, vector<1x1x32x128xbf16>
    %37 = vector.shape_cast %36 : vector<1x1x32x128xbf16> to vector<32x128xbf16>
    %38 = arith.truncf %35 : vector<4x32xf32> to vector<4x32xbf16>
    %cst_29 = arith.constant dense<0.000000e+00> : vector<4x128xf32>
    %39 = tpu.matmul %38, %37, %cst_29 {dimension_numbers = #tpu.dot_dimension_numbers<[1], [0], [0], [1], [0, 0, 1, 1], [], []>} : vector<4x32xbf16>, vector<32x128xbf16>, vector<4x128xf32> -> vector<4x128xf32>
    %40 = arith.addf %34, %39 : vector<4x128xf32>
    %41 = vector.extract_strided_slice %7 {offsets = [1, 0], sizes = [4, 32], strides = [1, 1]} : vector<5x32xf32> to vector<4x32xf32>
    %c2_30 = arith.constant 2 : index
    %c1_31 = arith.constant 1 : index
    %c0_32 = arith.constant 0 : index
    %c0_33 = arith.constant 0 : index
    %42 = vector.load %arg5[%c2_30, %c1_31, %c0_32, %c0_33] : memref<4x2x32x128xbf16, #tpu.memory_space<vmem>>, vector<1x1x32x128xbf16>
    %43 = vector.shape_cast %42 : vector<1x1x32x128xbf16> to vector<32x128xbf16>
    %44 = arith.truncf %41 : vector<4x32xf32> to vector<4x32xbf16>
    %cst_34 = arith.constant dense<0.000000e+00> : vector<4x128xf32>
    %45 = tpu.matmul %44, %43, %cst_34 {dimension_numbers = #tpu.dot_dimension_numbers<[1], [0], [0], [1], [0, 0, 1, 1], [], []>} : vector<4x32xbf16>, vector<32x128xbf16>, vector<4x128xf32> -> vector<4x128xf32>
    %46 = arith.addf %40, %45 : vector<4x128xf32>
    %47 = vector.extract_strided_slice %9 {offsets = [0, 0], sizes = [4, 32], strides = [1, 1]} : vector<5x32xf32> to vector<4x32xf32>
    %c3 = arith.constant 3 : index
    %c0_35 = arith.constant 0 : index
    %c0_36 = arith.constant 0 : index
    %c0_37 = arith.constant 0 : index
    %48 = vector.load %arg5[%c3, %c0_35, %c0_36, %c0_37] : memref<4x2x32x128xbf16, #tpu.memory_space<vmem>>, vector<1x1x32x128xbf16>
    %49 = vector.shape_cast %48 : vector<1x1x32x128xbf16> to vector<32x128xbf16>
    %50 = arith.truncf %47 : vector<4x32xf32> to vector<4x32xbf16>
    %cst_38 = arith.constant dense<0.000000e+00> : vector<4x128xf32>
    %51 = tpu.matmul %50, %49, %cst_38 {dimension_numbers = #tpu.dot_dimension_numbers<[1], [0], [0], [1], [0, 0, 1, 1], [], []>} : vector<4x32xbf16>, vector<32x128xbf16>, vector<4x128xf32> -> vector<4x128xf32>
    %52 = arith.addf %46, %51 : vector<4x128xf32>
    %53 = vector.extract_strided_slice %9 {offsets = [1, 0], sizes = [4, 32], strides = [1, 1]} : vector<5x32xf32> to vector<4x32xf32>
    %c3_39 = arith.constant 3 : index
    %c1_40 = arith.constant 1 : index
    %c0_41 = arith.constant 0 : index
    %c0_42 = arith.constant 0 : index
    %54 = vector.load %arg5[%c3_39, %c1_40, %c0_41, %c0_42] : memref<4x2x32x128xbf16, #tpu.memory_space<vmem>>, vector<1x1x32x128xbf16>
    %55 = vector.shape_cast %54 : vector<1x1x32x128xbf16> to vector<32x128xbf16>
    %56 = arith.truncf %53 : vector<4x32xf32> to vector<4x32xbf16>
    %cst_43 = arith.constant dense<0.000000e+00> : vector<4x128xf32>
    %57 = tpu.matmul %56, %55, %cst_43 {dimension_numbers = #tpu.dot_dimension_numbers<[1], [0], [0], [1], [0, 0, 1, 1], [], []>} : vector<4x32xbf16>, vector<32x128xbf16>, vector<4x128xf32> -> vector<4x128xf32>
    %58 = arith.addf %52, %57 : vector<4x128xf32>
    %c0_44 = arith.constant 0 : index
    %c0_45 = arith.constant 0 : index
    %59 = vector.load %arg6[%c0_44, %c0_45] : memref<1x128xf32, #tpu.memory_space<vmem>>, vector<1x128xf32>
    %60 = vector.broadcast %59 : vector<1x128xf32> to vector<4x128xf32>
    %61 = arith.addf %58, %60 : vector<4x128xf32>
    %c0_46 = arith.constant 0 : index
    %c0_47 = arith.constant 0 : index
    %c0_48 = arith.constant 0 : index
    %c0_49 = arith.constant 0 : index
    %62 = vector.load %arg7[%c0_46, %c0_47, %c0_48, %c0_49] : memref<1x1x4x128xf32, #tpu.memory_space<vmem>>, vector<1x1x4x128xf32>
    %63 = vector.shape_cast %62 : vector<1x1x4x128xf32> to vector<4x128xf32>
    %64 = vector.shape_cast %61 : vector<4x128xf32> to vector<1x1x4x128xf32>
    tpu.vector_store %arg7[%c0_46, %c0_47, %c0_48, %c0_49], %64 {strides = array<i32>} : memref<1x1x4x128xf32, #tpu.memory_space<vmem>>, vector<1x1x4x128xf32>,
    return
  }
  func.func @transform_0(%arg0: i32, %arg1: i32, %arg2: i32) -> (i32, i32, i32, i32) {
    %c0_i32 = arith.constant 0 : i32
    %0 = arith.addi %arg1, %c0_i32 : i32
    %c0_i32_0 = arith.constant 0 : i32
    %c0_i32_1 = arith.constant 0 : i32
    %c0_i32_2 = arith.constant 0 : i32
    return %arg0, %0, %c0_i32_0, %c0_i32_1 : i32, i32, i32, i32
  }
  func.func @transform_1(%arg0: i32, %arg1: i32, %arg2: i32) -> (i32, i32, i32, i32) {
    %c1_i32 = arith.constant 1 : i32
    %0 = arith.addi %arg1, %c1_i32 : i32
    %c0_i32 = arith.constant 0 : i32
    %c0_i32_0 = arith.constant 0 : i32
    %c0_i32_1 = arith.constant 0 : i32
    return %arg0, %0, %c0_i32, %c0_i32_0 : i32, i32, i32, i32
  }
  func.func @transform_2(%arg0: i32, %arg1: i32, %arg2: i32) -> (i32, i32, i32, i32) {
    %c0_i32 = arith.constant 0 : i32
    %c0_i32_0 = arith.constant 0 : i32
    %c0_i32_1 = arith.constant 0 : i32
    %c0_i32_2 = arith.constant 0 : i32
    return %c0_i32, %c0_i32_0, %c0_i32_1, %arg2 : i32, i32, i32, i32
  }
  func.func @transform_3(%arg0: i32, %arg1: i32, %arg2: i32) -> (i32, i32) {
    %c0_i32 = arith.constant 0 : i32
    %c0_i32_0 = arith.constant 0 : i32
    return %c0_i32, %arg2 : i32, i32
  }
  func.func @transform_4(%arg0: i32, %arg1: i32, %arg2: i32) -> (i32, i32, i32, i32) {
    %c0_i32 = arith.constant 0 : i32
    %c0_i32_0 = arith.constant 0 : i32
    return %arg0, %arg1, %c0_i32, %arg2 : i32, i32, i32, i32
  }
}

module attributes {stable_mosaic.version = 11 : i64} {
  func.func @_conv_row_kernel(%arg0: i32, %arg1: i32, %arg2: i32, %arg3: memref<1x2x3x64xf32, #tpu.memory_space<vmem>>, %arg4: memref<1x2x3x64xf32, #tpu.memory_space<vmem>>, %arg5: memref<4x2x64x128xbf16, #tpu.memory_space<vmem>>, %arg6: memref<1x128xf32, #tpu.memory_space<vmem>>, %arg7: memref<1x1x2x128xf32, #tpu.memory_space<vmem>>) attributes {dimension_semantics = [#tpu.dimension_semantics<parallel>, #tpu.dimension_semantics<parallel>, #tpu.dimension_semantics<parallel>], iteration_bounds = array<i64: 2, 2, 1>, scalar_prefetch = 0 : i64, scratch_operands = 0 : i64, tpu.core_type = #tpu.core_type<tc>, window_params = [{transform_indices = @transform_0, window_bounds = array<i64: 1, 2, 3, 64>}, {transform_indices = @transform_1, window_bounds = array<i64: 1, 2, 3, 64>}, {transform_indices = @transform_2, window_bounds = array<i64: 4, 2, 64, 128>}, {transform_indices = @transform_3, window_bounds = array<i64: 1, 128>}, {transform_indices = @transform_4, window_bounds = array<i64: 1, 1, 2, 128>}]} {
    %c0 = arith.constant 0 : index
    %c0_0 = arith.constant 0 : index
    %c0_1 = arith.constant 0 : index
    %c0_2 = arith.constant 0 : index
    %0 = vector.load %arg3[%c0, %c0_0, %c0_1, %c0_2] : memref<1x2x3x64xf32, #tpu.memory_space<vmem>>, vector<1x2x3x64xf32>
    %1 = vector.extract_strided_slice %0 {offsets = [0, 0, 0, 0], sizes = [1, 1, 3, 64], strides = [1, 1, 1, 1]} : vector<1x2x3x64xf32> to vector<1x1x3x64xf32>
    %2 = vector.shape_cast %1 : vector<1x1x3x64xf32> to vector<3x64xf32>
    %3 = vector.extract_strided_slice %0 {offsets = [0, 1, 0, 0], sizes = [1, 1, 3, 64], strides = [1, 1, 1, 1]} : vector<1x2x3x64xf32> to vector<1x1x3x64xf32>
    %4 = vector.shape_cast %3 : vector<1x1x3x64xf32> to vector<3x64xf32>
    %c0_3 = arith.constant 0 : index
    %c0_4 = arith.constant 0 : index
    %c0_5 = arith.constant 0 : index
    %c0_6 = arith.constant 0 : index
    %5 = vector.load %arg4[%c0_3, %c0_4, %c0_5, %c0_6] : memref<1x2x3x64xf32, #tpu.memory_space<vmem>>, vector<1x2x3x64xf32>
    %6 = vector.extract_strided_slice %5 {offsets = [0, 0, 0, 0], sizes = [1, 1, 3, 64], strides = [1, 1, 1, 1]} : vector<1x2x3x64xf32> to vector<1x1x3x64xf32>
    %7 = vector.shape_cast %6 : vector<1x1x3x64xf32> to vector<3x64xf32>
    %8 = vector.extract_strided_slice %5 {offsets = [0, 1, 0, 0], sizes = [1, 1, 3, 64], strides = [1, 1, 1, 1]} : vector<1x2x3x64xf32> to vector<1x1x3x64xf32>
    %9 = vector.shape_cast %8 : vector<1x1x3x64xf32> to vector<3x64xf32>
    %cst = arith.constant 0.000000e+00 : f32
    %10 = vector.broadcast %cst : f32 to vector<2x128xf32>
    %11 = vector.extract_strided_slice %2 {offsets = [0, 0], sizes = [2, 64], strides = [1, 1]} : vector<3x64xf32> to vector<2x64xf32>
    %c0_7 = arith.constant 0 : index
    %c0_8 = arith.constant 0 : index
    %c0_9 = arith.constant 0 : index
    %c0_10 = arith.constant 0 : index
    %12 = vector.load %arg5[%c0_7, %c0_8, %c0_9, %c0_10] : memref<4x2x64x128xbf16, #tpu.memory_space<vmem>>, vector<1x1x64x128xbf16>
    %13 = vector.shape_cast %12 : vector<1x1x64x128xbf16> to vector<64x128xbf16>
    %14 = arith.truncf %11 : vector<2x64xf32> to vector<2x64xbf16>
    %cst_11 = arith.constant dense<0.000000e+00> : vector<2x128xf32>
    %15 = tpu.matmul %14, %13, %cst_11 {dimension_numbers = #tpu.dot_dimension_numbers<[1], [0], [0], [1], [0, 0, 1, 1], [], []>} : vector<2x64xbf16>, vector<64x128xbf16>, vector<2x128xf32> -> vector<2x128xf32>
    %16 = arith.addf %10, %15 : vector<2x128xf32>
    %17 = vector.extract_strided_slice %2 {offsets = [1, 0], sizes = [2, 64], strides = [1, 1]} : vector<3x64xf32> to vector<2x64xf32>
    %c0_12 = arith.constant 0 : index
    %c1 = arith.constant 1 : index
    %c0_13 = arith.constant 0 : index
    %c0_14 = arith.constant 0 : index
    %18 = vector.load %arg5[%c0_12, %c1, %c0_13, %c0_14] : memref<4x2x64x128xbf16, #tpu.memory_space<vmem>>, vector<1x1x64x128xbf16>
    %19 = vector.shape_cast %18 : vector<1x1x64x128xbf16> to vector<64x128xbf16>
    %20 = arith.truncf %17 : vector<2x64xf32> to vector<2x64xbf16>
    %cst_15 = arith.constant dense<0.000000e+00> : vector<2x128xf32>
    %21 = tpu.matmul %20, %19, %cst_15 {dimension_numbers = #tpu.dot_dimension_numbers<[1], [0], [0], [1], [0, 0, 1, 1], [], []>} : vector<2x64xbf16>, vector<64x128xbf16>, vector<2x128xf32> -> vector<2x128xf32>
    %22 = arith.addf %16, %21 : vector<2x128xf32>
    %23 = vector.extract_strided_slice %4 {offsets = [0, 0], sizes = [2, 64], strides = [1, 1]} : vector<3x64xf32> to vector<2x64xf32>
    %c1_16 = arith.constant 1 : index
    %c0_17 = arith.constant 0 : index
    %c0_18 = arith.constant 0 : index
    %c0_19 = arith.constant 0 : index
    %24 = vector.load %arg5[%c1_16, %c0_17, %c0_18, %c0_19] : memref<4x2x64x128xbf16, #tpu.memory_space<vmem>>, vector<1x1x64x128xbf16>
    %25 = vector.shape_cast %24 : vector<1x1x64x128xbf16> to vector<64x128xbf16>
    %26 = arith.truncf %23 : vector<2x64xf32> to vector<2x64xbf16>
    %cst_20 = arith.constant dense<0.000000e+00> : vector<2x128xf32>
    %27 = tpu.matmul %26, %25, %cst_20 {dimension_numbers = #tpu.dot_dimension_numbers<[1], [0], [0], [1], [0, 0, 1, 1], [], []>} : vector<2x64xbf16>, vector<64x128xbf16>, vector<2x128xf32> -> vector<2x128xf32>
    %28 = arith.addf %22, %27 : vector<2x128xf32>
    %29 = vector.extract_strided_slice %4 {offsets = [1, 0], sizes = [2, 64], strides = [1, 1]} : vector<3x64xf32> to vector<2x64xf32>
    %c1_21 = arith.constant 1 : index
    %c1_22 = arith.constant 1 : index
    %c0_23 = arith.constant 0 : index
    %c0_24 = arith.constant 0 : index
    %30 = vector.load %arg5[%c1_21, %c1_22, %c0_23, %c0_24] : memref<4x2x64x128xbf16, #tpu.memory_space<vmem>>, vector<1x1x64x128xbf16>
    %31 = vector.shape_cast %30 : vector<1x1x64x128xbf16> to vector<64x128xbf16>
    %32 = arith.truncf %29 : vector<2x64xf32> to vector<2x64xbf16>
    %cst_25 = arith.constant dense<0.000000e+00> : vector<2x128xf32>
    %33 = tpu.matmul %32, %31, %cst_25 {dimension_numbers = #tpu.dot_dimension_numbers<[1], [0], [0], [1], [0, 0, 1, 1], [], []>} : vector<2x64xbf16>, vector<64x128xbf16>, vector<2x128xf32> -> vector<2x128xf32>
    %34 = arith.addf %28, %33 : vector<2x128xf32>
    %35 = vector.extract_strided_slice %7 {offsets = [0, 0], sizes = [2, 64], strides = [1, 1]} : vector<3x64xf32> to vector<2x64xf32>
    %c2 = arith.constant 2 : index
    %c0_26 = arith.constant 0 : index
    %c0_27 = arith.constant 0 : index
    %c0_28 = arith.constant 0 : index
    %36 = vector.load %arg5[%c2, %c0_26, %c0_27, %c0_28] : memref<4x2x64x128xbf16, #tpu.memory_space<vmem>>, vector<1x1x64x128xbf16>
    %37 = vector.shape_cast %36 : vector<1x1x64x128xbf16> to vector<64x128xbf16>
    %38 = arith.truncf %35 : vector<2x64xf32> to vector<2x64xbf16>
    %cst_29 = arith.constant dense<0.000000e+00> : vector<2x128xf32>
    %39 = tpu.matmul %38, %37, %cst_29 {dimension_numbers = #tpu.dot_dimension_numbers<[1], [0], [0], [1], [0, 0, 1, 1], [], []>} : vector<2x64xbf16>, vector<64x128xbf16>, vector<2x128xf32> -> vector<2x128xf32>
    %40 = arith.addf %34, %39 : vector<2x128xf32>
    %41 = vector.extract_strided_slice %7 {offsets = [1, 0], sizes = [2, 64], strides = [1, 1]} : vector<3x64xf32> to vector<2x64xf32>
    %c2_30 = arith.constant 2 : index
    %c1_31 = arith.constant 1 : index
    %c0_32 = arith.constant 0 : index
    %c0_33 = arith.constant 0 : index
    %42 = vector.load %arg5[%c2_30, %c1_31, %c0_32, %c0_33] : memref<4x2x64x128xbf16, #tpu.memory_space<vmem>>, vector<1x1x64x128xbf16>
    %43 = vector.shape_cast %42 : vector<1x1x64x128xbf16> to vector<64x128xbf16>
    %44 = arith.truncf %41 : vector<2x64xf32> to vector<2x64xbf16>
    %cst_34 = arith.constant dense<0.000000e+00> : vector<2x128xf32>
    %45 = tpu.matmul %44, %43, %cst_34 {dimension_numbers = #tpu.dot_dimension_numbers<[1], [0], [0], [1], [0, 0, 1, 1], [], []>} : vector<2x64xbf16>, vector<64x128xbf16>, vector<2x128xf32> -> vector<2x128xf32>
    %46 = arith.addf %40, %45 : vector<2x128xf32>
    %47 = vector.extract_strided_slice %9 {offsets = [0, 0], sizes = [2, 64], strides = [1, 1]} : vector<3x64xf32> to vector<2x64xf32>
    %c3 = arith.constant 3 : index
    %c0_35 = arith.constant 0 : index
    %c0_36 = arith.constant 0 : index
    %c0_37 = arith.constant 0 : index
    %48 = vector.load %arg5[%c3, %c0_35, %c0_36, %c0_37] : memref<4x2x64x128xbf16, #tpu.memory_space<vmem>>, vector<1x1x64x128xbf16>
    %49 = vector.shape_cast %48 : vector<1x1x64x128xbf16> to vector<64x128xbf16>
    %50 = arith.truncf %47 : vector<2x64xf32> to vector<2x64xbf16>
    %cst_38 = arith.constant dense<0.000000e+00> : vector<2x128xf32>
    %51 = tpu.matmul %50, %49, %cst_38 {dimension_numbers = #tpu.dot_dimension_numbers<[1], [0], [0], [1], [0, 0, 1, 1], [], []>} : vector<2x64xbf16>, vector<64x128xbf16>, vector<2x128xf32> -> vector<2x128xf32>
    %52 = arith.addf %46, %51 : vector<2x128xf32>
    %53 = vector.extract_strided_slice %9 {offsets = [1, 0], sizes = [2, 64], strides = [1, 1]} : vector<3x64xf32> to vector<2x64xf32>
    %c3_39 = arith.constant 3 : index
    %c1_40 = arith.constant 1 : index
    %c0_41 = arith.constant 0 : index
    %c0_42 = arith.constant 0 : index
    %54 = vector.load %arg5[%c3_39, %c1_40, %c0_41, %c0_42] : memref<4x2x64x128xbf16, #tpu.memory_space<vmem>>, vector<1x1x64x128xbf16>
    %55 = vector.shape_cast %54 : vector<1x1x64x128xbf16> to vector<64x128xbf16>
    %56 = arith.truncf %53 : vector<2x64xf32> to vector<2x64xbf16>
    %cst_43 = arith.constant dense<0.000000e+00> : vector<2x128xf32>
    %57 = tpu.matmul %56, %55, %cst_43 {dimension_numbers = #tpu.dot_dimension_numbers<[1], [0], [0], [1], [0, 0, 1, 1], [], []>} : vector<2x64xbf16>, vector<64x128xbf16>, vector<2x128xf32> -> vector<2x128xf32>
    %58 = arith.addf %52, %57 : vector<2x128xf32>
    %c0_44 = arith.constant 0 : index
    %c0_45 = arith.constant 0 : index
    %59 = vector.load %arg6[%c0_44, %c0_45] : memref<1x128xf32, #tpu.memory_space<vmem>>, vector<1x128xf32>
    %60 = vector.broadcast %59 : vector<1x128xf32> to vector<2x128xf32>
    %61 = arith.addf %58, %60 : vector<2x128xf32>
    %c0_46 = arith.constant 0 : index
    %c0_47 = arith.constant 0 : index
    %c0_48 = arith.constant 0 : index
    %c0_49 = arith.constant 0 : index
    %62 = vector.load %arg7[%c0_46, %c0_47, %c0_48, %c0_49] : memref<1x1x2x128xf32, #tpu.memory_space<vmem>>, vector<1x1x2x128xf32>
    %63 = vector.shape_cast %62 : vector<1x1x2x128xf32> to vector<2x128xf32>
    %64 = vector.shape_cast %61 : vector<2x128xf32> to vector<1x1x2x128xf32>
    tpu.vector_store %arg7[%c0_46, %c0_47, %c0_48, %c0_49], %64 {strides = array<i32>} : memref<1x1x2x128xf32, #tpu.memory_space<vmem>>, vector<1x1x2x128xf32>,
    return
  }
  func.func @transform_0(%arg0: i32, %arg1: i32, %arg2: i32) -> (i32, i32, i32, i32) {
    %c0_i32 = arith.constant 0 : i32
    %0 = arith.addi %arg1, %c0_i32 : i32
    %c0_i32_0 = arith.constant 0 : i32
    %c0_i32_1 = arith.constant 0 : i32
    %c0_i32_2 = arith.constant 0 : i32
    return %arg0, %0, %c0_i32_0, %c0_i32_1 : i32, i32, i32, i32
  }
  func.func @transform_1(%arg0: i32, %arg1: i32, %arg2: i32) -> (i32, i32, i32, i32) {
    %c1_i32 = arith.constant 1 : i32
    %0 = arith.addi %arg1, %c1_i32 : i32
    %c0_i32 = arith.constant 0 : i32
    %c0_i32_0 = arith.constant 0 : i32
    %c0_i32_1 = arith.constant 0 : i32
    return %arg0, %0, %c0_i32, %c0_i32_0 : i32, i32, i32, i32
  }
  func.func @transform_2(%arg0: i32, %arg1: i32, %arg2: i32) -> (i32, i32, i32, i32) {
    %c0_i32 = arith.constant 0 : i32
    %c0_i32_0 = arith.constant 0 : i32
    %c0_i32_1 = arith.constant 0 : i32
    %c0_i32_2 = arith.constant 0 : i32
    return %c0_i32, %c0_i32_0, %c0_i32_1, %arg2 : i32, i32, i32, i32
  }
  func.func @transform_3(%arg0: i32, %arg1: i32, %arg2: i32) -> (i32, i32) {
    %c0_i32 = arith.constant 0 : i32
    %c0_i32_0 = arith.constant 0 : i32
    return %c0_i32, %arg2 : i32, i32
  }
  func.func @transform_4(%arg0: i32, %arg1: i32, %arg2: i32) -> (i32, i32, i32, i32) {
    %c0_i32 = arith.constant 0 : i32
    %c0_i32_0 = arith.constant 0 : i32
    return %arg0, %arg1, %c0_i32, %arg2 : i32, i32, i32, i32
  }
}

module attributes {stable_mosaic.version = 11 : i64} {
  func.func @_conv_row_kernel(%arg0: i32, %arg1: i32, %arg2: i32, %arg3: memref<1x2x2x128xf32, #tpu.memory_space<vmem>>, %arg4: memref<1x2x2x128xf32, #tpu.memory_space<vmem>>, %arg5: memref<4x2x128x128xbf16, #tpu.memory_space<vmem>>, %arg6: memref<1x128xf32, #tpu.memory_space<vmem>>, %arg7: memref<1x1x1x128xf32, #tpu.memory_space<vmem>>) attributes {dimension_semantics = [#tpu.dimension_semantics<parallel>, #tpu.dimension_semantics<parallel>, #tpu.dimension_semantics<parallel>], iteration_bounds = array<i64: 2, 1, 1>, scalar_prefetch = 0 : i64, scratch_operands = 0 : i64, tpu.core_type = #tpu.core_type<tc>, window_params = [{transform_indices = @transform_0, window_bounds = array<i64: 1, 2, 2, 128>}, {transform_indices = @transform_1, window_bounds = array<i64: 1, 2, 2, 128>}, {transform_indices = @transform_2, window_bounds = array<i64: 4, 2, 128, 128>}, {transform_indices = @transform_3, window_bounds = array<i64: 1, 128>}, {transform_indices = @transform_4, window_bounds = array<i64: 1, 1, 1, 128>}]} {
    %c0 = arith.constant 0 : index
    %c0_0 = arith.constant 0 : index
    %c0_1 = arith.constant 0 : index
    %c0_2 = arith.constant 0 : index
    %0 = vector.load %arg3[%c0, %c0_0, %c0_1, %c0_2] : memref<1x2x2x128xf32, #tpu.memory_space<vmem>>, vector<1x2x2x128xf32>
    %1 = vector.extract_strided_slice %0 {offsets = [0, 0, 0, 0], sizes = [1, 1, 2, 128], strides = [1, 1, 1, 1]} : vector<1x2x2x128xf32> to vector<1x1x2x128xf32>
    %2 = vector.shape_cast %1 : vector<1x1x2x128xf32> to vector<2x128xf32>
    %3 = vector.extract_strided_slice %0 {offsets = [0, 1, 0, 0], sizes = [1, 1, 2, 128], strides = [1, 1, 1, 1]} : vector<1x2x2x128xf32> to vector<1x1x2x128xf32>
    %4 = vector.shape_cast %3 : vector<1x1x2x128xf32> to vector<2x128xf32>
    %c0_3 = arith.constant 0 : index
    %c0_4 = arith.constant 0 : index
    %c0_5 = arith.constant 0 : index
    %c0_6 = arith.constant 0 : index
    %5 = vector.load %arg4[%c0_3, %c0_4, %c0_5, %c0_6] : memref<1x2x2x128xf32, #tpu.memory_space<vmem>>, vector<1x2x2x128xf32>
    %6 = vector.extract_strided_slice %5 {offsets = [0, 0, 0, 0], sizes = [1, 1, 2, 128], strides = [1, 1, 1, 1]} : vector<1x2x2x128xf32> to vector<1x1x2x128xf32>
    %7 = vector.shape_cast %6 : vector<1x1x2x128xf32> to vector<2x128xf32>
    %8 = vector.extract_strided_slice %5 {offsets = [0, 1, 0, 0], sizes = [1, 1, 2, 128], strides = [1, 1, 1, 1]} : vector<1x2x2x128xf32> to vector<1x1x2x128xf32>
    %9 = vector.shape_cast %8 : vector<1x1x2x128xf32> to vector<2x128xf32>
    %cst = arith.constant 0.000000e+00 : f32
    %10 = vector.broadcast %cst : f32 to vector<1x128xf32>
    %11 = vector.extract_strided_slice %2 {offsets = [0, 0], sizes = [1, 128], strides = [1, 1]} : vector<2x128xf32> to vector<1x128xf32>
    %c0_7 = arith.constant 0 : index
    %c0_8 = arith.constant 0 : index
    %c0_9 = arith.constant 0 : index
    %c0_10 = arith.constant 0 : index
    %12 = vector.load %arg5[%c0_7, %c0_8, %c0_9, %c0_10] : memref<4x2x128x128xbf16, #tpu.memory_space<vmem>>, vector<1x1x128x128xbf16>
    %13 = vector.shape_cast %12 : vector<1x1x128x128xbf16> to vector<128x128xbf16>
    %14 = arith.truncf %11 : vector<1x128xf32> to vector<1x128xbf16>
    %cst_11 = arith.constant dense<0.000000e+00> : vector<1x128xf32>
    %15 = tpu.matmul %14, %13, %cst_11 {dimension_numbers = #tpu.dot_dimension_numbers<[1], [0], [0], [1], [0, 0, 1, 1], [], []>} : vector<1x128xbf16>, vector<128x128xbf16>, vector<1x128xf32> -> vector<1x128xf32>
    %16 = arith.addf %10, %15 : vector<1x128xf32>
    %17 = vector.extract_strided_slice %2 {offsets = [1, 0], sizes = [1, 128], strides = [1, 1]} : vector<2x128xf32> to vector<1x128xf32>
    %c0_12 = arith.constant 0 : index
    %c1 = arith.constant 1 : index
    %c0_13 = arith.constant 0 : index
    %c0_14 = arith.constant 0 : index
    %18 = vector.load %arg5[%c0_12, %c1, %c0_13, %c0_14] : memref<4x2x128x128xbf16, #tpu.memory_space<vmem>>, vector<1x1x128x128xbf16>
    %19 = vector.shape_cast %18 : vector<1x1x128x128xbf16> to vector<128x128xbf16>
    %20 = arith.truncf %17 : vector<1x128xf32> to vector<1x128xbf16>
    %cst_15 = arith.constant dense<0.000000e+00> : vector<1x128xf32>
    %21 = tpu.matmul %20, %19, %cst_15 {dimension_numbers = #tpu.dot_dimension_numbers<[1], [0], [0], [1], [0, 0, 1, 1], [], []>} : vector<1x128xbf16>, vector<128x128xbf16>, vector<1x128xf32> -> vector<1x128xf32>
    %22 = arith.addf %16, %21 : vector<1x128xf32>
    %23 = vector.extract_strided_slice %4 {offsets = [0, 0], sizes = [1, 128], strides = [1, 1]} : vector<2x128xf32> to vector<1x128xf32>
    %c1_16 = arith.constant 1 : index
    %c0_17 = arith.constant 0 : index
    %c0_18 = arith.constant 0 : index
    %c0_19 = arith.constant 0 : index
    %24 = vector.load %arg5[%c1_16, %c0_17, %c0_18, %c0_19] : memref<4x2x128x128xbf16, #tpu.memory_space<vmem>>, vector<1x1x128x128xbf16>
    %25 = vector.shape_cast %24 : vector<1x1x128x128xbf16> to vector<128x128xbf16>
    %26 = arith.truncf %23 : vector<1x128xf32> to vector<1x128xbf16>
    %cst_20 = arith.constant dense<0.000000e+00> : vector<1x128xf32>
    %27 = tpu.matmul %26, %25, %cst_20 {dimension_numbers = #tpu.dot_dimension_numbers<[1], [0], [0], [1], [0, 0, 1, 1], [], []>} : vector<1x128xbf16>, vector<128x128xbf16>, vector<1x128xf32> -> vector<1x128xf32>
    %28 = arith.addf %22, %27 : vector<1x128xf32>
    %29 = vector.extract_strided_slice %4 {offsets = [1, 0], sizes = [1, 128], strides = [1, 1]} : vector<2x128xf32> to vector<1x128xf32>
    %c1_21 = arith.constant 1 : index
    %c1_22 = arith.constant 1 : index
    %c0_23 = arith.constant 0 : index
    %c0_24 = arith.constant 0 : index
    %30 = vector.load %arg5[%c1_21, %c1_22, %c0_23, %c0_24] : memref<4x2x128x128xbf16, #tpu.memory_space<vmem>>, vector<1x1x128x128xbf16>
    %31 = vector.shape_cast %30 : vector<1x1x128x128xbf16> to vector<128x128xbf16>
    %32 = arith.truncf %29 : vector<1x128xf32> to vector<1x128xbf16>
    %cst_25 = arith.constant dense<0.000000e+00> : vector<1x128xf32>
    %33 = tpu.matmul %32, %31, %cst_25 {dimension_numbers = #tpu.dot_dimension_numbers<[1], [0], [0], [1], [0, 0, 1, 1], [], []>} : vector<1x128xbf16>, vector<128x128xbf16>, vector<1x128xf32> -> vector<1x128xf32>
    %34 = arith.addf %28, %33 : vector<1x128xf32>
    %35 = vector.extract_strided_slice %7 {offsets = [0, 0], sizes = [1, 128], strides = [1, 1]} : vector<2x128xf32> to vector<1x128xf32>
    %c2 = arith.constant 2 : index
    %c0_26 = arith.constant 0 : index
    %c0_27 = arith.constant 0 : index
    %c0_28 = arith.constant 0 : index
    %36 = vector.load %arg5[%c2, %c0_26, %c0_27, %c0_28] : memref<4x2x128x128xbf16, #tpu.memory_space<vmem>>, vector<1x1x128x128xbf16>
    %37 = vector.shape_cast %36 : vector<1x1x128x128xbf16> to vector<128x128xbf16>
    %38 = arith.truncf %35 : vector<1x128xf32> to vector<1x128xbf16>
    %cst_29 = arith.constant dense<0.000000e+00> : vector<1x128xf32>
    %39 = tpu.matmul %38, %37, %cst_29 {dimension_numbers = #tpu.dot_dimension_numbers<[1], [0], [0], [1], [0, 0, 1, 1], [], []>} : vector<1x128xbf16>, vector<128x128xbf16>, vector<1x128xf32> -> vector<1x128xf32>
    %40 = arith.addf %34, %39 : vector<1x128xf32>
    %41 = vector.extract_strided_slice %7 {offsets = [1, 0], sizes = [1, 128], strides = [1, 1]} : vector<2x128xf32> to vector<1x128xf32>
    %c2_30 = arith.constant 2 : index
    %c1_31 = arith.constant 1 : index
    %c0_32 = arith.constant 0 : index
    %c0_33 = arith.constant 0 : index
    %42 = vector.load %arg5[%c2_30, %c1_31, %c0_32, %c0_33] : memref<4x2x128x128xbf16, #tpu.memory_space<vmem>>, vector<1x1x128x128xbf16>
    %43 = vector.shape_cast %42 : vector<1x1x128x128xbf16> to vector<128x128xbf16>
    %44 = arith.truncf %41 : vector<1x128xf32> to vector<1x128xbf16>
    %cst_34 = arith.constant dense<0.000000e+00> : vector<1x128xf32>
    %45 = tpu.matmul %44, %43, %cst_34 {dimension_numbers = #tpu.dot_dimension_numbers<[1], [0], [0], [1], [0, 0, 1, 1], [], []>} : vector<1x128xbf16>, vector<128x128xbf16>, vector<1x128xf32> -> vector<1x128xf32>
    %46 = arith.addf %40, %45 : vector<1x128xf32>
    %47 = vector.extract_strided_slice %9 {offsets = [0, 0], sizes = [1, 128], strides = [1, 1]} : vector<2x128xf32> to vector<1x128xf32>
    %c3 = arith.constant 3 : index
    %c0_35 = arith.constant 0 : index
    %c0_36 = arith.constant 0 : index
    %c0_37 = arith.constant 0 : index
    %48 = vector.load %arg5[%c3, %c0_35, %c0_36, %c0_37] : memref<4x2x128x128xbf16, #tpu.memory_space<vmem>>, vector<1x1x128x128xbf16>
    %49 = vector.shape_cast %48 : vector<1x1x128x128xbf16> to vector<128x128xbf16>
    %50 = arith.truncf %47 : vector<1x128xf32> to vector<1x128xbf16>
    %cst_38 = arith.constant dense<0.000000e+00> : vector<1x128xf32>
    %51 = tpu.matmul %50, %49, %cst_38 {dimension_numbers = #tpu.dot_dimension_numbers<[1], [0], [0], [1], [0, 0, 1, 1], [], []>} : vector<1x128xbf16>, vector<128x128xbf16>, vector<1x128xf32> -> vector<1x128xf32>
    %52 = arith.addf %46, %51 : vector<1x128xf32>
    %53 = vector.extract_strided_slice %9 {offsets = [1, 0], sizes = [1, 128], strides = [1, 1]} : vector<2x128xf32> to vector<1x128xf32>
    %c3_39 = arith.constant 3 : index
    %c1_40 = arith.constant 1 : index
    %c0_41 = arith.constant 0 : index
    %c0_42 = arith.constant 0 : index
    %54 = vector.load %arg5[%c3_39, %c1_40, %c0_41, %c0_42] : memref<4x2x128x128xbf16, #tpu.memory_space<vmem>>, vector<1x1x128x128xbf16>
    %55 = vector.shape_cast %54 : vector<1x1x128x128xbf16> to vector<128x128xbf16>
    %56 = arith.truncf %53 : vector<1x128xf32> to vector<1x128xbf16>
    %cst_43 = arith.constant dense<0.000000e+00> : vector<1x128xf32>
    %57 = tpu.matmul %56, %55, %cst_43 {dimension_numbers = #tpu.dot_dimension_numbers<[1], [0], [0], [1], [0, 0, 1, 1], [], []>} : vector<1x128xbf16>, vector<128x128xbf16>, vector<1x128xf32> -> vector<1x128xf32>
    %58 = arith.addf %52, %57 : vector<1x128xf32>
    %c0_44 = arith.constant 0 : index
    %c0_45 = arith.constant 0 : index
    %59 = vector.load %arg6[%c0_44, %c0_45] : memref<1x128xf32, #tpu.memory_space<vmem>>, vector<1x128xf32>
    %60 = arith.addf %58, %59 : vector<1x128xf32>
    %c0_46 = arith.constant 0 : index
    %c0_47 = arith.constant 0 : index
    %c0_48 = arith.constant 0 : index
    %c0_49 = arith.constant 0 : index
    %61 = vector.load %arg7[%c0_46, %c0_47, %c0_48, %c0_49] : memref<1x1x1x128xf32, #tpu.memory_space<vmem>>, vector<1x1x1x128xf32>
    %62 = vector.shape_cast %61 : vector<1x1x1x128xf32> to vector<1x128xf32>
    %63 = vector.shape_cast %60 : vector<1x128xf32> to vector<1x1x1x128xf32>
    tpu.vector_store %arg7[%c0_46, %c0_47, %c0_48, %c0_49], %63 {strides = array<i32>} : memref<1x1x1x128xf32, #tpu.memory_space<vmem>>, vector<1x1x1x128xf32>,
    return
  }
  func.func @transform_0(%arg0: i32, %arg1: i32, %arg2: i32) -> (i32, i32, i32, i32) {
    %c0_i32 = arith.constant 0 : i32
    %0 = arith.addi %arg1, %c0_i32 : i32
    %c0_i32_0 = arith.constant 0 : i32
    %c0_i32_1 = arith.constant 0 : i32
    %c0_i32_2 = arith.constant 0 : i32
    return %arg0, %0, %c0_i32_0, %c0_i32_1 : i32, i32, i32, i32
  }
  func.func @transform_1(%arg0: i32, %arg1: i32, %arg2: i32) -> (i32, i32, i32, i32) {
    %c1_i32 = arith.constant 1 : i32
    %0 = arith.addi %arg1, %c1_i32 : i32
    %c0_i32 = arith.constant 0 : i32
    %c0_i32_0 = arith.constant 0 : i32
    %c0_i32_1 = arith.constant 0 : i32
    return %arg0, %0, %c0_i32, %c0_i32_0 : i32, i32, i32, i32
  }
  func.func @transform_2(%arg0: i32, %arg1: i32, %arg2: i32) -> (i32, i32, i32, i32) {
    %c0_i32 = arith.constant 0 : i32
    %c0_i32_0 = arith.constant 0 : i32
    %c0_i32_1 = arith.constant 0 : i32
    %c0_i32_2 = arith.constant 0 : i32
    return %c0_i32, %c0_i32_0, %c0_i32_1, %arg2 : i32, i32, i32, i32
  }
  func.func @transform_3(%arg0: i32, %arg1: i32, %arg2: i32) -> (i32, i32) {
    %c0_i32 = arith.constant 0 : i32
    %c0_i32_0 = arith.constant 0 : i32
    return %c0_i32, %arg2 : i32, i32
  }
  func.func @transform_4(%arg0: i32, %arg1: i32, %arg2: i32) -> (i32, i32, i32, i32) {
    %c0_i32 = arith.constant 0 : i32
    %c0_i32_0 = arith.constant 0 : i32
    return %arg0, %arg1, %c0_i32, %arg2 : i32, i32, i32, i32
  }
}

</mosaic_0001>

<llo_original>
// kernel: image_encoder_forward.5
$region0: #{image_encoder_forward.5}
  #allocation0 [shape = 'u32[]', space=smem, size = 0x4, offset = 0x4, fixed_abs, tag = 'smem constant byte address 0x4 - core index']
  #allocation1 [shape = 'u32[144,128]{1,0:T(1,128)}', space=vmem, size = 0x12000, scoped, tag = 'internal scratch']
  %s0 = inlined_call_operand.vmem [shape: f32[2,18,18,1], index: 0, kind: input, shape index: {}, may-alias: {0,1,2}]
  %s1 = inlined_call_operand.vmem [shape: f32[2,18,18,1], index: 1, kind: input, shape index: {}, may-alias: {0,1,2}]
  %s2 = inlined_call_operand.vmem [shape: f32[2,18,18,1], index: 2, kind: input, shape index: {}, may-alias: {0,1,2}]
  %s3 = inlined_call_operand.vmem [shape: bf16[3,3,1,128], index: 3, kind: input, shape index: {}]
  %s4 = inlined_call_operand.vmem [shape: f32[1,128], index: 4, kind: input, shape index: {}]
  %s5 = inlined_call_operand.vmem [shape: f32[2,16,16,128], index: 5, kind: output, shape index: {}]
  %s6 = sld [smem:[#allocation0]]
  $region53: #{image_encoder_forward.5} parent=0
    _
  %s8 = ssub.s32 1, %s6
  %s9 = scalar_select 0, %s8, %s6
  loop: start=0, step=1, limit=34
  $region2: #{image_encoder_forward.5} parent=0 // loop_pre_header
    _
  $region3: #{image_encoder_forward.5} parent=0 // loop_header
    %s11 = sphi 0, %s15
    %p12 = scmp.ge.s32.totalorder %s11, 34
    %s18 = sphi 0, %s37
    %s19 = sphi 0, %s33
    %s20 = sphi 0, %s29
    %s21 = sphi 0, %s18
    %s22 = sphi 0, %s19
    %s23 = sphi 0, %s20
    %s24 = sphi 0, %s21
    %s25 = sphi 0, %s22
    %s26 = sphi 0, %s23
    %s42 = sphi 0, %s44
    %s45 = sphi 0, %s42
    %s46 = sphi 0, %s45
    %s62 = sphi 0, %s46
    %s72 = sphi 0, %s74
    %s75 = sphi 0, %s72
    %s76 = sphi 0, %s75
    %s92 = sphi 0, %s76
    %s102 = sphi 0, %s104
    %s105 = sphi 0, %s102
    %s106 = sphi 0, %s105
    %s122 = sphi 0, %s106
    %s128 = sphi 0, %s130
    %s131 = sphi 0, %s128
    %s132 = sphi 0, %s131
    %s148 = sphi 0, %s132
    %s154 = sphi 0, %s156
    %s157 = sphi 0, %s154
    %s158 = sphi 0, %s157
    %s174 = sphi 0, %s158
    %s184 = sphi 0, %s186
    %s187 = sphi 0, %s184
    %s188 = sphi 0, %s187
    %s204 = sphi 0, %s188
  $region4: #{image_encoder_forward.5} parent=0 // loop_header_branch
    %14 = sbr.rel (%p12) target = $region8
  $region5: #{image_encoder_forward.5} parent=0 // loop_body
    %s16 = ssub.s32 %s11, 1
    %s17 = ssub.s32 %s11, 2
    %s27 = sadd.s32 1, %s20
    %p28 = scmp.ge.s32.totalorder %s27, 1
    %s29 = scalar_select %p28, 0, %s27
    %s30 = sadd.s32 1, %s19
    %s31 = scalar_select %p28, %s30, %s19
    %p32 = scmp.ge.s32.totalorder %s31, 16
    %s33 = scalar_select %p32, 0, %s31
    %s34 = sadd.s32 1, %s18
    %s35 = scalar_select %p32, %s34, %s18
    %p36 = scmp.ge.s32.totalorder %s35, 2
    %s37 = scalar_select %p36, 0, %s35
    %s38 = ssub.s32 %s18, %s37
    %s39 = ssub.s32 %s19, %s33
    %s40 = sor.u32 %s38, %s39
    %p41 = scmp.eq.s32.totalorder %s40, 0
    %s43 = sadd.s32 %s42, 1
    %s44 = scalar_select %p41, %s42, %s43
    %p47 = pneg %p41
    %p48 = scmp.eq.s32.totalorder %s11, 31
    %p49 = por %p47, %p48
    %p50 = scmp.ne.s32.totalorder %s42, %s45
    %p51 = scmp.eq.s32.totalorder %s11, 0
    %p52 = por %p50, %p51
    %p53 = scmp.ne.s32.totalorder %s42, %s45
    %p54 = scmp.eq.s32.totalorder %s16, 31
    %p55 = por %p53, %p54
    %p56 = scmp.ne.s32.totalorder %s45, %s46
    %p57 = scmp.eq.s32.totalorder %s16, 0
    %p58 = por %p56, %p57
    %p59 = scmp.ne.s32.totalorder %s45, %s46
    %p60 = scmp.eq.s32.totalorder %s17, 31
    %p61 = por %p59, %p60
    %p63 = scmp.ne.s32.totalorder %s46, %s62
    %p64 = scmp.eq.s32.totalorder %s17, 0
    %p65 = por %p63, %p64
    %s66 = sadd.s32 %s19, 1
    %s67 = sadd.s32 %s33, 1
    %s68 = ssub.s32 %s18, %s37
    %s69 = ssub.s32 %s66, %s67
    %s70 = sor.u32 %s68, %s69
    %p71 = scmp.eq.s32.totalorder %s70, 0
    %s73 = sadd.s32 %s72, 1
    %s74 = scalar_select %p71, %s72, %s73
    %p77 = pneg %p71
    %p78 = scmp.eq.s32.totalorder %s11, 31
    %p79 = por %p77, %p78
    %p80 = scmp.ne.s32.totalorder %s72, %s75
    %p81 = scmp.eq.s32.totalorder %s11, 0
    %p82 = por %p80, %p81
    %p83 = scmp.ne.s32.totalorder %s72, %s75
    %p84 = scmp.eq.s32.totalorder %s16, 31
    %p85 = por %p83, %p84
    %p86 = scmp.ne.s32.totalorder %s75, %s76
    %p87 = scmp.eq.s32.totalorder %s16, 0
    %p88 = por %p86, %p87
    %p89 = scmp.ne.s32.totalorder %s75, %s76
    %p90 = scmp.eq.s32.totalorder %s17, 31
    %p91 = por %p89, %p90
    %p93 = scmp.ne.s32.totalorder %s76, %s92
    %p94 = scmp.eq.s32.totalorder %s17, 0
    %p95 = por %p93, %p94
    %s96 = sadd.s32 %s19, 2
    %s97 = sadd.s32 %s33, 2
    %s98 = ssub.s32 %s18, %s37
    %s99 = ssub.s32 %s96, %s97
    %s100 = sor.u32 %s98, %s99
    %p101 = scmp.eq.s32.totalorder %s100, 0
    %s103 = sadd.s32 %s102, 1
    %s104 = scalar_select %p101, %s102, %s103
    %p107 = pneg %p101
    %p108 = scmp.eq.s32.totalorder %s11, 31
    %p109 = por %p107, %p108
    %p110 = scmp.ne.s32.totalorder %s102, %s105
    %p111 = scmp.eq.s32.totalorder %s11, 0
    %p112 = por %p110, %p111
    %p113 = scmp.ne.s32.totalorder %s102, %s105
    %p114 = scmp.eq.s32.totalorder %s16, 31
    %p115 = por %p113, %p114
    %p116 = scmp.ne.s32.totalorder %s105, %s106
    %p117 = scmp.eq.s32.totalorder %s16, 0
    %p118 = por %p116, %p117
    %p119 = scmp.ne.s32.totalorder %s105, %s106
    %p120 = scmp.eq.s32.totalorder %s17, 31
    %p121 = por %p119, %p120
    %p123 = scmp.ne.s32.totalorder %s106, %s122
    %p124 = scmp.eq.s32.totalorder %s17, 0
    %p125 = por %p123, %p124
    %s126 = ssub.s32 %s20, %s29
    %p127 = scmp.eq.s32.totalorder %s126, 0
    %s129 = sadd.s32 %s128, 1
    %s130 = scalar_select %p127, %s128, %s129
    %p133 = pneg %p127
    %p134 = scmp.eq.s32.totalorder %s11, 31
    %p135 = por %p133, %p134
    %p136 = scmp.ne.s32.totalorder %s128, %s131
    %p137 = scmp.eq.s32.totalorder %s11, 0
    %p138 = por %p136, %p137
    %p139 = scmp.ne.s32.totalorder %s128, %s131
    %p140 = scmp.eq.s32.totalorder %s16, 31
    %p141 = por %p139, %p140
    %p142 = scmp.ne.s32.totalorder %s131, %s132
    %p143 = scmp.eq.s32.totalorder %s16, 0
    %p144 = por %p142, %p143
    %p145 = scmp.ne.s32.totalorder %s131, %s132
    %p146 = scmp.eq.s32.totalorder %s17, 31
    %p147 = por %p145, %p146
    %p149 = scmp.ne.s32.totalorder %s132, %s148
    %p150 = scmp.eq.s32.totalorder %s17, 0
    %p151 = por %p149, %p150
    %s152 = ssub.s32 %s20, %s29
    %p153 = scmp.eq.s32.totalorder %s152, 0
    %s155 = sadd.s32 %s154, 1
    %s156 = scalar_select %p153, %s154, %s155
    %p159 = pneg %p153
    %p160 = scmp.eq.s32.totalorder %s11, 31
    %p161 = por %p159, %p160
    %p162 = scmp.ne.s32.totalorder %s154, %s157
    %p163 = scmp.eq.s32.totalorder %s11, 0
    %p164 = por %p162, %p163
    %p165 = scmp.ne.s32.totalorder %s154, %s157
    %p166 = scmp.eq.s32.totalorder %s16, 31
    %p167 = por %p165, %p166
    %p168 = scmp.ne.s32.totalorder %s157, %s158
    %p169 = scmp.eq.s32.totalorder %s16, 0
    %p170 = por %p168, %p169
    %p171 = scmp.ne.s32.totalorder %s157, %s158
    %p172 = scmp.eq.s32.totalorder %s17, 31
    %p173 = por %p171, %p172
    %p175 = scmp.ne.s32.totalorder %s158, %s174
    %p176 = scmp.eq.s32.totalorder %s17, 0
    %p177 = por %p175, %p176
    %s178 = ssub.s32 %s18, %s37
    %s179 = ssub.s32 %s19, %s33
    %s180 = sor.u32 %s178, %s179
    %s181 = ssub.s32 %s20, %s29
    %s182 = sor.u32 %s180, %s181
    %p183 = scmp.eq.s32.totalorder %s182, 0
    %s185 = sadd.s32 %s184, 1
    %s186 = scalar_select %p183, %s184, %s185
    %p189 = pneg %p183
    %p190 = scmp.eq.s32.totalorder %s11, 31
    %p191 = por %p189, %p190
    %p192 = scmp.ne.s32.totalorder %s184, %s187
    %p193 = scmp.eq.s32.totalorder %s11, 0
    %p194 = por %p192, %p193
    %p195 = scmp.ne.s32.totalorder %s184, %s187
    %p196 = scmp.eq.s32.totalorder %s16, 31
    %p197 = por %p195, %p196
    %p198 = scmp.ne.s32.totalorder %s187, %s188
    %p199 = scmp.eq.s32.totalorder %s16, 0
    %p200 = por %p198, %p199
    %p201 = scmp.ne.s32.totalorder %s187, %s188
    %p202 = scmp.eq.s32.totalorder %s17, 31
    %p203 = por %p201, %p202
    %p205 = scmp.ne.s32.totalorder %s188, %s204
    %p206 = scmp.eq.s32.totalorder %s17, 0
    %p207 = por %p205, %p206
    %p208 = scmp.le.s32.totalorder 1, %s11
    %p209 = scmp.lt.s32.totalorder %s11, 33
    %p210 = pnand %p208, %p209
    %p211 = pneg %p210
    // Predicated region
    $region9: #{image_encoder_forward.5} parent=5 // pred_check
      _
    $region10: #{image_encoder_forward.5} parent=5 // pred_check_branch
      %213 = sbr.rel (%p210) target = $region12
    $region11: #{image_encoder_forward.5} parent=5 // pred_region
      %s214 = ssub.s32 %s11, 1
      // Predicated region
      $region13: #{image_encoder_forward.5} parent=11 // pred_check
        %p215 = pneg %p144
      $region14: #{image_encoder_forward.5} parent=11 // pred_check_branch
        %217 = sbr.rel (%p215) target = $region16
      $region15: #{image_encoder_forward.5} parent=11 // pred_region
        %p218 = scmp.lt.s32.totalorder %s23, 0
        %s219 = scalar_select %p218, %s23, 0
        %s220 = scalar_lea.vmem %s3, %s219
      $region16: #{image_encoder_forward.5} parent=11 // pred_fallthru
        _
      // Predicated region
      $region17: #{image_encoder_forward.5} parent=11 // pred_check
        %p221 = pneg %p170
      $region18: #{image_encoder_forward.5} parent=11 // pred_check_branch
        %223 = sbr.rel (%p221) target = $region20
      $region19: #{image_encoder_forward.5} parent=11 // pred_region
        %p224 = scmp.lt.s32.totalorder %s23, 0
        %s225 = scalar_select %p224, %s23, 0
        %s226 = scalar_lea.vmem %s4, %s225
      $region20: #{image_encoder_forward.5} parent=11 // pred_fallthru
        _
    $region12: #{image_encoder_forward.5} parent=5 // pred_fallthru
      _
    %p227 = scmp.lt.s32.totalorder %s11, 32
    // Predicated region
    $region21: #{image_encoder_forward.5} parent=5 // pred_check
      %p228 = pneg %p227
    $region22: #{image_encoder_forward.5} parent=5 // pred_check_branch
      %230 = sbr.rel (%p228) target = $region24
    $region23: #{image_encoder_forward.5} parent=5 // pred_region
      // Predicated region
      $region25: #{image_encoder_forward.5} parent=23 // pred_check
        %p231 = pneg %p52
      $region26: #{image_encoder_forward.5} parent=23 // pred_check_branch
        %233 = sbr.rel (%p231) target = $region28
      $region27: #{image_encoder_forward.5} parent=23 // pred_region
        %p234 = scmp.lt.s32.totalorder %s18, 1
        %s235 = scalar_select %p234, %s18, 1
        %p236 = scmp.lt.s32.totalorder %s19, 17
        %s237 = scalar_select %p236, %s19, 17
        %s238 = smul.addr %s237, 3
        %s239 = smul.addr %s235, 54
        %s240 = sadd.s32 %s238, %s239
        %s241 = smul.addr %s240, 8
        %s242 = scalar_lea.vmem %s0, %s241
      $region28: #{image_encoder_forward.5} parent=23 // pred_fallthru
        _
      // Predicated region
      $region29: #{image_encoder_forward.5} parent=23 // pred_check
        %p243 = pneg %p82
      $region30: #{image_encoder_forward.5} parent=23 // pred_check_branch
        %245 = sbr.rel (%p243) target = $region32
      $region31: #{image_encoder_forward.5} parent=23 // pred_region
        %s246 = sadd.s32 %s19, 1
        %p247 = scmp.lt.s32.totalorder %s18, 1
        %s248 = scalar_select %p247, %s18, 1
        %p249 = scmp.lt.s32.totalorder %s246, 17
        %s250 = scalar_select %p249, %s246, 17
        %s251 = smul.addr %s250, 3
        %s252 = smul.addr %s248, 54
        %s253 = sadd.s32 %s251, %s252
        %s254 = smul.addr %s253, 8
        %s255 = scalar_lea.vmem %s1, %s254
        %s256 = sadd.s32 %s19, 1
      $region32: #{image_encoder_forward.5} parent=23 // pred_fallthru
        _
      // Predicated region
      $region33: #{image_encoder_forward.5} parent=23 // pred_check
        %p257 = pneg %p112
      $region34: #{image_encoder_forward.5} parent=23 // pred_check_branch
        %259 = sbr.rel (%p257) target = $region36
      $region35: #{image_encoder_forward.5} parent=23 // pred_region
        %s260 = sadd.s32 %s19, 2
        %p261 = scmp.lt.s32.totalorder %s18, 1
        %s262 = scalar_select %p261, %s18, 1
        %p263 = scmp.lt.s32.totalorder %s260, 17
        %s264 = scalar_select %p263, %s260, 17
        %s265 = smul.addr %s264, 3
        %s266 = smul.addr %s262, 54
        %s267 = sadd.s32 %s265, %s266
        %s268 = smul.addr %s267, 8
        %s269 = scalar_lea.vmem %s2, %s268
        %s270 = sadd.s32 %s19, 2
      $region36: #{image_encoder_forward.5} parent=23 // pred_fallthru
        _
    $region24: #{image_encoder_forward.5} parent=5 // pred_fallthru
      _
    %p271 = scmp.le.s32.totalorder 1, %s11
    %p272 = scmp.lt.s32.totalorder %s11, 33
    %p273 = pnand %p271, %p272
    %p274 = pneg %p273
    // Predicated region
    $region37: #{image_encoder_forward.5} parent=5 // pred_check
      _
    $region38: #{image_encoder_forward.5} parent=5 // pred_check_branch
      %276 = sbr.rel (%p273) target = $region40
    $region39: #{image_encoder_forward.5} parent=5 // pred_region
      %s277 = ssub.s32 %s11, 1
      %p278 = scmp.lt.s32.totalorder %s21, 1
      %s279 = scalar_select %p278, %s21, 1
      %p280 = scmp.lt.s32.totalorder %s22, 17
      %s281 = scalar_select %p280, %s22, 17
      %s282 = smul.addr %s281, 3
      %s283 = smul.addr %s279, 54
      %s284 = sadd.s32 %s282, %s283
      %s285 = smul.addr %s284, 8
      %s286 = scalar_lea.vmem %s0, %s285
      %p287 = pneg %p58
      %p288 = pneg %p55
      %s289 = sadd.s32 %s22, 1
      %p290 = scmp.lt.s32.totalorder %s21, 1
      %s291 = scalar_select %p290, %s21, 1
      %p292 = scmp.lt.s32.totalorder %s289, 17
      %s293 = scalar_select %p292, %s289, 17
      %s294 = smul.addr %s293, 3
      %s295 = smul.addr %s291, 54
      %s296 = sadd.s32 %s294, %s295
      %s297 = smul.addr %s296, 8
      %s298 = scalar_lea.vmem %s1, %s297
      %p299 = pneg %p88
      %p300 = pneg %p85
      %s301 = sadd.s32 %s22, 2
      %p302 = scmp.lt.s32.totalorder %s21, 1
      %s303 = scalar_select %p302, %s21, 1
      %p304 = scmp.lt.s32.totalorder %s301, 17
      %s305 = scalar_select %p304, %s301, 17
      %s306 = smul.addr %s305, 3
      %s307 = smul.addr %s303, 54
      %s308 = sadd.s32 %s306, %s307
      %s309 = smul.addr %s308, 8
      %s310 = scalar_lea.vmem %s2, %s309
      %p311 = pneg %p118
      %p312 = pneg %p115
      %p313 = scmp.lt.s32.totalorder %s23, 0
      %s314 = scalar_select %p313, %s23, 0
      %s315 = scalar_lea.vmem %s3, %s314
      %p316 = pneg %p144
      %p317 = pneg %p141
      %p318 = scmp.lt.s32.totalorder %s23, 0
      %s319 = scalar_select %p318, %s23, 0
      %s320 = scalar_lea.vmem %s4, %s319
      %p321 = pneg %p170
      %p322 = pneg %p167
      %p323 = pneg %p200
      %p324 = pneg %p197
      %p325 = scmp.lt.s32.totalorder %s21, 1
      %s326 = scalar_select %p325, %s21, 1
      %p327 = scmp.lt.s32.totalorder %s22, 15
      %s328 = scalar_select %p327, %s22, 15
      %p329 = scmp.lt.s32.totalorder %s23, 0
      %s330 = scalar_select %p329, %s23, 0
      %s331 = smul.addr %s328, 2
      %s332 = sadd.s32 %s330, %s331
      %s333 = smul.addr %s326, 32
      %s334 = sadd.s32 %s332, %s333
      %s335 = smul.addr %s334, 8
      %s336 = scalar_lea.vmem %s5, %s335
      %p337 = scmp.lt.s32.totalorder %s21, 1
      %s338 = scalar_select %p337, %s21, 1
      %p339 = scmp.lt.s32.totalorder %s22, 17
      %s340 = scalar_select %p339, %s22, 17
      %s341 = smul.addr %s340, 3
      %s342 = smul.addr %s338, 54
      %s343 = sadd.s32 %s341, %s342
      %s344 = smul.addr %s343, 8
      %s345 = scalar_lea.vmem %s0, %s344
      %s346 = sadd.s32 %s22, 1
      %p347 = scmp.lt.s32.totalorder %s21, 1
      %s348 = scalar_select %p347, %s21, 1
      %p349 = scmp.lt.s32.totalorder %s346, 17
      %s350 = scalar_select %p349, %s346, 17
      %s351 = smul.addr %s350, 3
      %s352 = smul.addr %s348, 54
      %s353 = sadd.s32 %s351, %s352
      %s354 = smul.addr %s353, 8
      %s355 = scalar_lea.vmem %s1, %s354
      %s356 = sadd.s32 %s22, 1
      %s357 = sadd.s32 %s22, 2
      %p358 = scmp.lt.s32.totalorder %s21, 1
      %s359 = scalar_select %p358, %s21, 1
      %p360 = scmp.lt.s32.totalorder %s357, 17
      %s361 = scalar_select %p360, %s357, 17
      %s362 = smul.addr %s361, 3
      %s363 = smul.addr %s359, 54
      %s364 = sadd.s32 %s362, %s363
      %s365 = smul.addr %s364, 8
      %s366 = scalar_lea.vmem %s2, %s365
      %s367 = sadd.s32 %s22, 2
      %p368 = scmp.lt.s32.totalorder %s23, 0
      %s369 = scalar_select %p368, %s23, 0
      %s370 = scalar_lea.vmem %s3, %s369
      %p371 = scmp.lt.s32.totalorder %s23, 0
      %s372 = scalar_select %p371, %s23, 0
      %s373 = scalar_lea.vmem %s4, %s372
      %p374 = scmp.lt.s32.totalorder %s21, 1
      %s375 = scalar_select %p374, %s21, 1
      %p376 = scmp.lt.s32.totalorder %s22, 15
      %s377 = scalar_select %p376, %s22, 15
      %p378 = scmp.lt.s32.totalorder %s23, 0
      %s379 = scalar_select %p378, %s23, 0
      %s380 = smul.addr %s377, 2
      %s381 = sadd.s32 %s379, %s380
      %s382 = smul.addr %s375, 32
      %s383 = sadd.s32 %s381, %s382
      %s384 = smul.addr %s383, 8
      %s385 = scalar_lea.vmem %s5, %s384
      %v386 = vld [vmem:[%s345] sm:$0xff]
      %v387 = vld [vmem:[%s345 + $0x8] sm:$0xff]
      %v388 = vld [vmem:[%s345 + $0x10] sm:$0x3]
      %v389 = vld [vmem:[%s355] sm:$0xff]
      %v390 = vld [vmem:[%s355 + $0x8] sm:$0xff]
      %v391 = vld [vmem:[%s355 + $0x10] sm:$0x3]
      %v392 = vld [vmem:[%s366] sm:$0xff]
      %v393 = vld [vmem:[%s366 + $0x8] sm:$0xff]
      %v394 = vld [vmem:[%s366 + $0x10] sm:$0x3]
      %v395 = vld [vmem:[%s370] sm:$0x1]
      %v396 = vunpack.c.l.bf16 %v395
      %398 = vset.pattern.permute.xlu0 0
      %399 = vperm.xlu0 %398, %v386
      %v400 = vpop.permute.xlu0 %399
      %403 = vset.pattern.permute.xlu0 0
      %404 = vperm.xlu0 %403, %v387
      %v405 = vpop.permute.xlu0 %404
      %v407 = vlaneseq
      %v408 = vshrl.u32 %v407, 7
      %v409 = vsub.s32 0, %v408
      %v410 = vrot.slane %v396, %v409
      %v411 = vmul.f32 %v400, %v410
      %v412 = vmul.f32 %v405, %v410
      %v413 = vadd.f32 %v411, 0.0
      %v414 = vadd.f32 %v412, 0.0
      %s415 = scalar_lea.vmem %s370, 1
      %v416 = vld [vmem:[%s415] sm:$0x1]
      %v417 = vunpack.c.l.bf16 %v416
      %419 = vset.pattern.permute.xlu0 0
      %420 = vperm.xlu0 %419, %v388
      %v421 = vpop.permute.xlu0 %420
      %v423 = vlaneseq
      %v424 = vshrl.u32 %v423, 7
      %v425 = vsub.s32 0, %v424
      %v426 = vrot.slane %v417, %v425
      %v427 = vmul.f32 %v400, %v426
      %v428 = vmul.f32 %v405, %v426
      %v429 = vmul.f32 %v421, %v426
      %vm433 = vcmask 1046528
      %v434 = vrot.slane %v427, 1
      %v435 = vrot.slane %v428, 1
      %v436 = vsel %vm433, %v434, %v435
      %v437 = vrot.slane %v429, 1
      %v438 = vsel %vm433, %v435, %v437
      %v441 = vadd.f32 %v413, %v436
      %v442 = vadd.f32 %v414, %v438
      %s443 = scalar_lea.vmem %s370, 2
      %v444 = vld [vmem:[%s443] sm:$0x1]
      %v445 = vunpack.c.l.bf16 %v444
      %v446 = vlaneseq
      %v447 = vshrl.u32 %v446, 7
      %v448 = vsub.s32 0, %v447
      %v449 = vrot.slane %v445, %v448
      %v450 = vmul.f32 %v400, %v449
      %v451 = vmul.f32 %v405, %v449
      %v452 = vmul.f32 %v421, %v449
      %vm456 = vcmask 1045504
      %v457 = vrot.slane %v450, 2
      %v458 = vrot.slane %v451, 2
      %v459 = vsel %vm456, %v457, %v458
      %v460 = vrot.slane %v452, 2
      %v461 = vsel %vm456, %v458, %v460
      %v464 = vadd.f32 %v441, %v459
      %v465 = vadd.f32 %v442, %v461
      %s466 = scalar_lea.vmem %s370, 3
      %v467 = vld [vmem:[%s466] sm:$0x1]
      %v468 = vunpack.c.l.bf16 %v467
      %470 = vset.pattern.permute.xlu0 0
      %471 = vperm.xlu0 %470, %v389
      %v472 = vpop.permute.xlu0 %471
      %475 = vset.pattern.permute.xlu0 0
      %476 = vperm.xlu0 %475, %v390
      %v477 = vpop.permute.xlu0 %476
      %v479 = vlaneseq
      %v480 = vshrl.u32 %v479, 7
      %v481 = vsub.s32 0, %v480
      %v482 = vrot.slane %v468, %v481
      %v483 = vmul.f32 %v472, %v482
      %v484 = vmul.f32 %v477, %v482
      %v485 = vadd.f32 %v464, %v483
      %v486 = vadd.f32 %v465, %v484
      %s487 = scalar_lea.vmem %s370, 4
      %v488 = vld [vmem:[%s487] sm:$0x1]
      %v489 = vunpack.c.l.bf16 %v488
      %491 = vset.pattern.permute.xlu0 0
      %492 = vperm.xlu0 %491, %v391
      %v493 = vpop.permute.xlu0 %492
      %v495 = vlaneseq
      %v496 = vshrl.u32 %v495, 7
      %v497 = vsub.s32 0, %v496
      %v498 = vrot.slane %v489, %v497
      %v499 = vmul.f32 %v472, %v498
      %v500 = vmul.f32 %v477, %v498
      %v501 = vmul.f32 %v493, %v498
      %v505 = vrot.slane %v499, 1
      %v506 = vrot.slane %v500, 1
      %v507 = vsel %vm433, %v505, %v506
      %v508 = vrot.slane %v501, 1
      %v509 = vsel %vm433, %v506, %v508
      %v512 = vadd.f32 %v485, %v507
      %v513 = vadd.f32 %v486, %v509
      %s514 = scalar_lea.vmem %s370, 5
      %v515 = vld [vmem:[%s514] sm:$0x1]
      %v516 = vunpack.c.l.bf16 %v515
      %v517 = vlaneseq
      %v518 = vshrl.u32 %v517, 7
      %v519 = vsub.s32 0, %v518
      %v520 = vrot.slane %v516, %v519
      %v521 = vmul.f32 %v472, %v520
      %v522 = vmul.f32 %v477, %v520
      %v523 = vmul.f32 %v493, %v520
      %v527 = vrot.slane %v521, 2
      %v528 = vrot.slane %v522, 2
      %v529 = vsel %vm456, %v527, %v528
      %v530 = vrot.slane %v523, 2
      %v531 = vsel %vm456, %v528, %v530
      %v534 = vadd.f32 %v512, %v529
      %v535 = vadd.f32 %v513, %v531
      %s536 = scalar_lea.vmem %s370, 6
      %v537 = vld [vmem:[%s536] sm:$0x1]
      %v538 = vunpack.c.l.bf16 %v537
      %540 = vset.pattern.permute.xlu0 0
      %541 = vperm.xlu0 %540, %v392
      %v542 = vpop.permute.xlu0 %541
      %545 = vset.pattern.permute.xlu0 0
      %546 = vperm.xlu0 %545, %v393
      %v547 = vpop.permute.xlu0 %546
      %v549 = vlaneseq
      %v550 = vshrl.u32 %v549, 7
      %v551 = vsub.s32 0, %v550
      %v552 = vrot.slane %v538, %v551
      %v553 = vmul.f32 %v542, %v552
      %v554 = vmul.f32 %v547, %v552
      %v555 = vadd.f32 %v534, %v553
      %v556 = vadd.f32 %v535, %v554
      %s557 = scalar_lea.vmem %s370, 7
      %v558 = vld [vmem:[%s557] sm:$0x1]
      %v559 = vunpack.c.l.bf16 %v558
      %561 = vset.pattern.permute.xlu0 0
      %562 = vperm.xlu0 %561, %v394
      %v563 = vpop.permute.xlu0 %562
      %v565 = vlaneseq
      %v566 = vshrl.u32 %v565, 7
      %v567 = vsub.s32 0, %v566
      %v568 = vrot.slane %v559, %v567
      %v569 = vmul.f32 %v542, %v568
      %v570 = vmul.f32 %v547, %v568
      %v571 = vmul.f32 %v563, %v568
      %v575 = vrot.slane %v569, 1
      %v576 = vrot.slane %v570, 1
      %v577 = vsel %vm433, %v575, %v576
      %v578 = vrot.slane %v571, 1
      %v579 = vsel %vm433, %v576, %v578
      %v582 = vadd.f32 %v555, %v577
      %v583 = vadd.f32 %v556, %v579
      %s584 = scalar_lea.vmem %s370, 8
      %v585 = vld [vmem:[%s584] sm:$0x1]
      %v586 = vunpack.c.l.bf16 %v585
      %v587 = vlaneseq
      %v588 = vshrl.u32 %v587, 7
      %v589 = vsub.s32 0, %v588
      %v590 = vrot.slane %v586, %v589
      %v591 = vmul.f32 %v542, %v590
      %v592 = vmul.f32 %v547, %v590
      %v593 = vmul.f32 %v563, %v590
      %v597 = vrot.slane %v591, 2
      %v598 = vrot.slane %v592, 2
      %v599 = vsel %vm456, %v597, %v598
      %v600 = vrot.slane %v593, 2
      %v601 = vsel %vm456, %v598, %v600
      %v604 = vadd.f32 %v582, %v599
      %v605 = vadd.f32 %v583, %v601
      %v606 = vld [vmem:[%s373] sm:$0x1]
      %v608 = vlaneseq
      %v609 = vshrl.u32 %v608, 7
      %v610 = vsub.s32 0, %v609
      %v611 = vrot.slane %v606, %v610
      %v613 = vadd.f32 %v604, %v611
      %v614 = vadd.f32 %v605, %v611
      %vm615 = vcmp.ge.f32.partialorder %v613, 0.0
      %vm616 = vcmp.ge.f32.partialorder %v614, 0.0
      %v617 = vmul.f32 %v613, 0.01
      %v618 = vmul.f32 %v614, 0.01
      %v619 = vsel %vm615, %v613, %v617
      %v620 = vsel %vm616, %v614, %v618
      %621 = vst [vmem:[%s385] sm:$0xff] %v619
      %622 = vst [vmem:[%s385 + $0x8] sm:$0xff] %v620
      %p623 = scmp.lt.s32.totalorder %s21, 1
      %s624 = scalar_select %p623, %s21, 1
      %p625 = scmp.lt.s32.totalorder %s22, 15
      %s626 = scalar_select %p625, %s22, 15
      %p627 = scmp.lt.s32.totalorder %s23, 0
      %s628 = scalar_select %p627, %s23, 0
      %s629 = smul.addr %s626, 2
      %s630 = sadd.s32 %s628, %s629
      %s631 = smul.addr %s624, 32
      %s632 = sadd.s32 %s630, %s631
      %s633 = smul.addr %s632, 8
      %s634 = scalar_lea.vmem %s5, %s633
      // Predicated region
      $region41: #{image_encoder_forward.5} parent=39 // pred_check
        %p635 = pneg %p197
      $region42: #{image_encoder_forward.5} parent=39 // pred_check_branch
        %637 = sbr.rel (%p635) target = $region44
      $region43: #{image_encoder_forward.5} parent=39 // pred_region
        _
      $region44: #{image_encoder_forward.5} parent=39 // pred_fallthru
        _
    $region40: #{image_encoder_forward.5} parent=5 // pred_fallthru
      _
    %p638 = scmp.le.s32.totalorder 2, %s11
    // Predicated region
    $region45: #{image_encoder_forward.5} parent=5 // pred_check
      %p639 = pneg %p638
    $region46: #{image_encoder_forward.5} parent=5 // pred_check_branch
      %641 = sbr.rel (%p639) target = $region48
    $region47: #{image_encoder_forward.5} parent=5 // pred_region
      %s642 = ssub.s32 %s11, 2
      // Predicated region
      $region49: #{image_encoder_forward.5} parent=47 // pred_check
        %p643 = pneg %p203
      $region50: #{image_encoder_forward.5} parent=47 // pred_check_branch
        %645 = sbr.rel (%p643) target = $region52
      $region51: #{image_encoder_forward.5} parent=47 // pred_region
        %p646 = scmp.lt.s32.totalorder %s24, 1
        %s647 = scalar_select %p646, %s24, 1
        %p648 = scmp.lt.s32.totalorder %s25, 15
        %s649 = scalar_select %p648, %s25, 15
        %p650 = scmp.lt.s32.totalorder %s26, 0
        %s651 = scalar_select %p650, %s26, 0
        %s652 = smul.addr %s649, 2
        %s653 = sadd.s32 %s651, %s652
        %s654 = smul.addr %s647, 32
        %s655 = sadd.s32 %s653, %s654
        %s656 = smul.addr %s655, 8
        %s657 = scalar_lea.vmem %s5, %s656
      $region52: #{image_encoder_forward.5} parent=47 // pred_fallthru
        _
    $region48: #{image_encoder_forward.5} parent=5 // pred_fallthru
      _
  $region6: #{image_encoder_forward.5} parent=0 // loop_footer
    %s15 = sadd.s32 1, %s11
  $region7: #{image_encoder_forward.5} parent=0 // loop_footer_branch
    %10 = sbr.rel target = $region3
  $region8: #{image_encoder_forward.5} parent=0 // loop_exit
    _

// kernel: image_encoder_forward.6
$region0: #{image_encoder_forward.6}
  #allocation0 [shape = 'u32[]', space=smem, size = 0x4, offset = 0x4, fixed_abs, tag = 'smem constant byte address 0x4 - core index']
  #allocation1 [shape = 'u32[144,128]{1,0:T(1,128)}', space=vmem, size = 0x12000, scoped, tag = 'internal scratch']
  %s0 = inlined_call_operand.vmem [shape: f32[2,18,9,16], index: 0, kind: input, shape index: {}, may-alias: {0,1}]
  %s1 = inlined_call_operand.vmem [shape: f32[2,18,9,16], index: 1, kind: input, shape index: {}, may-alias: {0,1}]
  %s2 = inlined_call_operand.vmem [shape: bf16[4,2,16,128], index: 2, kind: input, shape index: {}]
  %s3 = inlined_call_operand.vmem [shape: f32[1,128], index: 3, kind: input, shape index: {}]
  %s4 = inlined_call_operand.vmem [shape: f32[2,8,8,128], index: 4, kind: output, shape index: {}]
  %s5 = sld [smem:[#allocation0]]
  $region49: #{image_encoder_forward.6} parent=0
    _
  %s7 = ssub.s32 1, %s5
  %s8 = scalar_select 0, %s7, %s5
  loop: start=0, step=1, limit=18
  $region2: #{image_encoder_forward.6} parent=0 // loop_pre_header
    _
  $region3: #{image_encoder_forward.6} parent=0 // loop_header
    %s10 = sphi 0, %s14
    %p11 = scmp.ge.s32.totalorder %s10, 18
    %s17 = sphi 0, %s36
    %s18 = sphi 0, %s32
    %s19 = sphi 0, %s28
    %s20 = sphi 0, %s17
    %s21 = sphi 0, %s18
    %s22 = sphi 0, %s19
    %s23 = sphi 0, %s20
    %s24 = sphi 0, %s21
    %s25 = sphi 0, %s22
    %s41 = sphi 0, %s43
    %s44 = sphi 0, %s41
    %s45 = sphi 0, %s44
    %s61 = sphi 0, %s45
    %s71 = sphi 0, %s73
    %s74 = sphi 0, %s71
    %s75 = sphi 0, %s74
    %s91 = sphi 0, %s75
    %s97 = sphi 0, %s99
    %s100 = sphi 0, %s97
    %s101 = sphi 0, %s100
    %s117 = sphi 0, %s101
    %s123 = sphi 0, %s125
    %s126 = sphi 0, %s123
    %s127 = sphi 0, %s126
    %s143 = sphi 0, %s127
    %s153 = sphi 0, %s155
    %s156 = sphi 0, %s153
    %s157 = sphi 0, %s156
    %s173 = sphi 0, %s157
  $region4: #{image_encoder_forward.6} parent=0 // loop_header_branch
    %13 = sbr.rel (%p11) target = $region8
  $region5: #{image_encoder_forward.6} parent=0 // loop_body
    %s15 = ssub.s32 %s10, 1
    %s16 = ssub.s32 %s10, 2
    %s26 = sadd.s32 1, %s19
    %p27 = scmp.ge.s32.totalorder %s26, 1
    %s28 = scalar_select %p27, 0, %s26
    %s29 = sadd.s32 1, %s18
    %s30 = scalar_select %p27, %s29, %s18
    %p31 = scmp.ge.s32.totalorder %s30, 8
    %s32 = scalar_select %p31, 0, %s30
    %s33 = sadd.s32 1, %s17
    %s34 = scalar_select %p31, %s33, %s17
    %p35 = scmp.ge.s32.totalorder %s34, 2
    %s36 = scalar_select %p35, 0, %s34
    %s37 = ssub.s32 %s17, %s36
    %s38 = ssub.s32 %s18, %s32
    %s39 = sor.u32 %s37, %s38
    %p40 = scmp.eq.s32.totalorder %s39, 0
    %s42 = sadd.s32 %s41, 1
    %s43 = scalar_select %p40, %s41, %s42
    %p46 = pneg %p40
    %p47 = scmp.eq.s32.totalorder %s10, 15
    %p48 = por %p46, %p47
    %p49 = scmp.ne.s32.totalorder %s41, %s44
    %p50 = scmp.eq.s32.totalorder %s10, 0
    %p51 = por %p49, %p50
    %p52 = scmp.ne.s32.totalorder %s41, %s44
    %p53 = scmp.eq.s32.totalorder %s15, 15
    %p54 = por %p52, %p53
    %p55 = scmp.ne.s32.totalorder %s44, %s45
    %p56 = scmp.eq.s32.totalorder %s15, 0
    %p57 = por %p55, %p56
    %p58 = scmp.ne.s32.totalorder %s44, %s45
    %p59 = scmp.eq.s32.totalorder %s16, 15
    %p60 = por %p58, %p59
    %p62 = scmp.ne.s32.totalorder %s45, %s61
    %p63 = scmp.eq.s32.totalorder %s16, 0
    %p64 = por %p62, %p63
    %s65 = sadd.s32 %s18, 1
    %s66 = sadd.s32 %s32, 1
    %s67 = ssub.s32 %s17, %s36
    %s68 = ssub.s32 %s65, %s66
    %s69 = sor.u32 %s67, %s68
    %p70 = scmp.eq.s32.totalorder %s69, 0
    %s72 = sadd.s32 %s71, 1
    %s73 = scalar_select %p70, %s71, %s72
    %p76 = pneg %p70
    %p77 = scmp.eq.s32.totalorder %s10, 15
    %p78 = por %p76, %p77
    %p79 = scmp.ne.s32.totalorder %s71, %s74
    %p80 = scmp.eq.s32.totalorder %s10, 0
    %p81 = por %p79, %p80
    %p82 = scmp.ne.s32.totalorder %s71, %s74
    %p83 = scmp.eq.s32.totalorder %s15, 15
    %p84 = por %p82, %p83
    %p85 = scmp.ne.s32.totalorder %s74, %s75
    %p86 = scmp.eq.s32.totalorder %s15, 0
    %p87 = por %p85, %p86
    %p88 = scmp.ne.s32.totalorder %s74, %s75
    %p89 = scmp.eq.s32.totalorder %s16, 15
    %p90 = por %p88, %p89
    %p92 = scmp.ne.s32.totalorder %s75, %s91
    %p93 = scmp.eq.s32.totalorder %s16, 0
    %p94 = por %p92, %p93
    %s95 = ssub.s32 %s19, %s28
    %p96 = scmp.eq.s32.totalorder %s95, 0
    %s98 = sadd.s32 %s97, 1
    %s99 = scalar_select %p96, %s97, %s98
    %p102 = pneg %p96
    %p103 = scmp.eq.s32.totalorder %s10, 15
    %p104 = por %p102, %p103
    %p105 = scmp.ne.s32.totalorder %s97, %s100
    %p106 = scmp.eq.s32.totalorder %s10, 0
    %p107 = por %p105, %p106
    %p108 = scmp.ne.s32.totalorder %s97, %s100
    %p109 = scmp.eq.s32.totalorder %s15, 15
    %p110 = por %p108, %p109
    %p111 = scmp.ne.s32.totalorder %s100, %s101
    %p112 = scmp.eq.s32.totalorder %s15, 0
    %p113 = por %p111, %p112
    %p114 = scmp.ne.s32.totalorder %s100, %s101
    %p115 = scmp.eq.s32.totalorder %s16, 15
    %p116 = por %p114, %p115
    %p118 = scmp.ne.s32.totalorder %s101, %s117
    %p119 = scmp.eq.s32.totalorder %s16, 0
    %p120 = por %p118, %p119
    %s121 = ssub.s32 %s19, %s28
    %p122 = scmp.eq.s32.totalorder %s121, 0
    %s124 = sadd.s32 %s123, 1
    %s125 = scalar_select %p122, %s123, %s124
    %p128 = pneg %p122
    %p129 = scmp.eq.s32.totalorder %s10, 15
    %p130 = por %p128, %p129
    %p131 = scmp.ne.s32.totalorder %s123, %s126
    %p132 = scmp.eq.s32.totalorder %s10, 0
    %p133 = por %p131, %p132
    %p134 = scmp.ne.s32.totalorder %s123, %s126
    %p135 = scmp.eq.s32.totalorder %s15, 15
    %p136 = por %p134, %p135
    %p137 = scmp.ne.s32.totalorder %s126, %s127
    %p138 = scmp.eq.s32.totalorder %s15, 0
    %p139 = por %p137, %p138
    %p140 = scmp.ne.s32.totalorder %s126, %s127
    %p141 = scmp.eq.s32.totalorder %s16, 15
    %p142 = por %p140, %p141
    %p144 = scmp.ne.s32.totalorder %s127, %s143
    %p145 = scmp.eq.s32.totalorder %s16, 0
    %p146 = por %p144, %p145
    %s147 = ssub.s32 %s17, %s36
    %s148 = ssub.s32 %s18, %s32
    %s149 = sor.u32 %s147, %s148
    %s150 = ssub.s32 %s19, %s28
    %s151 = sor.u32 %s149, %s150
    %p152 = scmp.eq.s32.totalorder %s151, 0
    %s154 = sadd.s32 %s153, 1
    %s155 = scalar_select %p152, %s153, %s154
    %p158 = pneg %p152
    %p159 = scmp.eq.s32.totalorder %s10, 15
    %p160 = por %p158, %p159
    %p161 = scmp.ne.s32.totalorder %s153, %s156
    %p162 = scmp.eq.s32.totalorder %s10, 0
    %p163 = por %p161, %p162
    %p164 = scmp.ne.s32.totalorder %s153, %s156
    %p165 = scmp.eq.s32.totalorder %s15, 15
    %p166 = por %p164, %p165
    %p167 = scmp.ne.s32.totalorder %s156, %s157
    %p168 = scmp.eq.s32.totalorder %s15, 0
    %p169 = por %p167, %p168
    %p170 = scmp.ne.s32.totalorder %s156, %s157
    %p171 = scmp.eq.s32.totalorder %s16, 15
    %p172 = por %p170, %p171
    %p174 = scmp.ne.s32.totalorder %s157, %s173
    %p175 = scmp.eq.s32.totalorder %s16, 0
    %p176 = por %p174, %p175
    %p177 = scmp.le.s32.totalorder 1, %s10
    %p178 = scmp.lt.s32.totalorder %s10, 17
    %p179 = pnand %p177, %p178
    %p180 = pneg %p179
    // Predicated region
    $region9: #{image_encoder_forward.6} parent=5 // pred_check
      _
    $region10: #{image_encoder_forward.6} parent=5 // pred_check_branch
      %182 = sbr.rel (%p179) target = $region12
    $region11: #{image_encoder_forward.6} parent=5 // pred_region
      %s183 = ssub.s32 %s10, 1
      // Predicated region
      $region13: #{image_encoder_forward.6} parent=11 // pred_check
        %p184 = pneg %p113
      $region14: #{image_encoder_forward.6} parent=11 // pred_check_branch
        %186 = sbr.rel (%p184) target = $region16
      $region15: #{image_encoder_forward.6} parent=11 // pred_region
        %p187 = scmp.lt.s32.totalorder %s22, 0
        %s188 = scalar_select %p187, %s22, 0
        %s189 = smul.addr %s188, 4
        %s190 = scalar_lea.vmem %s2, %s189
      $region16: #{image_encoder_forward.6} parent=11 // pred_fallthru
        _
      // Predicated region
      $region17: #{image_encoder_forward.6} parent=11 // pred_check
        %p191 = pneg %p139
      $region18: #{image_encoder_forward.6} parent=11 // pred_check_branch
        %193 = sbr.rel (%p191) target = $region20
      $region19: #{image_encoder_forward.6} parent=11 // pred_region
        %p194 = scmp.lt.s32.totalorder %s22, 0
        %s195 = scalar_select %p194, %s22, 0
        %s196 = scalar_lea.vmem %s3, %s195
      $region20: #{image_encoder_forward.6} parent=11 // pred_fallthru
        _
    $region12: #{image_encoder_forward.6} parent=5 // pred_fallthru
      _
    %p197 = scmp.lt.s32.totalorder %s10, 16
    // Predicated region
    $region21: #{image_encoder_forward.6} parent=5 // pred_check
      %p198 = pneg %p197
    $region22: #{image_encoder_forward.6} parent=5 // pred_check_branch
      %200 = sbr.rel (%p198) target = $region24
    $region23: #{image_encoder_forward.6} parent=5 // pred_region
      // Predicated region
      $region25: #{image_encoder_forward.6} parent=23 // pred_check
        %p201 = pneg %p51
      $region26: #{image_encoder_forward.6} parent=23 // pred_check_branch
        %203 = sbr.rel (%p201) target = $region28
      $region27: #{image_encoder_forward.6} parent=23 // pred_region
        %s204 = smul.u32 2, %s18
        %p205 = scmp.lt.s32.totalorder %s17, 1
        %s206 = scalar_select %p205, %s17, 1
        %p207 = scmp.lt.s32.totalorder %s204, 17
        %s208 = scalar_select %p207, %s204, 17
        %s209 = smul.addr %s208, 2
        %s210 = smul.addr %s206, 36
        %s211 = sadd.s32 %s209, %s210
        %s212 = smul.addr %s211, 8
        %s213 = scalar_lea.vmem %s0, %s212
        %s214 = smul.u32 2, %s18
      $region28: #{image_encoder_forward.6} parent=23 // pred_fallthru
        _
      // Predicated region
      $region29: #{image_encoder_forward.6} parent=23 // pred_check
        %p215 = pneg %p81
      $region30: #{image_encoder_forward.6} parent=23 // pred_check_branch
        %217 = sbr.rel (%p215) target = $region32
      $region31: #{image_encoder_forward.6} parent=23 // pred_region
        %s218 = sadd.s32 %s18, 1
        %s219 = smul.u32 2, %s218
        %p220 = scmp.lt.s32.totalorder %s17, 1
        %s221 = scalar_select %p220, %s17, 1
        %p222 = scmp.lt.s32.totalorder %s219, 17
        %s223 = scalar_select %p222, %s219, 17
        %s224 = smul.addr %s223, 2
        %s225 = smul.addr %s221, 36
        %s226 = sadd.s32 %s224, %s225
        %s227 = smul.addr %s226, 8
        %s228 = scalar_lea.vmem %s1, %s227
        %s229 = sadd.s32 %s18, 1
        %s230 = smul.u32 2, %s229
      $region32: #{image_encoder_forward.6} parent=23 // pred_fallthru
        _
    $region24: #{image_encoder_forward.6} parent=5 // pred_fallthru
      _
    %p231 = scmp.le.s32.totalorder 1, %s10
    %p232 = scmp.lt.s32.totalorder %s10, 17
    %p233 = pnand %p231, %p232
    %p234 = pneg %p233
    // Predicated region
    $region33: #{image_encoder_forward.6} parent=5 // pred_check
      _
    $region34: #{image_encoder_forward.6} parent=5 // pred_check_branch
      %236 = sbr.rel (%p233) target = $region36
    $region35: #{image_encoder_forward.6} parent=5 // pred_region
      %s237 = ssub.s32 %s10, 1
      %s238 = smul.u32 2, %s21
      %p239 = scmp.lt.s32.totalorder %s20, 1
      %s240 = scalar_select %p239, %s20, 1
      %p241 = scmp.lt.s32.totalorder %s238, 17
      %s242 = scalar_select %p241, %s238, 17
      %s243 = smul.addr %s242, 2
      %s244 = smul.addr %s240, 36
      %s245 = sadd.s32 %s243, %s244
      %s246 = smul.addr %s245, 8
      %s247 = scalar_lea.vmem %s0, %s246
      %p248 = pneg %p57
      %p249 = pneg %p54
      %s250 = sadd.s32 %s21, 1
      %s251 = smul.u32 2, %s250
      %p252 = scmp.lt.s32.totalorder %s20, 1
      %s253 = scalar_select %p252, %s20, 1
      %p254 = scmp.lt.s32.totalorder %s251, 17
      %s255 = scalar_select %p254, %s251, 17
      %s256 = smul.addr %s255, 2
      %s257 = smul.addr %s253, 36
      %s258 = sadd.s32 %s256, %s257
      %s259 = smul.addr %s258, 8
      %s260 = scalar_lea.vmem %s1, %s259
      %p261 = pneg %p87
      %p262 = pneg %p84
      %p263 = scmp.lt.s32.totalorder %s22, 0
      %s264 = scalar_select %p263, %s22, 0
      %s265 = smul.addr %s264, 4
      %s266 = scalar_lea.vmem %s2, %s265
      %p267 = pneg %p113
      %p268 = pneg %p110
      %p269 = scmp.lt.s32.totalorder %s22, 0
      %s270 = scalar_select %p269, %s22, 0
      %s271 = scalar_lea.vmem %s3, %s270
      %p272 = pneg %p139
      %p273 = pneg %p136
      %p274 = pneg %p169
      %p275 = pneg %p166
      %p276 = scmp.lt.s32.totalorder %s20, 1
      %s277 = scalar_select %p276, %s20, 1
      %p278 = scmp.lt.s32.totalorder %s21, 7
      %s279 = scalar_select %p278, %s21, 7
      %p280 = scmp.lt.s32.totalorder %s22, 0
      %s281 = scalar_select %p280, %s22, 0
      %s282 = sadd.s32 %s281, %s279
      %s283 = smul.addr %s277, 8
      %s284 = sadd.s32 %s282, %s283
      %s285 = smul.addr %s284, 8
      %s286 = scalar_lea.vmem %s4, %s285
      %s287 = smul.u32 2, %s21
      %p288 = scmp.lt.s32.totalorder %s20, 1
      %s289 = scalar_select %p288, %s20, 1
      %p290 = scmp.lt.s32.totalorder %s287, 17
      %s291 = scalar_select %p290, %s287, 17
      %s292 = smul.addr %s291, 2
      %s293 = smul.addr %s289, 36
      %s294 = sadd.s32 %s292, %s293
      %s295 = smul.addr %s294, 8
      %s296 = scalar_lea.vmem %s0, %s295
      %s297 = smul.u32 2, %s21
      %s298 = sadd.s32 %s21, 1
      %s299 = smul.u32 2, %s298
      %p300 = scmp.lt.s32.totalorder %s20, 1
      %s301 = scalar_select %p300, %s20, 1
      %p302 = scmp.lt.s32.totalorder %s299, 17
      %s303 = scalar_select %p302, %s299, 17
      %s304 = smul.addr %s303, 2
      %s305 = smul.addr %s301, 36
      %s306 = sadd.s32 %s304, %s305
      %s307 = smul.addr %s306, 8
      %s308 = scalar_lea.vmem %s1, %s307
      %s309 = sadd.s32 %s21, 1
      %s310 = smul.u32 2, %s309
      %p311 = scmp.lt.s32.totalorder %s22, 0
      %s312 = scalar_select %p311, %s22, 0
      %s313 = smul.addr %s312, 4
      %s314 = scalar_lea.vmem %s2, %s313
      %p315 = scmp.lt.s32.totalorder %s22, 0
      %s316 = scalar_select %p315, %s22, 0
      %s317 = scalar_lea.vmem %s3, %s316
      %p318 = scmp.lt.s32.totalorder %s20, 1
      %s319 = scalar_select %p318, %s20, 1
      %p320 = scmp.lt.s32.totalorder %s21, 7
      %s321 = scalar_select %p320, %s21, 7
      %p322 = scmp.lt.s32.totalorder %s22, 0
      %s323 = scalar_select %p322, %s22, 0
      %s324 = sadd.s32 %s323, %s321
      %s325 = smul.addr %s319, 8
      %s326 = sadd.s32 %s324, %s325
      %s327 = smul.addr %s326, 8
      %s328 = scalar_lea.vmem %s4, %s327
      %v330 = vld [vmem:[%s296] sm:$0xff]
      %v331 = vld [vmem:[%s296 + $0x8] sm:$0x1]
      %v332 = vld [vmem:[%s296 + $0x10] sm:$0xff]
      %v333 = vld [vmem:[%s296 + $0x18] sm:$0x1]
      %v334 = vld [vmem:[%s308] sm:$0xff]
      %v335 = vld [vmem:[%s308 + $0x8] sm:$0x1]
      %v336 = vld [vmem:[%s308 + $0x10] sm:$0xff]
      %v337 = vld [vmem:[%s308 + $0x18] sm:$0x1]
      %v338 = vld [vmem:[%s314] sm:$0xf]
      %v339 = vld [vmem:[%s314 + $0x4] sm:$0xf]
      %v340 = vpack.c.bf16 %v330, %v330
      %s341 = scalar_lea.vmem %s314, 8
      %v342 = vld [vmem:[%s341] sm:$0xf]
      %v343 = vld [vmem:[%s341 + $0x4] sm:$0xf]
      %v344 = vpack.c.bf16 %v331, %v330
      %v346 = vshrl.u32 %v344, 16
      %v348 = vshll.u32 %v344, 16
      %v350 = vrot.slane %v348, 1
      %v351 = vor.u32 %v346, %v350
      %v354 = vunpack.c.l.b16 %v342
      %v355 = vunpack.c.l.b16 %v343
      %v356 = vpack.c.b16 %v355, %v354
      %vm358 = vcmask 130048
      %v360 = vsel %vm358, %v351, 0
      %362 = vmatprep.subr.bf16.mxu0 0
      %363 = vmatpush1.bf16.msra.mxu0 %v356
      %364 = vmatprep.subr.bf16.mxu0 0
      %365 = vmatpush1.bf16.msra.mxu0 0
      %366 = vmatprep.subr.bf16.mxu0 0
      %367 = vmatpush1.bf16.msra.mxu0 0
      %368 = vmatprep.subr.bf16.mxu0 0
      %369 = vmatpush1.bf16.msra.mxu0 0
      %370 = vmatprep.subr.bf16.mxu0 0
      %371 = vmatpush1.bf16.msra.mxu0 0
      %372 = vmatprep.subr.bf16.mxu0 0
      %373 = vmatpush1.bf16.msra.mxu0 0
      %374 = vmatprep.subr.bf16.mxu0 0
      %375 = vmatpush1.bf16.msra.mxu0 0
      %376 = vmatprep.subr.bf16.mxu0 0
      %377 = vmatpush1.bf16.msra.mxu0 0
      %378 = vmatprep.subr.bf16.mxu0 0
      %379 = vmatpush1.bf16.msra.mxu0 0
      %380 = vmatprep.subr.bf16.mxu0 0
      %381 = vmatpush1.bf16.msra.mxu0 0
      %382 = vmatprep.subr.bf16.mxu0 0
      %383 = vmatpush1.bf16.msra.mxu0 0
      %384 = vmatprep.subr.bf16.mxu0 0
      %385 = vmatpush1.bf16.msra.mxu0 0
      %386 = vmatprep.subr.bf16.mxu0 0
      %387 = vmatpush1.bf16.msra.mxu0 0
      %388 = vmatprep.subr.bf16.mxu0 0
      %389 = vmatpush1.bf16.msra.mxu0 0
      %390 = vmatprep.subr.bf16.mxu0 0
      %391 = vmatpush1.bf16.msra.mxu0 0
      %392 = vmatprep.subr.bf16.mxu0 0
      %393 = vmatpush1.bf16.msra.mxu0 0
      %394 = vmatprep.mubr.bf16.mxu0 0
      %395 = vmatmul.mubr.bf16.gmra.mrb[0].mxu0 %v360
      %v396 = vpop.f32.mrb[0].mxu0
      %v397 = vadd.f32 0.0, %v396
      %v398 = vpop.f32.mrb[0].mxu0
      %v399 = vpop.f32.mrb[0].mxu0
      %v400 = vpop.f32.mrb[0].mxu0
      %401 = vdwg.mxu0
      %v404 = vunpack.c.l.b16 %v338
      %v405 = vunpack.c.l.b16 %v339
      %v406 = vpack.c.b16 %v405, %v404
      %v409 = vsel %vm358, %v340, 0
      %411 = vmatprep.subr.bf16.mxu0 0
      %412 = vmatpush1.bf16.msra.mxu0 %v406
      %413 = vmatprep.subr.bf16.mxu0 0
      %414 = vmatpush1.bf16.msra.mxu0 0
      %415 = vmatprep.subr.bf16.mxu0 0
      %416 = vmatpush1.bf16.msra.mxu0 0
      %417 = vmatprep.subr.bf16.mxu0 0
      %418 = vmatpush1.bf16.msra.mxu0 0
      %419 = vmatprep.subr.bf16.mxu0 0
      %420 = vmatpush1.bf16.msra.mxu0 0
      %421 = vmatprep.subr.bf16.mxu0 0
      %422 = vmatpush1.bf16.msra.mxu0 0
      %423 = vmatprep.subr.bf16.mxu0 0
      %424 = vmatpush1.bf16.msra.mxu0 0
      %425 = vmatprep.subr.bf16.mxu0 0
      %426 = vmatpush1.bf16.msra.mxu0 0
      %427 = vmatprep.subr.bf16.mxu0 0
      %428 = vmatpush1.bf16.msra.mxu0 0
      %429 = vmatprep.subr.bf16.mxu0 0
      %430 = vmatpush1.bf16.msra.mxu0 0
      %431 = vmatprep.subr.bf16.mxu0 0
      %432 = vmatpush1.bf16.msra.mxu0 0
      %433 = vmatprep.subr.bf16.mxu0 0
      %434 = vmatpush1.bf16.msra.mxu0 0
      %435 = vmatprep.subr.bf16.mxu0 0
      %436 = vmatpush1.bf16.msra.mxu0 0
      %437 = vmatprep.subr.bf16.mxu0 0
      %438 = vmatpush1.bf16.msra.mxu0 0
      %439 = vmatprep.subr.bf16.mxu0 0
      %440 = vmatpush1.bf16.msra.mxu0 0
      %441 = vmatprep.subr.bf16.mxu0 0
      %442 = vmatpush1.bf16.msra.mxu0 0
      %443 = vmatprep.mubr.bf16.mxu0 0
      %444 = vmatmul.mubr.bf16.gmra.mrb[0].mxu0 %v409
      %v445 = vpop.f32.mrb[0].mxu0
      %v446 = vadd.f32 %v397, %v445
      %v447 = vpop.f32.mrb[0].mxu0
      %v448 = vpop.f32.mrb[0].mxu0
      %v449 = vpop.f32.mrb[0].mxu0
      %450 = vdwg.mxu0
      %s451 = scalar_lea.vmem %s314, 16
      %v452 = vld [vmem:[%s451] sm:$0xf]
      %v453 = vld [vmem:[%s451 + $0x4] sm:$0xf]
      %v454 = vpack.c.bf16 %v332, %v332
      %v457 = vunpack.c.l.b16 %v452
      %v458 = vunpack.c.l.b16 %v453
      %v459 = vpack.c.b16 %v458, %v457
      %v462 = vsel %vm358, %v454, 0
      %464 = vmatprep.subr.bf16.mxu0 0
      %465 = vmatpush1.bf16.msra.mxu0 %v459
      %466 = vmatprep.subr.bf16.mxu0 0
      %467 = vmatpush1.bf16.msra.mxu0 0
      %468 = vmatprep.subr.bf16.mxu0 0
      %469 = vmatpush1.bf16.msra.mxu0 0
      %470 = vmatprep.subr.bf16.mxu0 0
      %471 = vmatpush1.bf16.msra.mxu0 0
      %472 = vmatprep.subr.bf16.mxu0 0
      %473 = vmatpush1.bf16.msra.mxu0 0
      %474 = vmatprep.subr.bf16.mxu0 0
      %475 = vmatpush1.bf16.msra.mxu0 0
      %476 = vmatprep.subr.bf16.mxu0 0
      %477 = vmatpush1.bf16.msra.mxu0 0
      %478 = vmatprep.subr.bf16.mxu0 0
      %479 = vmatpush1.bf16.msra.mxu0 0
      %480 = vmatprep.subr.bf16.mxu0 0
      %481 = vmatpush1.bf16.msra.mxu0 0
      %482 = vmatprep.subr.bf16.mxu0 0
      %483 = vmatpush1.bf16.msra.mxu0 0
      %484 = vmatprep.subr.bf16.mxu0 0
      %485 = vmatpush1.bf16.msra.mxu0 0
      %486 = vmatprep.subr.bf16.mxu0 0
      %487 = vmatpush1.bf16.msra.mxu0 0
      %488 = vmatprep.subr.bf16.mxu0 0
      %489 = vmatpush1.bf16.msra.mxu0 0
      %490 = vmatprep.subr.bf16.mxu0 0
      %491 = vmatpush1.bf16.msra.mxu0 0
      %492 = vmatprep.subr.bf16.mxu0 0
      %493 = vmatpush1.bf16.msra.mxu0 0
      %494 = vmatprep.subr.bf16.mxu0 0
      %495 = vmatpush1.bf16.msra.mxu0 0
      %496 = vmatprep.mubr.bf16.mxu0 0
      %497 = vmatmul.mubr.bf16.gmra.mrb[0].mxu0 %v462
      %v498 = vpop.f32.mrb[0].mxu0
      %v499 = vadd.f32 0.0, %v498
      %v500 = vpop.f32.mrb[0].mxu0
      %v501 = vpop.f32.mrb[0].mxu0
      %v502 = vpop.f32.mrb[0].mxu0
      %503 = vdwg.mxu0
      %v504 = vadd.f32 %v446, %v499
      %s505 = scalar_lea.vmem %s314, 24
      %v506 = vld [vmem:[%s505] sm:$0xf]
      %v507 = vld [vmem:[%s505 + $0x4] sm:$0xf]
      %v508 = vpack.c.bf16 %v333, %v332
      %v510 = vshrl.u32 %v508, 16
      %v512 = vshll.u32 %v508, 16
      %v514 = vrot.slane %v512, 1
      %v515 = vor.u32 %v510, %v514
      %v518 = vunpack.c.l.b16 %v506
      %v519 = vunpack.c.l.b16 %v507
      %v520 = vpack.c.b16 %v519, %v518
      %v523 = vsel %vm358, %v515, 0
      %525 = vmatprep.subr.bf16.mxu0 0
      %526 = vmatpush1.bf16.msra.mxu0 %v520
      %527 = vmatprep.subr.bf16.mxu0 0
      %528 = vmatpush1.bf16.msra.mxu0 0
      %529 = vmatprep.subr.bf16.mxu0 0
      %530 = vmatpush1.bf16.msra.mxu0 0
      %531 = vmatprep.subr.bf16.mxu0 0
      %532 = vmatpush1.bf16.msra.mxu0 0
      %533 = vmatprep.subr.bf16.mxu0 0
      %534 = vmatpush1.bf16.msra.mxu0 0
      %535 = vmatprep.subr.bf16.mxu0 0
      %536 = vmatpush1.bf16.msra.mxu0 0
      %537 = vmatprep.subr.bf16.mxu0 0
      %538 = vmatpush1.bf16.msra.mxu0 0
      %539 = vmatprep.subr.bf16.mxu0 0
      %540 = vmatpush1.bf16.msra.mxu0 0
      %541 = vmatprep.subr.bf16.mxu0 0
      %542 = vmatpush1.bf16.msra.mxu0 0
      %543 = vmatprep.subr.bf16.mxu0 0
      %544 = vmatpush1.bf16.msra.mxu0 0
      %545 = vmatprep.subr.bf16.mxu0 0
      %546 = vmatpush1.bf16.msra.mxu0 0
      %547 = vmatprep.subr.bf16.mxu0 0
      %548 = vmatpush1.bf16.msra.mxu0 0
      %549 = vmatprep.subr.bf16.mxu0 0
      %550 = vmatpush1.bf16.msra.mxu0 0
      %551 = vmatprep.subr.bf16.mxu0 0
      %552 = vmatpush1.bf16.msra.mxu0 0
      %553 = vmatprep.subr.bf16.mxu0 0
      %554 = vmatpush1.bf16.msra.mxu0 0
      %555 = vmatprep.subr.bf16.mxu0 0
      %556 = vmatpush1.bf16.msra.mxu0 0
      %557 = vmatprep.mubr.bf16.mxu0 0
      %558 = vmatmul.mubr.bf16.gmra.mrb[0].mxu0 %v523
      %v559 = vpop.f32.mrb[0].mxu0
      %v560 = vadd.f32 0.0, %v559
      %v561 = vpop.f32.mrb[0].mxu0
      %v562 = vpop.f32.mrb[0].mxu0
      %v563 = vpop.f32.mrb[0].mxu0
      %564 = vdwg.mxu0
      %v565 = vadd.f32 %v504, %v560
      %s566 = scalar_lea.vmem %s314, 32
      %v567 = vld [vmem:[%s566] sm:$0xf]
      %v568 = vld [vmem:[%s566 + $0x4] sm:$0xf]
      %v569 = vpack.c.bf16 %v334, %v334
      %v572 = vunpack.c.l.b16 %v567
      %v573 = vunpack.c.l.b16 %v568
      %v574 = vpack.c.b16 %v573, %v572
      %v577 = vsel %vm358, %v569, 0
      %579 = vmatprep.subr.bf16.mxu0 0
      %580 = vmatpush1.bf16.msra.mxu0 %v574
      %581 = vmatprep.subr.bf16.mxu0 0
      %582 = vmatpush1.bf16.msra.mxu0 0
      %583 = vmatprep.subr.bf16.mxu0 0
      %584 = vmatpush1.bf16.msra.mxu0 0
      %585 = vmatprep.subr.bf16.mxu0 0
      %586 = vmatpush1.bf16.msra.mxu0 0
      %587 = vmatprep.subr.bf16.mxu0 0
      %588 = vmatpush1.bf16.msra.mxu0 0
      %589 = vmatprep.subr.bf16.mxu0 0
      %590 = vmatpush1.bf16.msra.mxu0 0
      %591 = vmatprep.subr.bf16.mxu0 0
      %592 = vmatpush1.bf16.msra.mxu0 0
      %593 = vmatprep.subr.bf16.mxu0 0
      %594 = vmatpush1.bf16.msra.mxu0 0
      %595 = vmatprep.subr.bf16.mxu0 0
      %596 = vmatpush1.bf16.msra.mxu0 0
      %597 = vmatprep.subr.bf16.mxu0 0
      %598 = vmatpush1.bf16.msra.mxu0 0
      %599 = vmatprep.subr.bf16.mxu0 0
      %600 = vmatpush1.bf16.msra.mxu0 0
      %601 = vmatprep.subr.bf16.mxu0 0
      %602 = vmatpush1.bf16.msra.mxu0 0
      %603 = vmatprep.subr.bf16.mxu0 0
      %604 = vmatpush1.bf16.msra.mxu0 0
      %605 = vmatprep.subr.bf16.mxu0 0
      %606 = vmatpush1.bf16.msra.mxu0 0
      %607 = vmatprep.subr.bf16.mxu0 0
      %608 = vmatpush1.bf16.msra.mxu0 0
      %609 = vmatprep.subr.bf16.mxu0 0
      %610 = vmatpush1.bf16.msra.mxu0 0
      %611 = vmatprep.mubr.bf16.mxu0 0
      %612 = vmatmul.mubr.bf16.gmra.mrb[0].mxu0 %v577
      %v613 = vpop.f32.mrb[0].mxu0
      %v614 = vadd.f32 0.0, %v613
      %v615 = vpop.f32.mrb[0].mxu0
      %v616 = vpop.f32.mrb[0].mxu0
      %v617 = vpop.f32.mrb[0].mxu0
      %618 = vdwg.mxu0
      %v619 = vadd.f32 %v565, %v614
      %s620 = scalar_lea.vmem %s314, 40
      %v621 = vld [vmem:[%s620] sm:$0xf]
      %v622 = vld [vmem:[%s620 + $0x4] sm:$0xf]
      %v623 = vpack.c.bf16 %v335, %v334
      %v625 = vshrl.u32 %v623, 16
      %v627 = vshll.u32 %v623, 16
      %v629 = vrot.slane %v627, 1
      %v630 = vor.u32 %v625, %v629
      %v633 = vunpack.c.l.b16 %v621
      %v634 = vunpack.c.l.b16 %v622
      %v635 = vpack.c.b16 %v634, %v633
      %v638 = vsel %vm358, %v630, 0
      %640 = vmatprep.subr.bf16.mxu0 0
      %641 = vmatpush1.bf16.msra.mxu0 %v635
      %642 = vmatprep.subr.bf16.mxu0 0
      %643 = vmatpush1.bf16.msra.mxu0 0
      %644 = vmatprep.subr.bf16.mxu0 0
      %645 = vmatpush1.bf16.msra.mxu0 0
      %646 = vmatprep.subr.bf16.mxu0 0
      %647 = vmatpush1.bf16.msra.mxu0 0
      %648 = vmatprep.subr.bf16.mxu0 0
      %649 = vmatpush1.bf16.msra.mxu0 0
      %650 = vmatprep.subr.bf16.mxu0 0
      %651 = vmatpush1.bf16.msra.mxu0 0
      %652 = vmatprep.subr.bf16.mxu0 0
      %653 = vmatpush1.bf16.msra.mxu0 0
      %654 = vmatprep.subr.bf16.mxu0 0
      %655 = vmatpush1.bf16.msra.mxu0 0
      %656 = vmatprep.subr.bf16.mxu0 0
      %657 = vmatpush1.bf16.msra.mxu0 0
      %658 = vmatprep.subr.bf16.mxu0 0
      %659 = vmatpush1.bf16.msra.mxu0 0
      %660 = vmatprep.subr.bf16.mxu0 0
      %661 = vmatpush1.bf16.msra.mxu0 0
      %662 = vmatprep.subr.bf16.mxu0 0
      %663 = vmatpush1.bf16.msra.mxu0 0
      %664 = vmatprep.subr.bf16.mxu0 0
      %665 = vmatpush1.bf16.msra.mxu0 0
      %666 = vmatprep.subr.bf16.mxu0 0
      %667 = vmatpush1.bf16.msra.mxu0 0
      %668 = vmatprep.subr.bf16.mxu0 0
      %669 = vmatpush1.bf16.msra.mxu0 0
      %670 = vmatprep.subr.bf16.mxu0 0
      %671 = vmatpush1.bf16.msra.mxu0 0
      %672 = vmatprep.mubr.bf16.mxu0 0
      %673 = vmatmul.mubr.bf16.gmra.mrb[0].mxu0 %v638
      %v674 = vpop.f32.mrb[0].mxu0
      %v675 = vadd.f32 0.0, %v674
      %v676 = vpop.f32.mrb[0].mxu0
      %v677 = vpop.f32.mrb[0].mxu0
      %v678 = vpop.f32.mrb[0].mxu0
      %679 = vdwg.mxu0
      %v680 = vadd.f32 %v619, %v675
      %s681 = scalar_lea.vmem %s314, 48
      %v682 = vld [vmem:[%s681] sm:$0xf]
      %v683 = vld [vmem:[%s681 + $0x4] sm:$0xf]
      %v684 = vpack.c.bf16 %v336, %v336
      %v687 = vunpack.c.l.b16 %v682
      %v688 = vunpack.c.l.b16 %v683
      %v689 = vpack.c.b16 %v688, %v687
      %v692 = vsel %vm358, %v684, 0
      %694 = vmatprep.subr.bf16.mxu0 0
      %695 = vmatpush1.bf16.msra.mxu0 %v689
      %696 = vmatprep.subr.bf16.mxu0 0
      %697 = vmatpush1.bf16.msra.mxu0 0
      %698 = vmatprep.subr.bf16.mxu0 0
      %699 = vmatpush1.bf16.msra.mxu0 0
      %700 = vmatprep.subr.bf16.mxu0 0
      %701 = vmatpush1.bf16.msra.mxu0 0
      %702 = vmatprep.subr.bf16.mxu0 0
      %703 = vmatpush1.bf16.msra.mxu0 0
      %704 = vmatprep.subr.bf16.mxu0 0
      %705 = vmatpush1.bf16.msra.mxu0 0
      %706 = vmatprep.subr.bf16.mxu0 0
      %707 = vmatpush1.bf16.msra.mxu0 0
      %708 = vmatprep.subr.bf16.mxu0 0
      %709 = vmatpush1.bf16.msra.mxu0 0
      %710 = vmatprep.subr.bf16.mxu0 0
      %711 = vmatpush1.bf16.msra.mxu0 0
      %712 = vmatprep.subr.bf16.mxu0 0
      %713 = vmatpush1.bf16.msra.mxu0 0
      %714 = vmatprep.subr.bf16.mxu0 0
      %715 = vmatpush1.bf16.msra.mxu0 0
      %716 = vmatprep.subr.bf16.mxu0 0
      %717 = vmatpush1.bf16.msra.mxu0 0
      %718 = vmatprep.subr.bf16.mxu0 0
      %719 = vmatpush1.bf16.msra.mxu0 0
      %720 = vmatprep.subr.bf16.mxu0 0
      %721 = vmatpush1.bf16.msra.mxu0 0
      %722 = vmatprep.subr.bf16.mxu0 0
      %723 = vmatpush1.bf16.msra.mxu0 0
      %724 = vmatprep.subr.bf16.mxu0 0
      %725 = vmatpush1.bf16.msra.mxu0 0
      %726 = vmatprep.mubr.bf16.mxu0 0
      %727 = vmatmul.mubr.bf16.gmra.mrb[0].mxu0 %v692
      %v728 = vpop.f32.mrb[0].mxu0
      %v729 = vadd.f32 0.0, %v728
      %v730 = vpop.f32.mrb[0].mxu0
      %v731 = vpop.f32.mrb[0].mxu0
      %v732 = vpop.f32.mrb[0].mxu0
      %733 = vdwg.mxu0
      %v734 = vadd.f32 %v680, %v729
      %s735 = scalar_lea.vmem %s314, 56
      %v736 = vld [vmem:[%s735] sm:$0xf]
      %v737 = vld [vmem:[%s735 + $0x4] sm:$0xf]
      %v738 = vpack.c.bf16 %v337, %v336
      %v740 = vshrl.u32 %v738, 16
      %v742 = vshll.u32 %v738, 16
      %v744 = vrot.slane %v742, 1
      %v745 = vor.u32 %v740, %v744
      %v748 = vunpack.c.l.b16 %v736
      %v749 = vunpack.c.l.b16 %v737
      %v750 = vpack.c.b16 %v749, %v748
      %v753 = vsel %vm358, %v745, 0
      %755 = vmatprep.subr.bf16.mxu0 0
      %756 = vmatpush1.bf16.msra.mxu0 %v750
      %757 = vmatprep.subr.bf16.mxu0 0
      %758 = vmatpush1.bf16.msra.mxu0 0
      %759 = vmatprep.subr.bf16.mxu0 0
      %760 = vmatpush1.bf16.msra.mxu0 0
      %761 = vmatprep.subr.bf16.mxu0 0
      %762 = vmatpush1.bf16.msra.mxu0 0
      %763 = vmatprep.subr.bf16.mxu0 0
      %764 = vmatpush1.bf16.msra.mxu0 0
      %765 = vmatprep.subr.bf16.mxu0 0
      %766 = vmatpush1.bf16.msra.mxu0 0
      %767 = vmatprep.subr.bf16.mxu0 0
      %768 = vmatpush1.bf16.msra.mxu0 0
      %769 = vmatprep.subr.bf16.mxu0 0
      %770 = vmatpush1.bf16.msra.mxu0 0
      %771 = vmatprep.subr.bf16.mxu0 0
      %772 = vmatpush1.bf16.msra.mxu0 0
      %773 = vmatprep.subr.bf16.mxu0 0
      %774 = vmatpush1.bf16.msra.mxu0 0
      %775 = vmatprep.subr.bf16.mxu0 0
      %776 = vmatpush1.bf16.msra.mxu0 0
      %777 = vmatprep.subr.bf16.mxu0 0
      %778 = vmatpush1.bf16.msra.mxu0 0
      %779 = vmatprep.subr.bf16.mxu0 0
      %780 = vmatpush1.bf16.msra.mxu0 0
      %781 = vmatprep.subr.bf16.mxu0 0
      %782 = vmatpush1.bf16.msra.mxu0 0
      %783 = vmatprep.subr.bf16.mxu0 0
      %784 = vmatpush1.bf16.msra.mxu0 0
      %785 = vmatprep.subr.bf16.mxu0 0
      %786 = vmatpush1.bf16.msra.mxu0 0
      %787 = vmatprep.mubr.bf16.mxu0 0
      %788 = vmatmul.mubr.bf16.gmra.mrb[0].mxu0 %v753
      %v789 = vpop.f32.mrb[0].mxu0
      %v790 = vadd.f32 0.0, %v789
      %v791 = vpop.f32.mrb[0].mxu0
      %v792 = vpop.f32.mrb[0].mxu0
      %v793 = vpop.f32.mrb[0].mxu0
      %794 = vdwg.mxu0
      %v795 = vadd.f32 %v734, %v790
      %v796 = vld [vmem:[%s317] sm:$0x1]
      %v798 = vlaneseq
      %v799 = vshrl.u32 %v798, 7
      %v800 = vsub.s32 0, %v799
      %v801 = vrot.slane %v796, %v800
      %v803 = vadd.f32 %v795, %v801
      %804 = vst [vmem:[%s328] sm:$0xff] %v803
      %p805 = scmp.lt.s32.totalorder %s20, 1
      %s806 = scalar_select %p805, %s20, 1
      %p807 = scmp.lt.s32.totalorder %s21, 7
      %s808 = scalar_select %p807, %s21, 7
      %p809 = scmp.lt.s32.totalorder %s22, 0
      %s810 = scalar_select %p809, %s22, 0
      %s811 = sadd.s32 %s810, %s808
      %s812 = smul.addr %s806, 8
      %s813 = sadd.s32 %s811, %s812
      %s814 = smul.addr %s813, 8
      %s815 = scalar_lea.vmem %s4, %s814
      // Predicated region
      $region37: #{image_encoder_forward.6} parent=35 // pred_check
        %p816 = pneg %p166
      $region38: #{image_encoder_forward.6} parent=35 // pred_check_branch
        %818 = sbr.rel (%p816) target = $region40
      $region39: #{image_encoder_forward.6} parent=35 // pred_region
        _
      $region40: #{image_encoder_forward.6} parent=35 // pred_fallthru
        _
    $region36: #{image_encoder_forward.6} parent=5 // pred_fallthru
      _
    %p819 = scmp.le.s32.totalorder 2, %s10
    // Predicated region
    $region41: #{image_encoder_forward.6} parent=5 // pred_check
      %p820 = pneg %p819
    $region42: #{image_encoder_forward.6} parent=5 // pred_check_branch
      %822 = sbr.rel (%p820) target = $region44
    $region43: #{image_encoder_forward.6} parent=5 // pred_region
      %s823 = ssub.s32 %s10, 2
      // Predicated region
      $region45: #{image_encoder_forward.6} parent=43 // pred_check
        %p824 = pneg %p172
      $region46: #{image_encoder_forward.6} parent=43 // pred_check_branch
        %826 = sbr.rel (%p824) target = $region48
      $region47: #{image_encoder_forward.6} parent=43 // pred_region
        %p827 = scmp.lt.s32.totalorder %s23, 1
        %s828 = scalar_select %p827, %s23, 1
        %p829 = scmp.lt.s32.totalorder %s24, 7
        %s830 = scalar_select %p829, %s24, 7
        %p831 = scmp.lt.s32.totalorder %s25, 0
        %s832 = scalar_select %p831, %s25, 0
        %s833 = sadd.s32 %s832, %s830
        %s834 = smul.addr %s828, 8
        %s835 = sadd.s32 %s833, %s834
        %s836 = smul.addr %s835, 8
        %s837 = scalar_lea.vmem %s4, %s836
      $region48: #{image_encoder_forward.6} parent=43 // pred_fallthru
        _
    $region44: #{image_encoder_forward.6} parent=5 // pred_fallthru
      _
  $region6: #{image_encoder_forward.6} parent=0 // loop_footer
    %s14 = sadd.s32 1, %s10
  $region7: #{image_encoder_forward.6} parent=0 // loop_footer_branch
    %9 = sbr.rel target = $region3
  $region8: #{image_encoder_forward.6} parent=0 // loop_exit
    _

// kernel: image_encoder_forward.7
$region0: #{image_encoder_forward.7}
  #allocation0 [shape = 'u32[]', space=smem, size = 0x4, offset = 0x4, fixed_abs, tag = 'smem constant byte address 0x4 - core index']
  #allocation1 [shape = 'u32[144,128]{1,0:T(1,128)}', space=vmem, size = 0x12000, scoped, tag = 'internal scratch']
  %s0 = inlined_call_operand.vmem [shape: f32[2,10,5,32], index: 0, kind: input, shape index: {}, may-alias: {0,1}]
  %s1 = inlined_call_operand.vmem [shape: f32[2,10,5,32], index: 1, kind: input, shape index: {}, may-alias: {0,1}]
  %s2 = inlined_call_operand.vmem [shape: bf16[4,2,32,128], index: 2, kind: input, shape index: {}]
  %s3 = inlined_call_operand.vmem [shape: f32[1,128], index: 3, kind: input, shape index: {}]
  %s4 = inlined_call_operand.vmem [shape: f32[2,4,4,128], index: 4, kind: output, shape index: {}]
  %s5 = sld [smem:[#allocation0]]
  $region49: #{image_encoder_forward.7} parent=0
    _
  %s7 = ssub.s32 1, %s5
  %s8 = scalar_select 0, %s7, %s5
  loop: start=0, step=1, limit=10
  $region2: #{image_encoder_forward.7} parent=0 // loop_pre_header
    _
  $region3: #{image_encoder_forward.7} parent=0 // loop_header
    %s10 = sphi 0, %s14
    %p11 = scmp.ge.s32.totalorder %s10, 10
    %s17 = sphi 0, %s36
    %s18 = sphi 0, %s32
    %s19 = sphi 0, %s28
    %s20 = sphi 0, %s17
    %s21 = sphi 0, %s18
    %s22 = sphi 0, %s19
    %s23 = sphi 0, %s20
    %s24 = sphi 0, %s21
    %s25 = sphi 0, %s22
    %s41 = sphi 0, %s43
    %s44 = sphi 0, %s41
    %s45 = sphi 0, %s44
    %s61 = sphi 0, %s45
    %s71 = sphi 0, %s73
    %s74 = sphi 0, %s71
    %s75 = sphi 0, %s74
    %s91 = sphi 0, %s75
    %s97 = sphi 0, %s99
    %s100 = sphi 0, %s97
    %s101 = sphi 0, %s100
    %s117 = sphi 0, %s101
    %s123 = sphi 0, %s125
    %s126 = sphi 0, %s123
    %s127 = sphi 0, %s126
    %s143 = sphi 0, %s127
    %s153 = sphi 0, %s155
    %s156 = sphi 0, %s153
    %s157 = sphi 0, %s156
    %s173 = sphi 0, %s157
  $region4: #{image_encoder_forward.7} parent=0 // loop_header_branch
    %13 = sbr.rel (%p11) target = $region8
  $region5: #{image_encoder_forward.7} parent=0 // loop_body
    %s15 = ssub.s32 %s10, 1
    %s16 = ssub.s32 %s10, 2
    %s26 = sadd.s32 1, %s19
    %p27 = scmp.ge.s32.totalorder %s26, 1
    %s28 = scalar_select %p27, 0, %s26
    %s29 = sadd.s32 1, %s18
    %s30 = scalar_select %p27, %s29, %s18
    %p31 = scmp.ge.s32.totalorder %s30, 4
    %s32 = scalar_select %p31, 0, %s30
    %s33 = sadd.s32 1, %s17
    %s34 = scalar_select %p31, %s33, %s17
    %p35 = scmp.ge.s32.totalorder %s34, 2
    %s36 = scalar_select %p35, 0, %s34
    %s37 = ssub.s32 %s17, %s36
    %s38 = ssub.s32 %s18, %s32
    %s39 = sor.u32 %s37, %s38
    %p40 = scmp.eq.s32.totalorder %s39, 0
    %s42 = sadd.s32 %s41, 1
    %s43 = scalar_select %p40, %s41, %s42
    %p46 = pneg %p40
    %p47 = scmp.eq.s32.totalorder %s10, 7
    %p48 = por %p46, %p47
    %p49 = scmp.ne.s32.totalorder %s41, %s44
    %p50 = scmp.eq.s32.totalorder %s10, 0
    %p51 = por %p49, %p50
    %p52 = scmp.ne.s32.totalorder %s41, %s44
    %p53 = scmp.eq.s32.totalorder %s15, 7
    %p54 = por %p52, %p53
    %p55 = scmp.ne.s32.totalorder %s44, %s45
    %p56 = scmp.eq.s32.totalorder %s15, 0
    %p57 = por %p55, %p56
    %p58 = scmp.ne.s32.totalorder %s44, %s45
    %p59 = scmp.eq.s32.totalorder %s16, 7
    %p60 = por %p58, %p59
    %p62 = scmp.ne.s32.totalorder %s45, %s61
    %p63 = scmp.eq.s32.totalorder %s16, 0
    %p64 = por %p62, %p63
    %s65 = sadd.s32 %s18, 1
    %s66 = sadd.s32 %s32, 1
    %s67 = ssub.s32 %s17, %s36
    %s68 = ssub.s32 %s65, %s66
    %s69 = sor.u32 %s67, %s68
    %p70 = scmp.eq.s32.totalorder %s69, 0
    %s72 = sadd.s32 %s71, 1
    %s73 = scalar_select %p70, %s71, %s72
    %p76 = pneg %p70
    %p77 = scmp.eq.s32.totalorder %s10, 7
    %p78 = por %p76, %p77
    %p79 = scmp.ne.s32.totalorder %s71, %s74
    %p80 = scmp.eq.s32.totalorder %s10, 0
    %p81 = por %p79, %p80
    %p82 = scmp.ne.s32.totalorder %s71, %s74
    %p83 = scmp.eq.s32.totalorder %s15, 7
    %p84 = por %p82, %p83
    %p85 = scmp.ne.s32.totalorder %s74, %s75
    %p86 = scmp.eq.s32.totalorder %s15, 0
    %p87 = por %p85, %p86
    %p88 = scmp.ne.s32.totalorder %s74, %s75
    %p89 = scmp.eq.s32.totalorder %s16, 7
    %p90 = por %p88, %p89
    %p92 = scmp.ne.s32.totalorder %s75, %s91
    %p93 = scmp.eq.s32.totalorder %s16, 0
    %p94 = por %p92, %p93
    %s95 = ssub.s32 %s19, %s28
    %p96 = scmp.eq.s32.totalorder %s95, 0
    %s98 = sadd.s32 %s97, 1
    %s99 = scalar_select %p96, %s97, %s98
    %p102 = pneg %p96
    %p103 = scmp.eq.s32.totalorder %s10, 7
    %p104 = por %p102, %p103
    %p105 = scmp.ne.s32.totalorder %s97, %s100
    %p106 = scmp.eq.s32.totalorder %s10, 0
    %p107 = por %p105, %p106
    %p108 = scmp.ne.s32.totalorder %s97, %s100
    %p109 = scmp.eq.s32.totalorder %s15, 7
    %p110 = por %p108, %p109
    %p111 = scmp.ne.s32.totalorder %s100, %s101
    %p112 = scmp.eq.s32.totalorder %s15, 0
    %p113 = por %p111, %p112
    %p114 = scmp.ne.s32.totalorder %s100, %s101
    %p115 = scmp.eq.s32.totalorder %s16, 7
    %p116 = por %p114, %p115
    %p118 = scmp.ne.s32.totalorder %s101, %s117
    %p119 = scmp.eq.s32.totalorder %s16, 0
    %p120 = por %p118, %p119
    %s121 = ssub.s32 %s19, %s28
    %p122 = scmp.eq.s32.totalorder %s121, 0
    %s124 = sadd.s32 %s123, 1
    %s125 = scalar_select %p122, %s123, %s124
    %p128 = pneg %p122
    %p129 = scmp.eq.s32.totalorder %s10, 7
    %p130 = por %p128, %p129
    %p131 = scmp.ne.s32.totalorder %s123, %s126
    %p132 = scmp.eq.s32.totalorder %s10, 0
    %p133 = por %p131, %p132
    %p134 = scmp.ne.s32.totalorder %s123, %s126
    %p135 = scmp.eq.s32.totalorder %s15, 7
    %p136 = por %p134, %p135
    %p137 = scmp.ne.s32.totalorder %s126, %s127
    %p138 = scmp.eq.s32.totalorder %s15, 0
    %p139 = por %p137, %p138
    %p140 = scmp.ne.s32.totalorder %s126, %s127
    %p141 = scmp.eq.s32.totalorder %s16, 7
    %p142 = por %p140, %p141
    %p144 = scmp.ne.s32.totalorder %s127, %s143
    %p145 = scmp.eq.s32.totalorder %s16, 0
    %p146 = por %p144, %p145
    %s147 = ssub.s32 %s17, %s36
    %s148 = ssub.s32 %s18, %s32
    %s149 = sor.u32 %s147, %s148
    %s150 = ssub.s32 %s19, %s28
    %s151 = sor.u32 %s149, %s150
    %p152 = scmp.eq.s32.totalorder %s151, 0
    %s154 = sadd.s32 %s153, 1
    %s155 = scalar_select %p152, %s153, %s154
    %p158 = pneg %p152
    %p159 = scmp.eq.s32.totalorder %s10, 7
    %p160 = por %p158, %p159
    %p161 = scmp.ne.s32.totalorder %s153, %s156
    %p162 = scmp.eq.s32.totalorder %s10, 0
    %p163 = por %p161, %p162
    %p164 = scmp.ne.s32.totalorder %s153, %s156
    %p165 = scmp.eq.s32.totalorder %s15, 7
    %p166 = por %p164, %p165
    %p167 = scmp.ne.s32.totalorder %s156, %s157
    %p168 = scmp.eq.s32.totalorder %s15, 0
    %p169 = por %p167, %p168
    %p170 = scmp.ne.s32.totalorder %s156, %s157
    %p171 = scmp.eq.s32.totalorder %s16, 7
    %p172 = por %p170, %p171
    %p174 = scmp.ne.s32.totalorder %s157, %s173
    %p175 = scmp.eq.s32.totalorder %s16, 0
    %p176 = por %p174, %p175
    %p177 = scmp.le.s32.totalorder 1, %s10
    %p178 = scmp.lt.s32.totalorder %s10, 9
    %p179 = pnand %p177, %p178
    %p180 = pneg %p179
    // Predicated region
    $region9: #{image_encoder_forward.7} parent=5 // pred_check
      _
    $region10: #{image_encoder_forward.7} parent=5 // pred_check_branch
      %182 = sbr.rel (%p179) target = $region12
    $region11: #{image_encoder_forward.7} parent=5 // pred_region
      %s183 = ssub.s32 %s10, 1
      // Predicated region
      $region13: #{image_encoder_forward.7} parent=11 // pred_check
        %p184 = pneg %p113
      $region14: #{image_encoder_forward.7} parent=11 // pred_check_branch
        %186 = sbr.rel (%p184) target = $region16
      $region15: #{image_encoder_forward.7} parent=11 // pred_region
        %p187 = scmp.lt.s32.totalorder %s22, 0
        %s188 = scalar_select %p187, %s22, 0
        %s189 = smul.addr %s188, 4
        %s190 = scalar_lea.vmem %s2, %s189
      $region16: #{image_encoder_forward.7} parent=11 // pred_fallthru
        _
      // Predicated region
      $region17: #{image_encoder_forward.7} parent=11 // pred_check
        %p191 = pneg %p139
      $region18: #{image_encoder_forward.7} parent=11 // pred_check_branch
        %193 = sbr.rel (%p191) target = $region20
      $region19: #{image_encoder_forward.7} parent=11 // pred_region
        %p194 = scmp.lt.s32.totalorder %s22, 0
        %s195 = scalar_select %p194, %s22, 0
        %s196 = scalar_lea.vmem %s3, %s195
      $region20: #{image_encoder_forward.7} parent=11 // pred_fallthru
        _
    $region12: #{image_encoder_forward.7} parent=5 // pred_fallthru
      _
    %p197 = scmp.lt.s32.totalorder %s10, 8
    // Predicated region
    $region21: #{image_encoder_forward.7} parent=5 // pred_check
      %p198 = pneg %p197
    $region22: #{image_encoder_forward.7} parent=5 // pred_check_branch
      %200 = sbr.rel (%p198) target = $region24
    $region23: #{image_encoder_forward.7} parent=5 // pred_region
      // Predicated region
      $region25: #{image_encoder_forward.7} parent=23 // pred_check
        %p201 = pneg %p51
      $region26: #{image_encoder_forward.7} parent=23 // pred_check_branch
        %203 = sbr.rel (%p201) target = $region28
      $region27: #{image_encoder_forward.7} parent=23 // pred_region
        %s204 = smul.u32 2, %s18
        %p205 = scmp.lt.s32.totalorder %s17, 1
        %s206 = scalar_select %p205, %s17, 1
        %p207 = scmp.lt.s32.totalorder %s204, 9
        %s208 = scalar_select %p207, %s204, 9
        %s209 = smul.addr %s206, 10
        %s210 = sadd.s32 %s208, %s209
        %s211 = smul.addr %s210, 8
        %s212 = scalar_lea.vmem %s0, %s211
        %s213 = smul.u32 2, %s18
      $region28: #{image_encoder_forward.7} parent=23 // pred_fallthru
        _
      // Predicated region
      $region29: #{image_encoder_forward.7} parent=23 // pred_check
        %p214 = pneg %p81
      $region30: #{image_encoder_forward.7} parent=23 // pred_check_branch
        %216 = sbr.rel (%p214) target = $region32
      $region31: #{image_encoder_forward.7} parent=23 // pred_region
        %s217 = sadd.s32 %s18, 1
        %s218 = smul.u32 2, %s217
        %p219 = scmp.lt.s32.totalorder %s17, 1
        %s220 = scalar_select %p219, %s17, 1
        %p221 = scmp.lt.s32.totalorder %s218, 9
        %s222 = scalar_select %p221, %s218, 9
        %s223 = smul.addr %s220, 10
        %s224 = sadd.s32 %s222, %s223
        %s225 = smul.addr %s224, 8
        %s226 = scalar_lea.vmem %s1, %s225
        %s227 = sadd.s32 %s18, 1
        %s228 = smul.u32 2, %s227
      $region32: #{image_encoder_forward.7} parent=23 // pred_fallthru
        _
    $region24: #{image_encoder_forward.7} parent=5 // pred_fallthru
      _
    %p229 = scmp.le.s32.totalorder 1, %s10
    %p230 = scmp.lt.s32.totalorder %s10, 9
    %p231 = pnand %p229, %p230
    %p232 = pneg %p231
    // Predicated region
    $region33: #{image_encoder_forward.7} parent=5 // pred_check
      _
    $region34: #{image_encoder_forward.7} parent=5 // pred_check_branch
      %234 = sbr.rel (%p231) target = $region36
    $region35: #{image_encoder_forward.7} parent=5 // pred_region
      %s235 = ssub.s32 %s10, 1
      %s236 = smul.u32 2, %s21
      %p237 = scmp.lt.s32.totalorder %s20, 1
      %s238 = scalar_select %p237, %s20, 1
      %p239 = scmp.lt.s32.totalorder %s236, 9
      %s240 = scalar_select %p239, %s236, 9
      %s241 = smul.addr %s238, 10
      %s242 = sadd.s32 %s240, %s241
      %s243 = smul.addr %s242, 8
      %s244 = scalar_lea.vmem %s0, %s243
      %p245 = pneg %p57
      %p246 = pneg %p54
      %s247 = sadd.s32 %s21, 1
      %s248 = smul.u32 2, %s247
      %p249 = scmp.lt.s32.totalorder %s20, 1
      %s250 = scalar_select %p249, %s20, 1
      %p251 = scmp.lt.s32.totalorder %s248, 9
      %s252 = scalar_select %p251, %s248, 9
      %s253 = smul.addr %s250, 10
      %s254 = sadd.s32 %s252, %s253
      %s255 = smul.addr %s254, 8
      %s256 = scalar_lea.vmem %s1, %s255
      %p257 = pneg %p87
      %p258 = pneg %p84
      %p259 = scmp.lt.s32.totalorder %s22, 0
      %s260 = scalar_select %p259, %s22, 0
      %s261 = smul.addr %s260, 4
      %s262 = scalar_lea.vmem %s2, %s261
      %p263 = pneg %p113
      %p264 = pneg %p110
      %p265 = scmp.lt.s32.totalorder %s22, 0
      %s266 = scalar_select %p265, %s22, 0
      %s267 = scalar_lea.vmem %s3, %s266
      %p268 = pneg %p139
      %p269 = pneg %p136
      %p270 = pneg %p169
      %p271 = pneg %p166
      %p272 = scmp.lt.s32.totalorder %s20, 1
      %s273 = scalar_select %p272, %s20, 1
      %p274 = scmp.lt.s32.totalorder %s21, 3
      %s275 = scalar_select %p274, %s21, 3
      %p276 = scmp.lt.s32.totalorder %s22, 0
      %s277 = scalar_select %p276, %s22, 0
      %s278 = sadd.s32 %s277, %s275
      %s279 = smul.addr %s273, 4
      %s280 = sadd.s32 %s278, %s279
      %s281 = smul.addr %s280, 4
      %s282 = scalar_lea.vmem %s4, %s281
      %s283 = smul.u32 2, %s21
      %p284 = scmp.lt.s32.totalorder %s20, 1
      %s285 = scalar_select %p284, %s20, 1
      %p286 = scmp.lt.s32.totalorder %s283, 9
      %s287 = scalar_select %p286, %s283, 9
      %s288 = smul.addr %s285, 10
      %s289 = sadd.s32 %s287, %s288
      %s290 = smul.addr %s289, 8
      %s291 = scalar_lea.vmem %s0, %s290
      %s292 = smul.u32 2, %s21
      %s293 = sadd.s32 %s21, 1
      %s294 = smul.u32 2, %s293
      %p295 = scmp.lt.s32.totalorder %s20, 1
      %s296 = scalar_select %p295, %s20, 1
      %p297 = scmp.lt.s32.totalorder %s294, 9
      %s298 = scalar_select %p297, %s294, 9
      %s299 = smul.addr %s296, 10
      %s300 = sadd.s32 %s298, %s299
      %s301 = smul.addr %s300, 8
      %s302 = scalar_lea.vmem %s1, %s301
      %s303 = sadd.s32 %s21, 1
      %s304 = smul.u32 2, %s303
      %p305 = scmp.lt.s32.totalorder %s22, 0
      %s306 = scalar_select %p305, %s22, 0
      %s307 = smul.addr %s306, 4
      %s308 = scalar_lea.vmem %s2, %s307
      %p309 = scmp.lt.s32.totalorder %s22, 0
      %s310 = scalar_select %p309, %s22, 0
      %s311 = scalar_lea.vmem %s3, %s310
      %p312 = scmp.lt.s32.totalorder %s20, 1
      %s313 = scalar_select %p312, %s20, 1
      %p314 = scmp.lt.s32.totalorder %s21, 3
      %s315 = scalar_select %p314, %s21, 3
      %p316 = scmp.lt.s32.totalorder %s22, 0
      %s317 = scalar_select %p316, %s22, 0
      %s318 = sadd.s32 %s317, %s315
      %s319 = smul.addr %s313, 4
      %s320 = sadd.s32 %s318, %s319
      %s321 = smul.addr %s320, 4
      %s322 = scalar_lea.vmem %s4, %s321
      %v324 = vld [vmem:[%s291] sm:$0x1f]
      %v325 = vld [vmem:[%s291 + $0x8] sm:$0x1f]
      %v326 = vld [vmem:[%s302] sm:$0x1f]
      %v327 = vld [vmem:[%s302 + $0x8] sm:$0x1f]
      %v328 = vld [vmem:[%s308] sm:$0xf]
      %v329 = vld [vmem:[%s308 + $0x4] sm:$0xf]
      %v330 = vld [vmem:[%s308 + $0x8] sm:$0xf]
      %v331 = vld [vmem:[%s308 + $0xc] sm:$0xf]
      %v332 = vpack.c.bf16 %v324, %v324
      %s333 = scalar_lea.vmem %s308, 16
      %v334 = vld [vmem:[%s333] sm:$0xf]
      %v335 = vld [vmem:[%s333 + $0x4] sm:$0xf]
      %v336 = vld [vmem:[%s333 + $0x8] sm:$0xf]
      %v337 = vld [vmem:[%s333 + $0xc] sm:$0xf]
      %v339 = vshrl.u32 %v332, 16
      %v341 = vshll.u32 %v332, 16
      %v343 = vrot.slane %v341, 1
      %v344 = vor.u32 %v339, %v343
      %v349 = vunpack.c.l.b16 %v334
      %v350 = vunpack.c.l.b16 %v335
      %v351 = vunpack.c.l.b16 %v336
      %v352 = vunpack.c.l.b16 %v337
      %v353 = vpack.c.b16 %v350, %v349
      %v354 = vpack.c.b16 %v352, %v351
      %vm357 = vcmask 261120
      %v359 = vsel %vm357, %v344, 0
      %361 = vmatprep.subr.bf16.mxu0 0
      %362 = vmatpush1.bf16.msra.mxu0 %v353
      %363 = vmatprep.subr.bf16.mxu0 0
      %364 = vmatpush1.bf16.msra.mxu0 %v354
      %365 = vmatprep.subr.bf16.mxu0 0
      %366 = vmatpush1.bf16.msra.mxu0 0
      %367 = vmatprep.subr.bf16.mxu0 0
      %368 = vmatpush1.bf16.msra.mxu0 0
      %369 = vmatprep.subr.bf16.mxu0 0
      %370 = vmatpush1.bf16.msra.mxu0 0
      %371 = vmatprep.subr.bf16.mxu0 0
      %372 = vmatpush1.bf16.msra.mxu0 0
      %373 = vmatprep.subr.bf16.mxu0 0
      %374 = vmatpush1.bf16.msra.mxu0 0
      %375 = vmatprep.subr.bf16.mxu0 0
      %376 = vmatpush1.bf16.msra.mxu0 0
      %377 = vmatprep.subr.bf16.mxu0 0
      %378 = vmatpush1.bf16.msra.mxu0 0
      %379 = vmatprep.subr.bf16.mxu0 0
      %380 = vmatpush1.bf16.msra.mxu0 0
      %381 = vmatprep.subr.bf16.mxu0 0
      %382 = vmatpush1.bf16.msra.mxu0 0
      %383 = vmatprep.subr.bf16.mxu0 0
      %384 = vmatpush1.bf16.msra.mxu0 0
      %385 = vmatprep.subr.bf16.mxu0 0
      %386 = vmatpush1.bf16.msra.mxu0 0
      %387 = vmatprep.subr.bf16.mxu0 0
      %388 = vmatpush1.bf16.msra.mxu0 0
      %389 = vmatprep.subr.bf16.mxu0 0
      %390 = vmatpush1.bf16.msra.mxu0 0
      %391 = vmatprep.subr.bf16.mxu0 0
      %392 = vmatpush1.bf16.msra.mxu0 0
      %393 = vmatprep.mubr.bf16.mxu0 0
      %394 = vmatmul.mubr.bf16.gmra.mrb[0].mxu0 %v359
      %v395 = vpop.f32.mrb[0].mxu0
      %v396 = vadd.f32 0.0, %v395
      %v397 = vpop.f32.mrb[0].mxu0
      %v398 = vpop.f32.mrb[0].mxu0
      %v399 = vpop.f32.mrb[0].mxu0
      %400 = vdwg.mxu0
      %v405 = vunpack.c.l.b16 %v328
      %v406 = vunpack.c.l.b16 %v329
      %v407 = vunpack.c.l.b16 %v330
      %v408 = vunpack.c.l.b16 %v331
      %v409 = vpack.c.b16 %v406, %v405
      %v410 = vpack.c.b16 %v408, %v407
      %v413 = vsel %vm357, %v332, 0
      %415 = vmatprep.subr.bf16.mxu0 0
      %416 = vmatpush1.bf16.msra.mxu0 %v409
      %417 = vmatprep.subr.bf16.mxu0 0
      %418 = vmatpush1.bf16.msra.mxu0 %v410
      %419 = vmatprep.subr.bf16.mxu0 0
      %420 = vmatpush1.bf16.msra.mxu0 0
      %421 = vmatprep.subr.bf16.mxu0 0
      %422 = vmatpush1.bf16.msra.mxu0 0
      %423 = vmatprep.subr.bf16.mxu0 0
      %424 = vmatpush1.bf16.msra.mxu0 0
      %425 = vmatprep.subr.bf16.mxu0 0
      %426 = vmatpush1.bf16.msra.mxu0 0
      %427 = vmatprep.subr.bf16.mxu0 0
      %428 = vmatpush1.bf16.msra.mxu0 0
      %429 = vmatprep.subr.bf16.mxu0 0
      %430 = vmatpush1.bf16.msra.mxu0 0
      %431 = vmatprep.subr.bf16.mxu0 0
      %432 = vmatpush1.bf16.msra.mxu0 0
      %433 = vmatprep.subr.bf16.mxu0 0
      %434 = vmatpush1.bf16.msra.mxu0 0
      %435 = vmatprep.subr.bf16.mxu0 0
      %436 = vmatpush1.bf16.msra.mxu0 0
      %437 = vmatprep.subr.bf16.mxu0 0
      %438 = vmatpush1.bf16.msra.mxu0 0
      %439 = vmatprep.subr.bf16.mxu0 0
      %440 = vmatpush1.bf16.msra.mxu0 0
      %441 = vmatprep.subr.bf16.mxu0 0
      %442 = vmatpush1.bf16.msra.mxu0 0
      %443 = vmatprep.subr.bf16.mxu0 0
      %444 = vmatpush1.bf16.msra.mxu0 0
      %445 = vmatprep.subr.bf16.mxu0 0
      %446 = vmatpush1.bf16.msra.mxu0 0
      %447 = vmatprep.mubr.bf16.mxu0 0
      %448 = vmatmul.mubr.bf16.gmra.mrb[0].mxu0 %v413
      %v449 = vpop.f32.mrb[0].mxu0
      %v450 = vadd.f32 %v396, %v449
      %v451 = vpop.f32.mrb[0].mxu0
      %v452 = vpop.f32.mrb[0].mxu0
      %v453 = vpop.f32.mrb[0].mxu0
      %454 = vdwg.mxu0
      %s455 = scalar_lea.vmem %s308, 32
      %v456 = vld [vmem:[%s455] sm:$0xf]
      %v457 = vld [vmem:[%s455 + $0x4] sm:$0xf]
      %v458 = vld [vmem:[%s455 + $0x8] sm:$0xf]
      %v459 = vld [vmem:[%s455 + $0xc] sm:$0xf]
      %v460 = vpack.c.bf16 %v325, %v325
      %v465 = vunpack.c.l.b16 %v456
      %v466 = vunpack.c.l.b16 %v457
      %v467 = vunpack.c.l.b16 %v458
      %v468 = vunpack.c.l.b16 %v459
      %v469 = vpack.c.b16 %v466, %v465
      %v470 = vpack.c.b16 %v468, %v467
      %v474 = vsel %vm357, %v460, 0
      %476 = vmatprep.subr.bf16.mxu0 0
      %477 = vmatpush1.bf16.msra.mxu0 %v469
      %478 = vmatprep.subr.bf16.mxu0 0
      %479 = vmatpush1.bf16.msra.mxu0 %v470
      %480 = vmatprep.subr.bf16.mxu0 0
      %481 = vmatpush1.bf16.msra.mxu0 0
      %482 = vmatprep.subr.bf16.mxu0 0
      %483 = vmatpush1.bf16.msra.mxu0 0
      %484 = vmatprep.subr.bf16.mxu0 0
      %485 = vmatpush1.bf16.msra.mxu0 0
      %486 = vmatprep.subr.bf16.mxu0 0
      %487 = vmatpush1.bf16.msra.mxu0 0
      %488 = vmatprep.subr.bf16.mxu0 0
      %489 = vmatpush1.bf16.msra.mxu0 0
      %490 = vmatprep.subr.bf16.mxu0 0
      %491 = vmatpush1.bf16.msra.mxu0 0
      %492 = vmatprep.subr.bf16.mxu0 0
      %493 = vmatpush1.bf16.msra.mxu0 0
      %494 = vmatprep.subr.bf16.mxu0 0
      %495 = vmatpush1.bf16.msra.mxu0 0
      %496 = vmatprep.subr.bf16.mxu0 0
      %497 = vmatpush1.bf16.msra.mxu0 0
      %498 = vmatprep.subr.bf16.mxu0 0
      %499 = vmatpush1.bf16.msra.mxu0 0
      %500 = vmatprep.subr.bf16.mxu0 0
      %501 = vmatpush1.bf16.msra.mxu0 0
      %502 = vmatprep.subr.bf16.mxu0 0
      %503 = vmatpush1.bf16.msra.mxu0 0
      %504 = vmatprep.subr.bf16.mxu0 0
      %505 = vmatpush1.bf16.msra.mxu0 0
      %506 = vmatprep.subr.bf16.mxu0 0
      %507 = vmatpush1.bf16.msra.mxu0 0
      %508 = vmatprep.mubr.bf16.mxu0 0
      %509 = vmatmul.mubr.bf16.gmra.mrb[0].mxu0 %v474
      %v510 = vpop.f32.mrb[0].mxu0
      %v511 = vadd.f32 0.0, %v510
      %v512 = vpop.f32.mrb[0].mxu0
      %v513 = vpop.f32.mrb[0].mxu0
      %v514 = vpop.f32.mrb[0].mxu0
      %515 = vdwg.mxu0
      %v516 = vadd.f32 %v450, %v511
      %s517 = scalar_lea.vmem %s308, 48
      %v518 = vld [vmem:[%s517] sm:$0xf]
      %v519 = vld [vmem:[%s517 + $0x4] sm:$0xf]
      %v520 = vld [vmem:[%s517 + $0x8] sm:$0xf]
      %v521 = vld [vmem:[%s517 + $0xc] sm:$0xf]
      %v522 = vshrl.u32 %v460, 16
      %v524 = vshll.u32 %v460, 16
      %v526 = vrot.slane %v524, 1
      %v527 = vor.u32 %v522, %v526
      %v532 = vunpack.c.l.b16 %v518
      %v533 = vunpack.c.l.b16 %v519
      %v534 = vunpack.c.l.b16 %v520
      %v535 = vunpack.c.l.b16 %v521
      %v536 = vpack.c.b16 %v533, %v532
      %v537 = vpack.c.b16 %v535, %v534
      %v541 = vsel %vm357, %v527, 0
      %543 = vmatprep.subr.bf16.mxu0 0
      %544 = vmatpush1.bf16.msra.mxu0 %v536
      %545 = vmatprep.subr.bf16.mxu0 0
      %546 = vmatpush1.bf16.msra.mxu0 %v537
      %547 = vmatprep.subr.bf16.mxu0 0
      %548 = vmatpush1.bf16.msra.mxu0 0
      %549 = vmatprep.subr.bf16.mxu0 0
      %550 = vmatpush1.bf16.msra.mxu0 0
      %551 = vmatprep.subr.bf16.mxu0 0
      %552 = vmatpush1.bf16.msra.mxu0 0
      %553 = vmatprep.subr.bf16.mxu0 0
      %554 = vmatpush1.bf16.msra.mxu0 0
      %555 = vmatprep.subr.bf16.mxu0 0
      %556 = vmatpush1.bf16.msra.mxu0 0
      %557 = vmatprep.subr.bf16.mxu0 0
      %558 = vmatpush1.bf16.msra.mxu0 0
      %559 = vmatprep.subr.bf16.mxu0 0
      %560 = vmatpush1.bf16.msra.mxu0 0
      %561 = vmatprep.subr.bf16.mxu0 0
      %562 = vmatpush1.bf16.msra.mxu0 0
      %563 = vmatprep.subr.bf16.mxu0 0
      %564 = vmatpush1.bf16.msra.mxu0 0
      %565 = vmatprep.subr.bf16.mxu0 0
      %566 = vmatpush1.bf16.msra.mxu0 0
      %567 = vmatprep.subr.bf16.mxu0 0
      %568 = vmatpush1.bf16.msra.mxu0 0
      %569 = vmatprep.subr.bf16.mxu0 0
      %570 = vmatpush1.bf16.msra.mxu0 0
      %571 = vmatprep.subr.bf16.mxu0 0
      %572 = vmatpush1.bf16.msra.mxu0 0
      %573 = vmatprep.subr.bf16.mxu0 0
      %574 = vmatpush1.bf16.msra.mxu0 0
      %575 = vmatprep.mubr.bf16.mxu0 0
      %576 = vmatmul.mubr.bf16.gmra.mrb[0].mxu0 %v541
      %v577 = vpop.f32.mrb[0].mxu0
      %v578 = vadd.f32 0.0, %v577
      %v579 = vpop.f32.mrb[0].mxu0
      %v580 = vpop.f32.mrb[0].mxu0
      %v581 = vpop.f32.mrb[0].mxu0
      %582 = vdwg.mxu0
      %v583 = vadd.f32 %v516, %v578
      %s584 = scalar_lea.vmem %s308, 64
      %v585 = vld [vmem:[%s584] sm:$0xf]
      %v586 = vld [vmem:[%s584 + $0x4] sm:$0xf]
      %v587 = vld [vmem:[%s584 + $0x8] sm:$0xf]
      %v588 = vld [vmem:[%s584 + $0xc] sm:$0xf]
      %v589 = vpack.c.bf16 %v326, %v326
      %v594 = vunpack.c.l.b16 %v585
      %v595 = vunpack.c.l.b16 %v586
      %v596 = vunpack.c.l.b16 %v587
      %v597 = vunpack.c.l.b16 %v588
      %v598 = vpack.c.b16 %v595, %v594
      %v599 = vpack.c.b16 %v597, %v596
      %v603 = vsel %vm357, %v589, 0
      %605 = vmatprep.subr.bf16.mxu0 0
      %606 = vmatpush1.bf16.msra.mxu0 %v598
      %607 = vmatprep.subr.bf16.mxu0 0
      %608 = vmatpush1.bf16.msra.mxu0 %v599
      %609 = vmatprep.subr.bf16.mxu0 0
      %610 = vmatpush1.bf16.msra.mxu0 0
      %611 = vmatprep.subr.bf16.mxu0 0
      %612 = vmatpush1.bf16.msra.mxu0 0
      %613 = vmatprep.subr.bf16.mxu0 0
      %614 = vmatpush1.bf16.msra.mxu0 0
      %615 = vmatprep.subr.bf16.mxu0 0
      %616 = vmatpush1.bf16.msra.mxu0 0
      %617 = vmatprep.subr.bf16.mxu0 0
      %618 = vmatpush1.bf16.msra.mxu0 0
      %619 = vmatprep.subr.bf16.mxu0 0
      %620 = vmatpush1.bf16.msra.mxu0 0
      %621 = vmatprep.subr.bf16.mxu0 0
      %622 = vmatpush1.bf16.msra.mxu0 0
      %623 = vmatprep.subr.bf16.mxu0 0
      %624 = vmatpush1.bf16.msra.mxu0 0
      %625 = vmatprep.subr.bf16.mxu0 0
      %626 = vmatpush1.bf16.msra.mxu0 0
      %627 = vmatprep.subr.bf16.mxu0 0
      %628 = vmatpush1.bf16.msra.mxu0 0
      %629 = vmatprep.subr.bf16.mxu0 0
      %630 = vmatpush1.bf16.msra.mxu0 0
      %631 = vmatprep.subr.bf16.mxu0 0
      %632 = vmatpush1.bf16.msra.mxu0 0
      %633 = vmatprep.subr.bf16.mxu0 0
      %634 = vmatpush1.bf16.msra.mxu0 0
      %635 = vmatprep.subr.bf16.mxu0 0
      %636 = vmatpush1.bf16.msra.mxu0 0
      %637 = vmatprep.mubr.bf16.mxu0 0
      %638 = vmatmul.mubr.bf16.gmra.mrb[0].mxu0 %v603
      %v639 = vpop.f32.mrb[0].mxu0
      %v640 = vadd.f32 0.0, %v639
      %v641 = vpop.f32.mrb[0].mxu0
      %v642 = vpop.f32.mrb[0].mxu0
      %v643 = vpop.f32.mrb[0].mxu0
      %644 = vdwg.mxu0
      %v645 = vadd.f32 %v583, %v640
      %s646 = scalar_lea.vmem %s308, 80
      %v647 = vld [vmem:[%s646] sm:$0xf]
      %v648 = vld [vmem:[%s646 + $0x4] sm:$0xf]
      %v649 = vld [vmem:[%s646 + $0x8] sm:$0xf]
      %v650 = vld [vmem:[%s646 + $0xc] sm:$0xf]
      %v651 = vshrl.u32 %v589, 16
      %v653 = vshll.u32 %v589, 16
      %v655 = vrot.slane %v653, 1
      %v656 = vor.u32 %v651, %v655
      %v661 = vunpack.c.l.b16 %v647
      %v662 = vunpack.c.l.b16 %v648
      %v663 = vunpack.c.l.b16 %v649
      %v664 = vunpack.c.l.b16 %v650
      %v665 = vpack.c.b16 %v662, %v661
      %v666 = vpack.c.b16 %v664, %v663
      %v670 = vsel %vm357, %v656, 0
      %672 = vmatprep.subr.bf16.mxu0 0
      %673 = vmatpush1.bf16.msra.mxu0 %v665
      %674 = vmatprep.subr.bf16.mxu0 0
      %675 = vmatpush1.bf16.msra.mxu0 %v666
      %676 = vmatprep.subr.bf16.mxu0 0
      %677 = vmatpush1.bf16.msra.mxu0 0
      %678 = vmatprep.subr.bf16.mxu0 0
      %679 = vmatpush1.bf16.msra.mxu0 0
      %680 = vmatprep.subr.bf16.mxu0 0
      %681 = vmatpush1.bf16.msra.mxu0 0
      %682 = vmatprep.subr.bf16.mxu0 0
      %683 = vmatpush1.bf16.msra.mxu0 0
      %684 = vmatprep.subr.bf16.mxu0 0
      %685 = vmatpush1.bf16.msra.mxu0 0
      %686 = vmatprep.subr.bf16.mxu0 0
      %687 = vmatpush1.bf16.msra.mxu0 0
      %688 = vmatprep.subr.bf16.mxu0 0
      %689 = vmatpush1.bf16.msra.mxu0 0
      %690 = vmatprep.subr.bf16.mxu0 0
      %691 = vmatpush1.bf16.msra.mxu0 0
      %692 = vmatprep.subr.bf16.mxu0 0
      %693 = vmatpush1.bf16.msra.mxu0 0
      %694 = vmatprep.subr.bf16.mxu0 0
      %695 = vmatpush1.bf16.msra.mxu0 0
      %696 = vmatprep.subr.bf16.mxu0 0
      %697 = vmatpush1.bf16.msra.mxu0 0
      %698 = vmatprep.subr.bf16.mxu0 0
      %699 = vmatpush1.bf16.msra.mxu0 0
      %700 = vmatprep.subr.bf16.mxu0 0
      %701 = vmatpush1.bf16.msra.mxu0 0
      %702 = vmatprep.subr.bf16.mxu0 0
      %703 = vmatpush1.bf16.msra.mxu0 0
      %704 = vmatprep.mubr.bf16.mxu0 0
      %705 = vmatmul.mubr.bf16.gmra.mrb[0].mxu0 %v670
      %v706 = vpop.f32.mrb[0].mxu0
      %v707 = vadd.f32 0.0, %v706
      %v708 = vpop.f32.mrb[0].mxu0
      %v709 = vpop.f32.mrb[0].mxu0
      %v710 = vpop.f32.mrb[0].mxu0
      %711 = vdwg.mxu0
      %v712 = vadd.f32 %v645, %v707
      %s713 = scalar_lea.vmem %s308, 96
      %v714 = vld [vmem:[%s713] sm:$0xf]
      %v715 = vld [vmem:[%s713 + $0x4] sm:$0xf]
      %v716 = vld [vmem:[%s713 + $0x8] sm:$0xf]
      %v717 = vld [vmem:[%s713 + $0xc] sm:$0xf]
      %v718 = vpack.c.bf16 %v327, %v327
      %v723 = vunpack.c.l.b16 %v714
      %v724 = vunpack.c.l.b16 %v715
      %v725 = vunpack.c.l.b16 %v716
      %v726 = vunpack.c.l.b16 %v717
      %v727 = vpack.c.b16 %v724, %v723
      %v728 = vpack.c.b16 %v726, %v725
      %v732 = vsel %vm357, %v718, 0
      %734 = vmatprep.subr.bf16.mxu0 0
      %735 = vmatpush1.bf16.msra.mxu0 %v727
      %736 = vmatprep.subr.bf16.mxu0 0
      %737 = vmatpush1.bf16.msra.mxu0 %v728
      %738 = vmatprep.subr.bf16.mxu0 0
      %739 = vmatpush1.bf16.msra.mxu0 0
      %740 = vmatprep.subr.bf16.mxu0 0
      %741 = vmatpush1.bf16.msra.mxu0 0
      %742 = vmatprep.subr.bf16.mxu0 0
      %743 = vmatpush1.bf16.msra.mxu0 0
      %744 = vmatprep.subr.bf16.mxu0 0
      %745 = vmatpush1.bf16.msra.mxu0 0
      %746 = vmatprep.subr.bf16.mxu0 0
      %747 = vmatpush1.bf16.msra.mxu0 0
      %748 = vmatprep.subr.bf16.mxu0 0
      %749 = vmatpush1.bf16.msra.mxu0 0
      %750 = vmatprep.subr.bf16.mxu0 0
      %751 = vmatpush1.bf16.msra.mxu0 0
      %752 = vmatprep.subr.bf16.mxu0 0
      %753 = vmatpush1.bf16.msra.mxu0 0
      %754 = vmatprep.subr.bf16.mxu0 0
      %755 = vmatpush1.bf16.msra.mxu0 0
      %756 = vmatprep.subr.bf16.mxu0 0
      %757 = vmatpush1.bf16.msra.mxu0 0
      %758 = vmatprep.subr.bf16.mxu0 0
      %759 = vmatpush1.bf16.msra.mxu0 0
      %760 = vmatprep.subr.bf16.mxu0 0
      %761 = vmatpush1.bf16.msra.mxu0 0
      %762 = vmatprep.subr.bf16.mxu0 0
      %763 = vmatpush1.bf16.msra.mxu0 0
      %764 = vmatprep.subr.bf16.mxu0 0
      %765 = vmatpush1.bf16.msra.mxu0 0
      %766 = vmatprep.mubr.bf16.mxu0 0
      %767 = vmatmul.mubr.bf16.gmra.mrb[0].mxu0 %v732
      %v768 = vpop.f32.mrb[0].mxu0
      %v769 = vadd.f32 0.0, %v768
      %v770 = vpop.f32.mrb[0].mxu0
      %v771 = vpop.f32.mrb[0].mxu0
      %v772 = vpop.f32.mrb[0].mxu0
      %773 = vdwg.mxu0
      %v774 = vadd.f32 %v712, %v769
      %s775 = scalar_lea.vmem %s308, 112
      %v776 = vld [vmem:[%s775] sm:$0xf]
      %v777 = vld [vmem:[%s775 + $0x4] sm:$0xf]
      %v778 = vld [vmem:[%s775 + $0x8] sm:$0xf]
      %v779 = vld [vmem:[%s775 + $0xc] sm:$0xf]
      %v780 = vshrl.u32 %v718, 16
      %v782 = vshll.u32 %v718, 16
      %v784 = vrot.slane %v782, 1
      %v785 = vor.u32 %v780, %v784
      %v790 = vunpack.c.l.b16 %v776
      %v791 = vunpack.c.l.b16 %v777
      %v792 = vunpack.c.l.b16 %v778
      %v793 = vunpack.c.l.b16 %v779
      %v794 = vpack.c.b16 %v791, %v790
      %v795 = vpack.c.b16 %v793, %v792
      %v799 = vsel %vm357, %v785, 0
      %801 = vmatprep.subr.bf16.mxu0 0
      %802 = vmatpush1.bf16.msra.mxu0 %v794
      %803 = vmatprep.subr.bf16.mxu0 0
      %804 = vmatpush1.bf16.msra.mxu0 %v795
      %805 = vmatprep.subr.bf16.mxu0 0
      %806 = vmatpush1.bf16.msra.mxu0 0
      %807 = vmatprep.subr.bf16.mxu0 0
      %808 = vmatpush1.bf16.msra.mxu0 0
      %809 = vmatprep.subr.bf16.mxu0 0
      %810 = vmatpush1.bf16.msra.mxu0 0
      %811 = vmatprep.subr.bf16.mxu0 0
      %812 = vmatpush1.bf16.msra.mxu0 0
      %813 = vmatprep.subr.bf16.mxu0 0
      %814 = vmatpush1.bf16.msra.mxu0 0
      %815 = vmatprep.subr.bf16.mxu0 0
      %816 = vmatpush1.bf16.msra.mxu0 0
      %817 = vmatprep.subr.bf16.mxu0 0
      %818 = vmatpush1.bf16.msra.mxu0 0
      %819 = vmatprep.subr.bf16.mxu0 0
      %820 = vmatpush1.bf16.msra.mxu0 0
      %821 = vmatprep.subr.bf16.mxu0 0
      %822 = vmatpush1.bf16.msra.mxu0 0
      %823 = vmatprep.subr.bf16.mxu0 0
      %824 = vmatpush1.bf16.msra.mxu0 0
      %825 = vmatprep.subr.bf16.mxu0 0
      %826 = vmatpush1.bf16.msra.mxu0 0
      %827 = vmatprep.subr.bf16.mxu0 0
      %828 = vmatpush1.bf16.msra.mxu0 0
      %829 = vmatprep.subr.bf16.mxu0 0
      %830 = vmatpush1.bf16.msra.mxu0 0
      %831 = vmatprep.subr.bf16.mxu0 0
      %832 = vmatpush1.bf16.msra.mxu0 0
      %833 = vmatprep.mubr.bf16.mxu0 0
      %834 = vmatmul.mubr.bf16.gmra.mrb[0].mxu0 %v799
      %v835 = vpop.f32.mrb[0].mxu0
      %v836 = vadd.f32 0.0, %v835
      %v837 = vpop.f32.mrb[0].mxu0
      %v838 = vpop.f32.mrb[0].mxu0
      %v839 = vpop.f32.mrb[0].mxu0
      %840 = vdwg.mxu0
      %v841 = vadd.f32 %v774, %v836
      %v842 = vld [vmem:[%s311] sm:$0x1]
      %v844 = vlaneseq
      %v845 = vshrl.u32 %v844, 7
      %v846 = vsub.s32 0, %v845
      %v847 = vrot.slane %v842, %v846
      %v849 = vadd.f32 %v841, %v847
      %850 = vst [vmem:[%s322] sm:$0xf] %v849
      %p851 = scmp.lt.s32.totalorder %s20, 1
      %s852 = scalar_select %p851, %s20, 1
      %p853 = scmp.lt.s32.totalorder %s21, 3
      %s854 = scalar_select %p853, %s21, 3
      %p855 = scmp.lt.s32.totalorder %s22, 0
      %s856 = scalar_select %p855, %s22, 0
      %s857 = sadd.s32 %s856, %s854
      %s858 = smul.addr %s852, 4
      %s859 = sadd.s32 %s857, %s858
      %s860 = smul.addr %s859, 4
      %s861 = scalar_lea.vmem %s4, %s860
      // Predicated region
      $region37: #{image_encoder_forward.7} parent=35 // pred_check
        %p862 = pneg %p166
      $region38: #{image_encoder_forward.7} parent=35 // pred_check_branch
        %864 = sbr.rel (%p862) target = $region40
      $region39: #{image_encoder_forward.7} parent=35 // pred_region
        _
      $region40: #{image_encoder_forward.7} parent=35 // pred_fallthru
        _
    $region36: #{image_encoder_forward.7} parent=5 // pred_fallthru
      _
    %p865 = scmp.le.s32.totalorder 2, %s10
    // Predicated region
    $region41: #{image_encoder_forward.7} parent=5 // pred_check
      %p866 = pneg %p865
    $region42: #{image_encoder_forward.7} parent=5 // pred_check_branch
      %868 = sbr.rel (%p866) target = $region44
    $region43: #{image_encoder_forward.7} parent=5 // pred_region
      %s869 = ssub.s32 %s10, 2
      // Predicated region
      $region45: #{image_encoder_forward.7} parent=43 // pred_check
        %p870 = pneg %p172
      $region46: #{image_encoder_forward.7} parent=43 // pred_check_branch
        %872 = sbr.rel (%p870) target = $region48
      $region47: #{image_encoder_forward.7} parent=43 // pred_region
        %p873 = scmp.lt.s32.totalorder %s23, 1
        %s874 = scalar_select %p873, %s23, 1
        %p875 = scmp.lt.s32.totalorder %s24, 3
        %s876 = scalar_select %p875, %s24, 3
        %p877 = scmp.lt.s32.totalorder %s25, 0
        %s878 = scalar_select %p877, %s25, 0
        %s879 = sadd.s32 %s878, %s876
        %s880 = smul.addr %s874, 4
        %s881 = sadd.s32 %s879, %s880
        %s882 = smul.addr %s881, 4
        %s883 = scalar_lea.vmem %s4, %s882
      $region48: #{image_encoder_forward.7} parent=43 // pred_fallthru
        _
    $region44: #{image_encoder_forward.7} parent=5 // pred_fallthru
      _
  $region6: #{image_encoder_forward.7} parent=0 // loop_footer
    %s14 = sadd.s32 1, %s10
  $region7: #{image_encoder_forward.7} parent=0 // loop_footer_branch
    %9 = sbr.rel target = $region3
  $region8: #{image_encoder_forward.7} parent=0 // loop_exit
    _

// kernel: image_encoder_forward.8
$region0: #{image_encoder_forward.8}
  #allocation0 [shape = 'u32[]', space=smem, size = 0x4, offset = 0x4, fixed_abs, tag = 'smem constant byte address 0x4 - core index']
  #allocation1 [shape = 'u32[144,128]{1,0:T(1,128)}', space=vmem, size = 0x12000, scoped, tag = 'internal scratch']
  %s0 = inlined_call_operand.vmem [shape: f32[2,6,3,64], index: 0, kind: input, shape index: {}, may-alias: {0,1}]
  %s1 = inlined_call_operand.vmem [shape: f32[2,6,3,64], index: 1, kind: input, shape index: {}, may-alias: {0,1}]
  %s2 = inlined_call_operand.vmem [shape: bf16[4,2,64,128], index: 2, kind: input, shape index: {}]
  %s3 = inlined_call_operand.vmem [shape: f32[1,128], index: 3, kind: input, shape index: {}]
  %s4 = inlined_call_operand.vmem [shape: f32[2,2,2,128], index: 4, kind: output, shape index: {}]
  %s5 = sld [smem:[#allocation0]]
  $region49: #{image_encoder_forward.8} parent=0
    _
  %s7 = ssub.s32 1, %s5
  %s8 = scalar_select 0, %s7, %s5
  loop: start=0, step=1, limit=6
  $region2: #{image_encoder_forward.8} parent=0 // loop_pre_header
    _
  $region3: #{image_encoder_forward.8} parent=0 // loop_header
    %s10 = sphi 0, %s14
    %p11 = scmp.ge.s32.totalorder %s10, 6
    %s17 = sphi 0, %s36
    %s18 = sphi 0, %s32
    %s19 = sphi 0, %s28
    %s20 = sphi 0, %s17
    %s21 = sphi 0, %s18
    %s22 = sphi 0, %s19
    %s23 = sphi 0, %s20
    %s24 = sphi 0, %s21
    %s25 = sphi 0, %s22
    %s41 = sphi 0, %s43
    %s44 = sphi 0, %s41
    %s45 = sphi 0, %s44
    %s61 = sphi 0, %s45
    %s71 = sphi 0, %s73
    %s74 = sphi 0, %s71
    %s75 = sphi 0, %s74
    %s91 = sphi 0, %s75
    %s97 = sphi 0, %s99
    %s100 = sphi 0, %s97
    %s101 = sphi 0, %s100
    %s117 = sphi 0, %s101
    %s123 = sphi 0, %s125
    %s126 = sphi 0, %s123
    %s127 = sphi 0, %s126
    %s143 = sphi 0, %s127
    %s153 = sphi 0, %s155
    %s156 = sphi 0, %s153
    %s157 = sphi 0, %s156
    %s173 = sphi 0, %s157
  $region4: #{image_encoder_forward.8} parent=0 // loop_header_branch
    %13 = sbr.rel (%p11) target = $region8
  $region5: #{image_encoder_forward.8} parent=0 // loop_body
    %s15 = ssub.s32 %s10, 1
    %s16 = ssub.s32 %s10, 2
    %s26 = sadd.s32 1, %s19
    %p27 = scmp.ge.s32.totalorder %s26, 1
    %s28 = scalar_select %p27, 0, %s26
    %s29 = sadd.s32 1, %s18
    %s30 = scalar_select %p27, %s29, %s18
    %p31 = scmp.ge.s32.totalorder %s30, 2
    %s32 = scalar_select %p31, 0, %s30
    %s33 = sadd.s32 1, %s17
    %s34 = scalar_select %p31, %s33, %s17
    %p35 = scmp.ge.s32.totalorder %s34, 2
    %s36 = scalar_select %p35, 0, %s34
    %s37 = ssub.s32 %s17, %s36
    %s38 = ssub.s32 %s18, %s32
    %s39 = sor.u32 %s37, %s38
    %p40 = scmp.eq.s32.totalorder %s39, 0
    %s42 = sadd.s32 %s41, 1
    %s43 = scalar_select %p40, %s41, %s42
    %p46 = pneg %p40
    %p47 = scmp.eq.s32.totalorder %s10, 3
    %p48 = por %p46, %p47
    %p49 = scmp.ne.s32.totalorder %s41, %s44
    %p50 = scmp.eq.s32.totalorder %s10, 0
    %p51 = por %p49, %p50
    %p52 = scmp.ne.s32.totalorder %s41, %s44
    %p53 = scmp.eq.s32.totalorder %s15, 3
    %p54 = por %p52, %p53
    %p55 = scmp.ne.s32.totalorder %s44, %s45
    %p56 = scmp.eq.s32.totalorder %s15, 0
    %p57 = por %p55, %p56
    %p58 = scmp.ne.s32.totalorder %s44, %s45
    %p59 = scmp.eq.s32.totalorder %s16, 3
    %p60 = por %p58, %p59
    %p62 = scmp.ne.s32.totalorder %s45, %s61
    %p63 = scmp.eq.s32.totalorder %s16, 0
    %p64 = por %p62, %p63
    %s65 = sadd.s32 %s18, 1
    %s66 = sadd.s32 %s32, 1
    %s67 = ssub.s32 %s17, %s36
    %s68 = ssub.s32 %s65, %s66
    %s69 = sor.u32 %s67, %s68
    %p70 = scmp.eq.s32.totalorder %s69, 0
    %s72 = sadd.s32 %s71, 1
    %s73 = scalar_select %p70, %s71, %s72
    %p76 = pneg %p70
    %p77 = scmp.eq.s32.totalorder %s10, 3
    %p78 = por %p76, %p77
    %p79 = scmp.ne.s32.totalorder %s71, %s74
    %p80 = scmp.eq.s32.totalorder %s10, 0
    %p81 = por %p79, %p80
    %p82 = scmp.ne.s32.totalorder %s71, %s74
    %p83 = scmp.eq.s32.totalorder %s15, 3
    %p84 = por %p82, %p83
    %p85 = scmp.ne.s32.totalorder %s74, %s75
    %p86 = scmp.eq.s32.totalorder %s15, 0
    %p87 = por %p85, %p86
    %p88 = scmp.ne.s32.totalorder %s74, %s75
    %p89 = scmp.eq.s32.totalorder %s16, 3
    %p90 = por %p88, %p89
    %p92 = scmp.ne.s32.totalorder %s75, %s91
    %p93 = scmp.eq.s32.totalorder %s16, 0
    %p94 = por %p92, %p93
    %s95 = ssub.s32 %s19, %s28
    %p96 = scmp.eq.s32.totalorder %s95, 0
    %s98 = sadd.s32 %s97, 1
    %s99 = scalar_select %p96, %s97, %s98
    %p102 = pneg %p96
    %p103 = scmp.eq.s32.totalorder %s10, 3
    %p104 = por %p102, %p103
    %p105 = scmp.ne.s32.totalorder %s97, %s100
    %p106 = scmp.eq.s32.totalorder %s10, 0
    %p107 = por %p105, %p106
    %p108 = scmp.ne.s32.totalorder %s97, %s100
    %p109 = scmp.eq.s32.totalorder %s15, 3
    %p110 = por %p108, %p109
    %p111 = scmp.ne.s32.totalorder %s100, %s101
    %p112 = scmp.eq.s32.totalorder %s15, 0
    %p113 = por %p111, %p112
    %p114 = scmp.ne.s32.totalorder %s100, %s101
    %p115 = scmp.eq.s32.totalorder %s16, 3
    %p116 = por %p114, %p115
    %p118 = scmp.ne.s32.totalorder %s101, %s117
    %p119 = scmp.eq.s32.totalorder %s16, 0
    %p120 = por %p118, %p119
    %s121 = ssub.s32 %s19, %s28
    %p122 = scmp.eq.s32.totalorder %s121, 0
    %s124 = sadd.s32 %s123, 1
    %s125 = scalar_select %p122, %s123, %s124
    %p128 = pneg %p122
    %p129 = scmp.eq.s32.totalorder %s10, 3
    %p130 = por %p128, %p129
    %p131 = scmp.ne.s32.totalorder %s123, %s126
    %p132 = scmp.eq.s32.totalorder %s10, 0
    %p133 = por %p131, %p132
    %p134 = scmp.ne.s32.totalorder %s123, %s126
    %p135 = scmp.eq.s32.totalorder %s15, 3
    %p136 = por %p134, %p135
    %p137 = scmp.ne.s32.totalorder %s126, %s127
    %p138 = scmp.eq.s32.totalorder %s15, 0
    %p139 = por %p137, %p138
    %p140 = scmp.ne.s32.totalorder %s126, %s127
    %p141 = scmp.eq.s32.totalorder %s16, 3
    %p142 = por %p140, %p141
    %p144 = scmp.ne.s32.totalorder %s127, %s143
    %p145 = scmp.eq.s32.totalorder %s16, 0
    %p146 = por %p144, %p145
    %s147 = ssub.s32 %s17, %s36
    %s148 = ssub.s32 %s18, %s32
    %s149 = sor.u32 %s147, %s148
    %s150 = ssub.s32 %s19, %s28
    %s151 = sor.u32 %s149, %s150
    %p152 = scmp.eq.s32.totalorder %s151, 0
    %s154 = sadd.s32 %s153, 1
    %s155 = scalar_select %p152, %s153, %s154
    %p158 = pneg %p152
    %p159 = scmp.eq.s32.totalorder %s10, 3
    %p160 = por %p158, %p159
    %p161 = scmp.ne.s32.totalorder %s153, %s156
    %p162 = scmp.eq.s32.totalorder %s10, 0
    %p163 = por %p161, %p162
    %p164 = scmp.ne.s32.totalorder %s153, %s156
    %p165 = scmp.eq.s32.totalorder %s15, 3
    %p166 = por %p164, %p165
    %p167 = scmp.ne.s32.totalorder %s156, %s157
    %p168 = scmp.eq.s32.totalorder %s15, 0
    %p169 = por %p167, %p168
    %p170 = scmp.ne.s32.totalorder %s156, %s157
    %p171 = scmp.eq.s32.totalorder %s16, 3
    %p172 = por %p170, %p171
    %p174 = scmp.ne.s32.totalorder %s157, %s173
    %p175 = scmp.eq.s32.totalorder %s16, 0
    %p176 = por %p174, %p175
    %p177 = scmp.le.s32.totalorder 1, %s10
    %p178 = scmp.lt.s32.totalorder %s10, 5
    %p179 = pnand %p177, %p178
    %p180 = pneg %p179
    // Predicated region
    $region9: #{image_encoder_forward.8} parent=5 // pred_check
      _
    $region10: #{image_encoder_forward.8} parent=5 // pred_check_branch
      %182 = sbr.rel (%p179) target = $region12
    $region11: #{image_encoder_forward.8} parent=5 // pred_region
      %s183 = ssub.s32 %s10, 1
      // Predicated region
      $region13: #{image_encoder_forward.8} parent=11 // pred_check
        %p184 = pneg %p113
      $region14: #{image_encoder_forward.8} parent=11 // pred_check_branch
        %186 = sbr.rel (%p184) target = $region16
      $region15: #{image_encoder_forward.8} parent=11 // pred_region
        %p187 = scmp.lt.s32.totalorder %s22, 0
        %s188 = scalar_select %p187, %s22, 0
        %s189 = smul.addr %s188, 4
        %s190 = scalar_lea.vmem %s2, %s189
      $region16: #{image_encoder_forward.8} parent=11 // pred_fallthru
        _
      // Predicated region
      $region17: #{image_encoder_forward.8} parent=11 // pred_check
        %p191 = pneg %p139
      $region18: #{image_encoder_forward.8} parent=11 // pred_check_branch
        %193 = sbr.rel (%p191) target = $region20
      $region19: #{image_encoder_forward.8} parent=11 // pred_region
        %p194 = scmp.lt.s32.totalorder %s22, 0
        %s195 = scalar_select %p194, %s22, 0
        %s196 = scalar_lea.vmem %s3, %s195
      $region20: #{image_encoder_forward.8} parent=11 // pred_fallthru
        _
    $region12: #{image_encoder_forward.8} parent=5 // pred_fallthru
      _
    %p197 = scmp.lt.s32.totalorder %s10, 4
    // Predicated region
    $region21: #{image_encoder_forward.8} parent=5 // pred_check
      %p198 = pneg %p197
    $region22: #{image_encoder_forward.8} parent=5 // pred_check_branch
      %200 = sbr.rel (%p198) target = $region24
    $region23: #{image_encoder_forward.8} parent=5 // pred_region
      // Predicated region
      $region25: #{image_encoder_forward.8} parent=23 // pred_check
        %p201 = pneg %p51
      $region26: #{image_encoder_forward.8} parent=23 // pred_check_branch
        %203 = sbr.rel (%p201) target = $region28
      $region27: #{image_encoder_forward.8} parent=23 // pred_region
        %s204 = smul.u32 2, %s18
        %p205 = scmp.lt.s32.totalorder %s17, 1
        %s206 = scalar_select %p205, %s17, 1
        %p207 = scmp.lt.s32.totalorder %s204, 5
        %s208 = scalar_select %p207, %s204, 5
        %s209 = smul.addr %s206, 6
        %s210 = sadd.s32 %s208, %s209
        %s211 = smul.addr %s210, 4
        %s212 = scalar_lea.vmem %s0, %s211
        %s213 = smul.u32 2, %s18
      $region28: #{image_encoder_forward.8} parent=23 // pred_fallthru
        _
      // Predicated region
      $region29: #{image_encoder_forward.8} parent=23 // pred_check
        %p214 = pneg %p81
      $region30: #{image_encoder_forward.8} parent=23 // pred_check_branch
        %216 = sbr.rel (%p214) target = $region32
      $region31: #{image_encoder_forward.8} parent=23 // pred_region
        %s217 = sadd.s32 %s18, 1
        %s218 = smul.u32 2, %s217
        %p219 = scmp.lt.s32.totalorder %s17, 1
        %s220 = scalar_select %p219, %s17, 1
        %p221 = scmp.lt.s32.totalorder %s218, 5
        %s222 = scalar_select %p221, %s218, 5
        %s223 = smul.addr %s220, 6
        %s224 = sadd.s32 %s222, %s223
        %s225 = smul.addr %s224, 4
        %s226 = scalar_lea.vmem %s1, %s225
        %s227 = sadd.s32 %s18, 1
        %s228 = smul.u32 2, %s227
      $region32: #{image_encoder_forward.8} parent=23 // pred_fallthru
        _
    $region24: #{image_encoder_forward.8} parent=5 // pred_fallthru
      _
    %p229 = scmp.le.s32.totalorder 1, %s10
    %p230 = scmp.lt.s32.totalorder %s10, 5
    %p231 = pnand %p229, %p230
    %p232 = pneg %p231
    // Predicated region
    $region33: #{image_encoder_forward.8} parent=5 // pred_check
      _
    $region34: #{image_encoder_forward.8} parent=5 // pred_check_branch
      %234 = sbr.rel (%p231) target = $region36
    $region35: #{image_encoder_forward.8} parent=5 // pred_region
      %s235 = ssub.s32 %s10, 1
      %s236 = smul.u32 2, %s21
      %p237 = scmp.lt.s32.totalorder %s20, 1
      %s238 = scalar_select %p237, %s20, 1
      %p239 = scmp.lt.s32.totalorder %s236, 5
      %s240 = scalar_select %p239, %s236, 5
      %s241 = smul.addr %s238, 6
      %s242 = sadd.s32 %s240, %s241
      %s243 = smul.addr %s242, 4
      %s244 = scalar_lea.vmem %s0, %s243
      %p245 = pneg %p57
      %p246 = pneg %p54
      %s247 = sadd.s32 %s21, 1
      %s248 = smul.u32 2, %s247
      %p249 = scmp.lt.s32.totalorder %s20, 1
      %s250 = scalar_select %p249, %s20, 1
      %p251 = scmp.lt.s32.totalorder %s248, 5
      %s252 = scalar_select %p251, %s248, 5
      %s253 = smul.addr %s250, 6
      %s254 = sadd.s32 %s252, %s253
      %s255 = smul.addr %s254, 4
      %s256 = scalar_lea.vmem %s1, %s255
      %p257 = pneg %p87
      %p258 = pneg %p84
      %p259 = scmp.lt.s32.totalorder %s22, 0
      %s260 = scalar_select %p259, %s22, 0
      %s261 = smul.addr %s260, 4
      %s262 = scalar_lea.vmem %s2, %s261
      %p263 = pneg %p113
      %p264 = pneg %p110
      %p265 = scmp.lt.s32.totalorder %s22, 0
      %s266 = scalar_select %p265, %s22, 0
      %s267 = scalar_lea.vmem %s3, %s266
      %p268 = pneg %p139
      %p269 = pneg %p136
      %p270 = pneg %p169
      %p271 = pneg %p166
      %p272 = scmp.lt.s32.totalorder %s20, 1
      %s273 = scalar_select %p272, %s20, 1
      %p274 = scmp.lt.s32.totalorder %s21, 1
      %s275 = scalar_select %p274, %s21, 1
      %p276 = scmp.lt.s32.totalorder %s22, 0
      %s277 = scalar_select %p276, %s22, 0
      %s278 = sadd.s32 %s277, %s275
      %s279 = smul.addr %s273, 2
      %s280 = sadd.s32 %s278, %s279
      %s281 = smul.addr %s280, 2
      %s282 = scalar_lea.vmem %s4, %s281
      %s283 = smul.u32 2, %s21
      %p284 = scmp.lt.s32.totalorder %s20, 1
      %s285 = scalar_select %p284, %s20, 1
      %p286 = scmp.lt.s32.totalorder %s283, 5
      %s287 = scalar_select %p286, %s283, 5
      %s288 = smul.addr %s285, 6
      %s289 = sadd.s32 %s287, %s288
      %s290 = smul.addr %s289, 4
      %s291 = scalar_lea.vmem %s0, %s290
      %s292 = smul.u32 2, %s21
      %s293 = sadd.s32 %s21, 1
      %s294 = smul.u32 2, %s293
      %p295 = scmp.lt.s32.totalorder %s20, 1
      %s296 = scalar_select %p295, %s20, 1
      %p297 = scmp.lt.s32.totalorder %s294, 5
      %s298 = scalar_select %p297, %s294, 5
      %s299 = smul.addr %s296, 6
      %s300 = sadd.s32 %s298, %s299
      %s301 = smul.addr %s300, 4
      %s302 = scalar_lea.vmem %s1, %s301
      %s303 = sadd.s32 %s21, 1
      %s304 = smul.u32 2, %s303
      %p305 = scmp.lt.s32.totalorder %s22, 0
      %s306 = scalar_select %p305, %s22, 0
      %s307 = smul.addr %s306, 4
      %s308 = scalar_lea.vmem %s2, %s307
      %p309 = scmp.lt.s32.totalorder %s22, 0
      %s310 = scalar_select %p309, %s22, 0
      %s311 = scalar_lea.vmem %s3, %s310
      %p312 = scmp.lt.s32.totalorder %s20, 1
      %s313 = scalar_select %p312, %s20, 1
      %p314 = scmp.lt.s32.totalorder %s21, 1
      %s315 = scalar_select %p314, %s21, 1
      %p316 = scmp.lt.s32.totalorder %s22, 0
      %s317 = scalar_select %p316, %s22, 0
      %s318 = sadd.s32 %s317, %s315
      %s319 = smul.addr %s313, 2
      %s320 = sadd.s32 %s318, %s319
      %s321 = smul.addr %s320, 2
      %s322 = scalar_lea.vmem %s4, %s321
      %v324 = vld [vmem:[%s291] sm:$0x7]
      %v325 = vld [vmem:[%s291 + $0x4] sm:$0x7]
      %v326 = vld [vmem:[%s302] sm:$0x7]
      %v327 = vld [vmem:[%s302 + $0x4] sm:$0x7]
      %v328 = vld [vmem:[%s308] sm:$0xf]
      %v329 = vld [vmem:[%s308 + $0x4] sm:$0xf]
      %v330 = vld [vmem:[%s308 + $0x8] sm:$0xf]
      %v331 = vld [vmem:[%s308 + $0xc] sm:$0xf]
      %v332 = vld [vmem:[%s308 + $0x10] sm:$0xf]
      %v333 = vld [vmem:[%s308 + $0x14] sm:$0xf]
      %v334 = vld [vmem:[%s308 + $0x18] sm:$0xf]
      %v335 = vld [vmem:[%s308 + $0x1c] sm:$0xf]
      %v336 = vpack.c.bf16 %v324, %v324
      %s337 = scalar_lea.vmem %s308, 32
      %v338 = vld [vmem:[%s337] sm:$0xf]
      %v339 = vld [vmem:[%s337 + $0x4] sm:$0xf]
      %v340 = vld [vmem:[%s337 + $0x8] sm:$0xf]
      %v341 = vld [vmem:[%s337 + $0xc] sm:$0xf]
      %v342 = vld [vmem:[%s337 + $0x10] sm:$0xf]
      %v343 = vld [vmem:[%s337 + $0x14] sm:$0xf]
      %v344 = vld [vmem:[%s337 + $0x18] sm:$0xf]
      %v345 = vld [vmem:[%s337 + $0x1c] sm:$0xf]
      %v347 = vshrl.u32 %v336, 16
      %v349 = vshll.u32 %v336, 16
      %v351 = vrot.slane %v349, 1
      %v352 = vor.u32 %v347, %v351
      %v361 = vunpack.c.l.b16 %v338
      %v362 = vunpack.c.l.b16 %v339
      %v363 = vunpack.c.l.b16 %v340
      %v364 = vunpack.c.l.b16 %v341
      %v365 = vunpack.c.l.b16 %v342
      %v366 = vunpack.c.l.b16 %v343
      %v367 = vunpack.c.l.b16 %v344
      %v368 = vunpack.c.l.b16 %v345
      %v369 = vpack.c.b16 %v362, %v361
      %v370 = vpack.c.b16 %v364, %v363
      %v371 = vpack.c.b16 %v366, %v365
      %v372 = vpack.c.b16 %v368, %v367
      %vm377 = vcmask 523264
      %v379 = vsel %vm377, %v352, 0
      %381 = vmatprep.subr.bf16.mxu0 0
      %382 = vmatpush1.bf16.msra.mxu0 %v369
      %383 = vmatprep.subr.bf16.mxu0 0
      %384 = vmatpush1.bf16.msra.mxu0 %v370
      %385 = vmatprep.subr.bf16.mxu0 0
      %386 = vmatpush1.bf16.msra.mxu0 %v371
      %387 = vmatprep.subr.bf16.mxu0 0
      %388 = vmatpush1.bf16.msra.mxu0 %v372
      %389 = vmatprep.subr.bf16.mxu0 0
      %390 = vmatpush1.bf16.msra.mxu0 0
      %391 = vmatprep.subr.bf16.mxu0 0
      %392 = vmatpush1.bf16.msra.mxu0 0
      %393 = vmatprep.subr.bf16.mxu0 0
      %394 = vmatpush1.bf16.msra.mxu0 0
      %395 = vmatprep.subr.bf16.mxu0 0
      %396 = vmatpush1.bf16.msra.mxu0 0
      %397 = vmatprep.subr.bf16.mxu0 0
      %398 = vmatpush1.bf16.msra.mxu0 0
      %399 = vmatprep.subr.bf16.mxu0 0
      %400 = vmatpush1.bf16.msra.mxu0 0
      %401 = vmatprep.subr.bf16.mxu0 0
      %402 = vmatpush1.bf16.msra.mxu0 0
      %403 = vmatprep.subr.bf16.mxu0 0
      %404 = vmatpush1.bf16.msra.mxu0 0
      %405 = vmatprep.subr.bf16.mxu0 0
      %406 = vmatpush1.bf16.msra.mxu0 0
      %407 = vmatprep.subr.bf16.mxu0 0
      %408 = vmatpush1.bf16.msra.mxu0 0
      %409 = vmatprep.subr.bf16.mxu0 0
      %410 = vmatpush1.bf16.msra.mxu0 0
      %411 = vmatprep.subr.bf16.mxu0 0
      %412 = vmatpush1.bf16.msra.mxu0 0
      %413 = vmatprep.mubr.bf16.mxu0 0
      %414 = vmatmul.mubr.bf16.gmra.mrb[0].mxu0 %v379
      %v415 = vpop.f32.mrb[0].mxu0
      %v416 = vadd.f32 0.0, %v415
      %v417 = vpop.f32.mrb[0].mxu0
      %v418 = vpop.f32.mrb[0].mxu0
      %v419 = vpop.f32.mrb[0].mxu0
      %420 = vdwg.mxu0
      %v429 = vunpack.c.l.b16 %v328
      %v430 = vunpack.c.l.b16 %v329
      %v431 = vunpack.c.l.b16 %v330
      %v432 = vunpack.c.l.b16 %v331
      %v433 = vunpack.c.l.b16 %v332
      %v434 = vunpack.c.l.b16 %v333
      %v435 = vunpack.c.l.b16 %v334
      %v436 = vunpack.c.l.b16 %v335
      %v437 = vpack.c.b16 %v430, %v429
      %v438 = vpack.c.b16 %v432, %v431
      %v439 = vpack.c.b16 %v434, %v433
      %v440 = vpack.c.b16 %v436, %v435
      %v445 = vsel %vm377, %v336, 0
      %447 = vmatprep.subr.bf16.mxu0 0
      %448 = vmatpush1.bf16.msra.mxu0 %v437
      %449 = vmatprep.subr.bf16.mxu0 0
      %450 = vmatpush1.bf16.msra.mxu0 %v438
      %451 = vmatprep.subr.bf16.mxu0 0
      %452 = vmatpush1.bf16.msra.mxu0 %v439
      %453 = vmatprep.subr.bf16.mxu0 0
      %454 = vmatpush1.bf16.msra.mxu0 %v440
      %455 = vmatprep.subr.bf16.mxu0 0
      %456 = vmatpush1.bf16.msra.mxu0 0
      %457 = vmatprep.subr.bf16.mxu0 0
      %458 = vmatpush1.bf16.msra.mxu0 0
      %459 = vmatprep.subr.bf16.mxu0 0
      %460 = vmatpush1.bf16.msra.mxu0 0
      %461 = vmatprep.subr.bf16.mxu0 0
      %462 = vmatpush1.bf16.msra.mxu0 0
      %463 = vmatprep.subr.bf16.mxu0 0
      %464 = vmatpush1.bf16.msra.mxu0 0
      %465 = vmatprep.subr.bf16.mxu0 0
      %466 = vmatpush1.bf16.msra.mxu0 0
      %467 = vmatprep.subr.bf16.mxu0 0
      %468 = vmatpush1.bf16.msra.mxu0 0
      %469 = vmatprep.subr.bf16.mxu0 0
      %470 = vmatpush1.bf16.msra.mxu0 0
      %471 = vmatprep.subr.bf16.mxu0 0
      %472 = vmatpush1.bf16.msra.mxu0 0
      %473 = vmatprep.subr.bf16.mxu0 0
      %474 = vmatpush1.bf16.msra.mxu0 0
      %475 = vmatprep.subr.bf16.mxu0 0
      %476 = vmatpush1.bf16.msra.mxu0 0
      %477 = vmatprep.subr.bf16.mxu0 0
      %478 = vmatpush1.bf16.msra.mxu0 0
      %479 = vmatprep.mubr.bf16.mxu0 0
      %480 = vmatmul.mubr.bf16.gmra.mrb[0].mxu0 %v445
      %v481 = vpop.f32.mrb[0].mxu0
      %v482 = vadd.f32 %v416, %v481
      %v483 = vpop.f32.mrb[0].mxu0
      %v484 = vpop.f32.mrb[0].mxu0
      %v485 = vpop.f32.mrb[0].mxu0
      %486 = vdwg.mxu0
      %s487 = scalar_lea.vmem %s308, 64
      %v488 = vld [vmem:[%s487] sm:$0xf]
      %v489 = vld [vmem:[%s487 + $0x4] sm:$0xf]
      %v490 = vld [vmem:[%s487 + $0x8] sm:$0xf]
      %v491 = vld [vmem:[%s487 + $0xc] sm:$0xf]
      %v492 = vld [vmem:[%s487 + $0x10] sm:$0xf]
      %v493 = vld [vmem:[%s487 + $0x14] sm:$0xf]
      %v494 = vld [vmem:[%s487 + $0x18] sm:$0xf]
      %v495 = vld [vmem:[%s487 + $0x1c] sm:$0xf]
      %v496 = vpack.c.bf16 %v325, %v325
      %v505 = vunpack.c.l.b16 %v488
      %v506 = vunpack.c.l.b16 %v489
      %v507 = vunpack.c.l.b16 %v490
      %v508 = vunpack.c.l.b16 %v491
      %v509 = vunpack.c.l.b16 %v492
      %v510 = vunpack.c.l.b16 %v493
      %v511 = vunpack.c.l.b16 %v494
      %v512 = vunpack.c.l.b16 %v495
      %v513 = vpack.c.b16 %v506, %v505
      %v514 = vpack.c.b16 %v508, %v507
      %v515 = vpack.c.b16 %v510, %v509
      %v516 = vpack.c.b16 %v512, %v511
      %v522 = vsel %vm377, %v496, 0
      %524 = vmatprep.subr.bf16.mxu0 0
      %525 = vmatpush1.bf16.msra.mxu0 %v513
      %526 = vmatprep.subr.bf16.mxu0 0
      %527 = vmatpush1.bf16.msra.mxu0 %v514
      %528 = vmatprep.subr.bf16.mxu0 0
      %529 = vmatpush1.bf16.msra.mxu0 %v515
      %530 = vmatprep.subr.bf16.mxu0 0
      %531 = vmatpush1.bf16.msra.mxu0 %v516
      %532 = vmatprep.subr.bf16.mxu0 0
      %533 = vmatpush1.bf16.msra.mxu0 0
      %534 = vmatprep.subr.bf16.mxu0 0
      %535 = vmatpush1.bf16.msra.mxu0 0
      %536 = vmatprep.subr.bf16.mxu0 0
      %537 = vmatpush1.bf16.msra.mxu0 0
      %538 = vmatprep.subr.bf16.mxu0 0
      %539 = vmatpush1.bf16.msra.mxu0 0
      %540 = vmatprep.subr.bf16.mxu0 0
      %541 = vmatpush1.bf16.msra.mxu0 0
      %542 = vmatprep.subr.bf16.mxu0 0
      %543 = vmatpush1.bf16.msra.mxu0 0
      %544 = vmatprep.subr.bf16.mxu0 0
      %545 = vmatpush1.bf16.msra.mxu0 0
      %546 = vmatprep.subr.bf16.mxu0 0
      %547 = vmatpush1.bf16.msra.mxu0 0
      %548 = vmatprep.subr.bf16.mxu0 0
      %549 = vmatpush1.bf16.msra.mxu0 0
      %550 = vmatprep.subr.bf16.mxu0 0
      %551 = vmatpush1.bf16.msra.mxu0 0
      %552 = vmatprep.subr.bf16.mxu0 0
      %553 = vmatpush1.bf16.msra.mxu0 0
      %554 = vmatprep.subr.bf16.mxu0 0
      %555 = vmatpush1.bf16.msra.mxu0 0
      %556 = vmatprep.mubr.bf16.mxu0 0
      %557 = vmatmul.mubr.bf16.gmra.mrb[0].mxu0 %v522
      %v558 = vpop.f32.mrb[0].mxu0
      %v559 = vadd.f32 0.0, %v558
      %v560 = vpop.f32.mrb[0].mxu0
      %v561 = vpop.f32.mrb[0].mxu0
      %v562 = vpop.f32.mrb[0].mxu0
      %563 = vdwg.mxu0
      %v564 = vadd.f32 %v482, %v559
      %s565 = scalar_lea.vmem %s308, 96
      %v566 = vld [vmem:[%s565] sm:$0xf]
      %v567 = vld [vmem:[%s565 + $0x4] sm:$0xf]
      %v568 = vld [vmem:[%s565 + $0x8] sm:$0xf]
      %v569 = vld [vmem:[%s565 + $0xc] sm:$0xf]
      %v570 = vld [vmem:[%s565 + $0x10] sm:$0xf]
      %v571 = vld [vmem:[%s565 + $0x14] sm:$0xf]
      %v572 = vld [vmem:[%s565 + $0x18] sm:$0xf]
      %v573 = vld [vmem:[%s565 + $0x1c] sm:$0xf]
      %v574 = vshrl.u32 %v496, 16
      %v576 = vshll.u32 %v496, 16
      %v578 = vrot.slane %v576, 1
      %v579 = vor.u32 %v574, %v578
      %v588 = vunpack.c.l.b16 %v566
      %v589 = vunpack.c.l.b16 %v567
      %v590 = vunpack.c.l.b16 %v568
      %v591 = vunpack.c.l.b16 %v569
      %v592 = vunpack.c.l.b16 %v570
      %v593 = vunpack.c.l.b16 %v571
      %v594 = vunpack.c.l.b16 %v572
      %v595 = vunpack.c.l.b16 %v573
      %v596 = vpack.c.b16 %v589, %v588
      %v597 = vpack.c.b16 %v591, %v590
      %v598 = vpack.c.b16 %v593, %v592
      %v599 = vpack.c.b16 %v595, %v594
      %v605 = vsel %vm377, %v579, 0
      %607 = vmatprep.subr.bf16.mxu0 0
      %608 = vmatpush1.bf16.msra.mxu0 %v596
      %609 = vmatprep.subr.bf16.mxu0 0
      %610 = vmatpush1.bf16.msra.mxu0 %v597
      %611 = vmatprep.subr.bf16.mxu0 0
      %612 = vmatpush1.bf16.msra.mxu0 %v598
      %613 = vmatprep.subr.bf16.mxu0 0
      %614 = vmatpush1.bf16.msra.mxu0 %v599
      %615 = vmatprep.subr.bf16.mxu0 0
      %616 = vmatpush1.bf16.msra.mxu0 0
      %617 = vmatprep.subr.bf16.mxu0 0
      %618 = vmatpush1.bf16.msra.mxu0 0
      %619 = vmatprep.subr.bf16.mxu0 0
      %620 = vmatpush1.bf16.msra.mxu0 0
      %621 = vmatprep.subr.bf16.mxu0 0
      %622 = vmatpush1.bf16.msra.mxu0 0
      %623 = vmatprep.subr.bf16.mxu0 0
      %624 = vmatpush1.bf16.msra.mxu0 0
      %625 = vmatprep.subr.bf16.mxu0 0
      %626 = vmatpush1.bf16.msra.mxu0 0
      %627 = vmatprep.subr.bf16.mxu0 0
      %628 = vmatpush1.bf16.msra.mxu0 0
      %629 = vmatprep.subr.bf16.mxu0 0
      %630 = vmatpush1.bf16.msra.mxu0 0
      %631 = vmatprep.subr.bf16.mxu0 0
      %632 = vmatpush1.bf16.msra.mxu0 0
      %633 = vmatprep.subr.bf16.mxu0 0
      %634 = vmatpush1.bf16.msra.mxu0 0
      %635 = vmatprep.subr.bf16.mxu0 0
      %636 = vmatpush1.bf16.msra.mxu0 0
      %637 = vmatprep.subr.bf16.mxu0 0
      %638 = vmatpush1.bf16.msra.mxu0 0
      %639 = vmatprep.mubr.bf16.mxu0 0
      %640 = vmatmul.mubr.bf16.gmra.mrb[0].mxu0 %v605
      %v641 = vpop.f32.mrb[0].mxu0
      %v642 = vadd.f32 0.0, %v641
      %v643 = vpop.f32.mrb[0].mxu0
      %v644 = vpop.f32.mrb[0].mxu0
      %v645 = vpop.f32.mrb[0].mxu0
      %646 = vdwg.mxu0
      %v647 = vadd.f32 %v564, %v642
      %s648 = scalar_lea.vmem %s308, 128
      %v649 = vld [vmem:[%s648] sm:$0xf]
      %v650 = vld [vmem:[%s648 + $0x4] sm:$0xf]
      %v651 = vld [vmem:[%s648 + $0x8] sm:$0xf]
      %v652 = vld [vmem:[%s648 + $0xc] sm:$0xf]
      %v653 = vld [vmem:[%s648 + $0x10] sm:$0xf]
      %v654 = vld [vmem:[%s648 + $0x14] sm:$0xf]
      %v655 = vld [vmem:[%s648 + $0x18] sm:$0xf]
      %v656 = vld [vmem:[%s648 + $0x1c] sm:$0xf]
      %v657 = vpack.c.bf16 %v326, %v326
      %v666 = vunpack.c.l.b16 %v649
      %v667 = vunpack.c.l.b16 %v650
      %v668 = vunpack.c.l.b16 %v651
      %v669 = vunpack.c.l.b16 %v652
      %v670 = vunpack.c.l.b16 %v653
      %v671 = vunpack.c.l.b16 %v654
      %v672 = vunpack.c.l.b16 %v655
      %v673 = vunpack.c.l.b16 %v656
      %v674 = vpack.c.b16 %v667, %v666
      %v675 = vpack.c.b16 %v669, %v668
      %v676 = vpack.c.b16 %v671, %v670
      %v677 = vpack.c.b16 %v673, %v672
      %v683 = vsel %vm377, %v657, 0
      %685 = vmatprep.subr.bf16.mxu0 0
      %686 = vmatpush1.bf16.msra.mxu0 %v674
      %687 = vmatprep.subr.bf16.mxu0 0
      %688 = vmatpush1.bf16.msra.mxu0 %v675
      %689 = vmatprep.subr.bf16.mxu0 0
      %690 = vmatpush1.bf16.msra.mxu0 %v676
      %691 = vmatprep.subr.bf16.mxu0 0
      %692 = vmatpush1.bf16.msra.mxu0 %v677
      %693 = vmatprep.subr.bf16.mxu0 0
      %694 = vmatpush1.bf16.msra.mxu0 0
      %695 = vmatprep.subr.bf16.mxu0 0
      %696 = vmatpush1.bf16.msra.mxu0 0
      %697 = vmatprep.subr.bf16.mxu0 0
      %698 = vmatpush1.bf16.msra.mxu0 0
      %699 = vmatprep.subr.bf16.mxu0 0
      %700 = vmatpush1.bf16.msra.mxu0 0
      %701 = vmatprep.subr.bf16.mxu0 0
      %702 = vmatpush1.bf16.msra.mxu0 0
      %703 = vmatprep.subr.bf16.mxu0 0
      %704 = vmatpush1.bf16.msra.mxu0 0
      %705 = vmatprep.subr.bf16.mxu0 0
      %706 = vmatpush1.bf16.msra.mxu0 0
      %707 = vmatprep.subr.bf16.mxu0 0
      %708 = vmatpush1.bf16.msra.mxu0 0
      %709 = vmatprep.subr.bf16.mxu0 0
      %710 = vmatpush1.bf16.msra.mxu0 0
      %711 = vmatprep.subr.bf16.mxu0 0
      %712 = vmatpush1.bf16.msra.mxu0 0
      %713 = vmatprep.subr.bf16.mxu0 0
      %714 = vmatpush1.bf16.msra.mxu0 0
      %715 = vmatprep.subr.bf16.mxu0 0
      %716 = vmatpush1.bf16.msra.mxu0 0
      %717 = vmatprep.mubr.bf16.mxu0 0
      %718 = vmatmul.mubr.bf16.gmra.mrb[0].mxu0 %v683
      %v719 = vpop.f32.mrb[0].mxu0
      %v720 = vadd.f32 0.0, %v719
      %v721 = vpop.f32.mrb[0].mxu0
      %v722 = vpop.f32.mrb[0].mxu0
      %v723 = vpop.f32.mrb[0].mxu0
      %724 = vdwg.mxu0
      %v725 = vadd.f32 %v647, %v720
      %s726 = scalar_lea.vmem %s308, 160
      %v727 = vld [vmem:[%s726] sm:$0xf]
      %v728 = vld [vmem:[%s726 + $0x4] sm:$0xf]
      %v729 = vld [vmem:[%s726 + $0x8] sm:$0xf]
      %v730 = vld [vmem:[%s726 + $0xc] sm:$0xf]
      %v731 = vld [vmem:[%s726 + $0x10] sm:$0xf]
      %v732 = vld [vmem:[%s726 + $0x14] sm:$0xf]
      %v733 = vld [vmem:[%s726 + $0x18] sm:$0xf]
      %v734 = vld [vmem:[%s726 + $0x1c] sm:$0xf]
      %v735 = vshrl.u32 %v657, 16
      %v737 = vshll.u32 %v657, 16
      %v739 = vrot.slane %v737, 1
      %v740 = vor.u32 %v735, %v739
      %v749 = vunpack.c.l.b16 %v727
      %v750 = vunpack.c.l.b16 %v728
      %v751 = vunpack.c.l.b16 %v729
      %v752 = vunpack.c.l.b16 %v730
      %v753 = vunpack.c.l.b16 %v731
      %v754 = vunpack.c.l.b16 %v732
      %v755 = vunpack.c.l.b16 %v733
      %v756 = vunpack.c.l.b16 %v734
      %v757 = vpack.c.b16 %v750, %v749
      %v758 = vpack.c.b16 %v752, %v751
      %v759 = vpack.c.b16 %v754, %v753
      %v760 = vpack.c.b16 %v756, %v755
      %v766 = vsel %vm377, %v740, 0
      %768 = vmatprep.subr.bf16.mxu0 0
      %769 = vmatpush1.bf16.msra.mxu0 %v757
      %770 = vmatprep.subr.bf16.mxu0 0
      %771 = vmatpush1.bf16.msra.mxu0 %v758
      %772 = vmatprep.subr.bf16.mxu0 0
      %773 = vmatpush1.bf16.msra.mxu0 %v759
      %774 = vmatprep.subr.bf16.mxu0 0
      %775 = vmatpush1.bf16.msra.mxu0 %v760
      %776 = vmatprep.subr.bf16.mxu0 0
      %777 = vmatpush1.bf16.msra.mxu0 0
      %778 = vmatprep.subr.bf16.mxu0 0
      %779 = vmatpush1.bf16.msra.mxu0 0
      %780 = vmatprep.subr.bf16.mxu0 0
      %781 = vmatpush1.bf16.msra.mxu0 0
      %782 = vmatprep.subr.bf16.mxu0 0
      %783 = vmatpush1.bf16.msra.mxu0 0
      %784 = vmatprep.subr.bf16.mxu0 0
      %785 = vmatpush1.bf16.msra.mxu0 0
      %786 = vmatprep.subr.bf16.mxu0 0
      %787 = vmatpush1.bf16.msra.mxu0 0
      %788 = vmatprep.subr.bf16.mxu0 0
      %789 = vmatpush1.bf16.msra.mxu0 0
      %790 = vmatprep.subr.bf16.mxu0 0
      %791 = vmatpush1.bf16.msra.mxu0 0
      %792 = vmatprep.subr.bf16.mxu0 0
      %793 = vmatpush1.bf16.msra.mxu0 0
      %794 = vmatprep.subr.bf16.mxu0 0
      %795 = vmatpush1.bf16.msra.mxu0 0
      %796 = vmatprep.subr.bf16.mxu0 0
      %797 = vmatpush1.bf16.msra.mxu0 0
      %798 = vmatprep.subr.bf16.mxu0 0
      %799 = vmatpush1.bf16.msra.mxu0 0
      %800 = vmatprep.mubr.bf16.mxu0 0
      %801 = vmatmul.mubr.bf16.gmra.mrb[0].mxu0 %v766
      %v802 = vpop.f32.mrb[0].mxu0
      %v803 = vadd.f32 0.0, %v802
      %v804 = vpop.f32.mrb[0].mxu0
      %v805 = vpop.f32.mrb[0].mxu0
      %v806 = vpop.f32.mrb[0].mxu0
      %807 = vdwg.mxu0
      %v808 = vadd.f32 %v725, %v803
      %s809 = scalar_lea.vmem %s308, 192
      %v810 = vld [vmem:[%s809] sm:$0xf]
      %v811 = vld [vmem:[%s809 + $0x4] sm:$0xf]
      %v812 = vld [vmem:[%s809 + $0x8] sm:$0xf]
      %v813 = vld [vmem:[%s809 + $0xc] sm:$0xf]
      %v814 = vld [vmem:[%s809 + $0x10] sm:$0xf]
      %v815 = vld [vmem:[%s809 + $0x14] sm:$0xf]
      %v816 = vld [vmem:[%s809 + $0x18] sm:$0xf]
      %v817 = vld [vmem:[%s809 + $0x1c] sm:$0xf]
      %v818 = vpack.c.bf16 %v327, %v327
      %v827 = vunpack.c.l.b16 %v810
      %v828 = vunpack.c.l.b16 %v811
      %v829 = vunpack.c.l.b16 %v812
      %v830 = vunpack.c.l.b16 %v813
      %v831 = vunpack.c.l.b16 %v814
      %v832 = vunpack.c.l.b16 %v815
      %v833 = vunpack.c.l.b16 %v816
      %v834 = vunpack.c.l.b16 %v817
      %v835 = vpack.c.b16 %v828, %v827
      %v836 = vpack.c.b16 %v830, %v829
      %v837 = vpack.c.b16 %v832, %v831
      %v838 = vpack.c.b16 %v834, %v833
      %v844 = vsel %vm377, %v818, 0
      %846 = vmatprep.subr.bf16.mxu0 0
      %847 = vmatpush1.bf16.msra.mxu0 %v835
      %848 = vmatprep.subr.bf16.mxu0 0
      %849 = vmatpush1.bf16.msra.mxu0 %v836
      %850 = vmatprep.subr.bf16.mxu0 0
      %851 = vmatpush1.bf16.msra.mxu0 %v837
      %852 = vmatprep.subr.bf16.mxu0 0
      %853 = vmatpush1.bf16.msra.mxu0 %v838
      %854 = vmatprep.subr.bf16.mxu0 0
      %855 = vmatpush1.bf16.msra.mxu0 0
      %856 = vmatprep.subr.bf16.mxu0 0
      %857 = vmatpush1.bf16.msra.mxu0 0
      %858 = vmatprep.subr.bf16.mxu0 0
      %859 = vmatpush1.bf16.msra.mxu0 0
      %860 = vmatprep.subr.bf16.mxu0 0
      %861 = vmatpush1.bf16.msra.mxu0 0
      %862 = vmatprep.subr.bf16.mxu0 0
      %863 = vmatpush1.bf16.msra.mxu0 0
      %864 = vmatprep.subr.bf16.mxu0 0
      %865 = vmatpush1.bf16.msra.mxu0 0
      %866 = vmatprep.subr.bf16.mxu0 0
      %867 = vmatpush1.bf16.msra.mxu0 0
      %868 = vmatprep.subr.bf16.mxu0 0
      %869 = vmatpush1.bf16.msra.mxu0 0
      %870 = vmatprep.subr.bf16.mxu0 0
      %871 = vmatpush1.bf16.msra.mxu0 0
      %872 = vmatprep.subr.bf16.mxu0 0
      %873 = vmatpush1.bf16.msra.mxu0 0
      %874 = vmatprep.subr.bf16.mxu0 0
      %875 = vmatpush1.bf16.msra.mxu0 0
      %876 = vmatprep.subr.bf16.mxu0 0
      %877 = vmatpush1.bf16.msra.mxu0 0
      %878 = vmatprep.mubr.bf16.mxu0 0
      %879 = vmatmul.mubr.bf16.gmra.mrb[0].mxu0 %v844
      %v880 = vpop.f32.mrb[0].mxu0
      %v881 = vadd.f32 0.0, %v880
      %v882 = vpop.f32.mrb[0].mxu0
      %v883 = vpop.f32.mrb[0].mxu0
      %v884 = vpop.f32.mrb[0].mxu0
      %885 = vdwg.mxu0
      %v886 = vadd.f32 %v808, %v881
      %s887 = scalar_lea.vmem %s308, 224
      %v888 = vld [vmem:[%s887] sm:$0xf]
      %v889 = vld [vmem:[%s887 + $0x4] sm:$0xf]
      %v890 = vld [vmem:[%s887 + $0x8] sm:$0xf]
      %v891 = vld [vmem:[%s887 + $0xc] sm:$0xf]
      %v892 = vld [vmem:[%s887 + $0x10] sm:$0xf]
      %v893 = vld [vmem:[%s887 + $0x14] sm:$0xf]
      %v894 = vld [vmem:[%s887 + $0x18] sm:$0xf]
      %v895 = vld [vmem:[%s887 + $0x1c] sm:$0xf]
      %v896 = vshrl.u32 %v818, 16
      %v898 = vshll.u32 %v818, 16
      %v900 = vrot.slane %v898, 1
      %v901 = vor.u32 %v896, %v900
      %v910 = vunpack.c.l.b16 %v888
      %v911 = vunpack.c.l.b16 %v889
      %v912 = vunpack.c.l.b16 %v890
      %v913 = vunpack.c.l.b16 %v891
      %v914 = vunpack.c.l.b16 %v892
      %v915 = vunpack.c.l.b16 %v893
      %v916 = vunpack.c.l.b16 %v894
      %v917 = vunpack.c.l.b16 %v895
      %v918 = vpack.c.b16 %v911, %v910
      %v919 = vpack.c.b16 %v913, %v912
      %v920 = vpack.c.b16 %v915, %v914
      %v921 = vpack.c.b16 %v917, %v916
      %v927 = vsel %vm377, %v901, 0
      %929 = vmatprep.subr.bf16.mxu0 0
      %930 = vmatpush1.bf16.msra.mxu0 %v918
      %931 = vmatprep.subr.bf16.mxu0 0
      %932 = vmatpush1.bf16.msra.mxu0 %v919
      %933 = vmatprep.subr.bf16.mxu0 0
      %934 = vmatpush1.bf16.msra.mxu0 %v920
      %935 = vmatprep.subr.bf16.mxu0 0
      %936 = vmatpush1.bf16.msra.mxu0 %v921
      %937 = vmatprep.subr.bf16.mxu0 0
      %938 = vmatpush1.bf16.msra.mxu0 0
      %939 = vmatprep.subr.bf16.mxu0 0
      %940 = vmatpush1.bf16.msra.mxu0 0
      %941 = vmatprep.subr.bf16.mxu0 0
      %942 = vmatpush1.bf16.msra.mxu0 0
      %943 = vmatprep.subr.bf16.mxu0 0
      %944 = vmatpush1.bf16.msra.mxu0 0
      %945 = vmatprep.subr.bf16.mxu0 0
      %946 = vmatpush1.bf16.msra.mxu0 0
      %947 = vmatprep.subr.bf16.mxu0 0
      %948 = vmatpush1.bf16.msra.mxu0 0
      %949 = vmatprep.subr.bf16.mxu0 0
      %950 = vmatpush1.bf16.msra.mxu0 0
      %951 = vmatprep.subr.bf16.mxu0 0
      %952 = vmatpush1.bf16.msra.mxu0 0
      %953 = vmatprep.subr.bf16.mxu0 0
      %954 = vmatpush1.bf16.msra.mxu0 0
      %955 = vmatprep.subr.bf16.mxu0 0
      %956 = vmatpush1.bf16.msra.mxu0 0
      %957 = vmatprep.subr.bf16.mxu0 0
      %958 = vmatpush1.bf16.msra.mxu0 0
      %959 = vmatprep.subr.bf16.mxu0 0
      %960 = vmatpush1.bf16.msra.mxu0 0
      %961 = vmatprep.mubr.bf16.mxu0 0
      %962 = vmatmul.mubr.bf16.gmra.mrb[0].mxu0 %v927
      %v963 = vpop.f32.mrb[0].mxu0
      %v964 = vadd.f32 0.0, %v963
      %v965 = vpop.f32.mrb[0].mxu0
      %v966 = vpop.f32.mrb[0].mxu0
      %v967 = vpop.f32.mrb[0].mxu0
      %968 = vdwg.mxu0
      %v969 = vadd.f32 %v886, %v964
      %v970 = vld [vmem:[%s311] sm:$0x1]
      %v972 = vlaneseq
      %v973 = vshrl.u32 %v972, 7
      %v974 = vsub.s32 0, %v973
      %v975 = vrot.slane %v970, %v974
      %v977 = vadd.f32 %v969, %v975
      %978 = vst [vmem:[%s322] sm:$0x3] %v977
      %p979 = scmp.lt.s32.totalorder %s20, 1
      %s980 = scalar_select %p979, %s20, 1
      %p981 = scmp.lt.s32.totalorder %s21, 1
      %s982 = scalar_select %p981, %s21, 1
      %p983 = scmp.lt.s32.totalorder %s22, 0
      %s984 = scalar_select %p983, %s22, 0
      %s985 = sadd.s32 %s984, %s982
      %s986 = smul.addr %s980, 2
      %s987 = sadd.s32 %s985, %s986
      %s988 = smul.addr %s987, 2
      %s989 = scalar_lea.vmem %s4, %s988
      // Predicated region
      $region37: #{image_encoder_forward.8} parent=35 // pred_check
        %p990 = pneg %p166
      $region38: #{image_encoder_forward.8} parent=35 // pred_check_branch
        %992 = sbr.rel (%p990) target = $region40
      $region39: #{image_encoder_forward.8} parent=35 // pred_region
        _
      $region40: #{image_encoder_forward.8} parent=35 // pred_fallthru
        _
    $region36: #{image_encoder_forward.8} parent=5 // pred_fallthru
      _
    %p993 = scmp.le.s32.totalorder 2, %s10
    // Predicated region
    $region41: #{image_encoder_forward.8} parent=5 // pred_check
      %p994 = pneg %p993
    $region42: #{image_encoder_forward.8} parent=5 // pred_check_branch
      %996 = sbr.rel (%p994) target = $region44
    $region43: #{image_encoder_forward.8} parent=5 // pred_region
      %s997 = ssub.s32 %s10, 2
      // Predicated region
      $region45: #{image_encoder_forward.8} parent=43 // pred_check
        %p998 = pneg %p172
      $region46: #{image_encoder_forward.8} parent=43 // pred_check_branch
        %1000 = sbr.rel (%p998) target = $region48
      $region47: #{image_encoder_forward.8} parent=43 // pred_region
        %p1001 = scmp.lt.s32.totalorder %s23, 1
        %s1002 = scalar_select %p1001, %s23, 1
        %p1003 = scmp.lt.s32.totalorder %s24, 1
        %s1004 = scalar_select %p1003, %s24, 1
        %p1005 = scmp.lt.s32.totalorder %s25, 0
        %s1006 = scalar_select %p1005, %s25, 0
        %s1007 = sadd.s32 %s1006, %s1004
        %s1008 = smul.addr %s1002, 2
        %s1009 = sadd.s32 %s1007, %s1008
        %s1010 = smul.addr %s1009, 2
        %s1011 = scalar_lea.vmem %s4, %s1010
      $region48: #{image_encoder_forward.8} parent=43 // pred_fallthru
        _
    $region44: #{image_encoder_forward.8} parent=5 // pred_fallthru
      _
  $region6: #{image_encoder_forward.8} parent=0 // loop_footer
    %s14 = sadd.s32 1, %s10
  $region7: #{image_encoder_forward.8} parent=0 // loop_footer_branch
    %9 = sbr.rel target = $region3
  $region8: #{image_encoder_forward.8} parent=0 // loop_exit
    _

// kernel: image_encoder_forward.9
$region0: #{image_encoder_forward.9}
  #allocation0 [shape = 'u32[]', space=smem, size = 0x4, offset = 0x4, fixed_abs, tag = 'smem constant byte address 0x4 - core index']
  #allocation1 [shape = 'u32[144,128]{1,0:T(1,128)}', space=vmem, size = 0x12000, scoped, tag = 'internal scratch']
  %s0 = inlined_call_operand.vmem [shape: f32[2,4,2,128], index: 0, kind: input, shape index: {}, may-alias: {0,1}]
  %s1 = inlined_call_operand.vmem [shape: f32[2,4,2,128], index: 1, kind: input, shape index: {}, may-alias: {0,1}]
  %s2 = inlined_call_operand.vmem [shape: bf16[4,2,128,128], index: 2, kind: input, shape index: {}]
  %s3 = inlined_call_operand.vmem [shape: f32[1,128], index: 3, kind: input, shape index: {}]
  %s4 = inlined_call_operand.hbm [shape: f32[2,1,1,128], index: 4, kind: output, shape index: {}]
  %s5 = sld [smem:[#allocation0]]
  $region49: #{image_encoder_forward.9} parent=0
    _
  %s7 = ssub.s32 1, %s5
  %s8 = scalar_select 0, %s7, %s5
  $region1: #{image_encoder_forward.9} parent=0
    #allocation2 [shape = 'u8[1024]{0}', space=vmem, size = 0x400, scoped, tag = 'output window, operand 0']
    #allocation3 [shape = 's32[2]{0}', space=sflag, size = 0x8, scoped, tag = 'scoped memory for image_encoder_forward.9']
    %9 = vsyncpa [#allocation3], 0
    %s10 = scalar_lea.sflag [#allocation3], 1
    %11 = vsyncpa %s10, 0
    loop: start=0, step=1, limit=4
    $region2: #{image_encoder_forward.9} parent=1 // loop_pre_header
      _
    $region3: #{image_encoder_forward.9} parent=1 // loop_header
      %s13 = sphi 0, %s17
      %p14 = scmp.ge.s32.totalorder %s13, 4
      %s20 = sphi 0, %s39
      %s21 = sphi 0, %s35
      %s22 = sphi 0, %s31
      %s23 = sphi 0, %s20
      %s24 = sphi 0, %s21
      %s25 = sphi 0, %s22
      %s26 = sphi 0, %s23
      %s27 = sphi 0, %s24
      %s28 = sphi 0, %s25
      %s44 = sphi 0, %s46
      %s47 = sphi 0, %s44
      %s48 = sphi 0, %s47
      %s64 = sphi 0, %s48
      %s74 = sphi 0, %s76
      %s77 = sphi 0, %s74
      %s78 = sphi 0, %s77
      %s94 = sphi 0, %s78
      %s100 = sphi 0, %s102
      %s103 = sphi 0, %s100
      %s104 = sphi 0, %s103
      %s120 = sphi 0, %s104
      %s126 = sphi 0, %s128
      %s129 = sphi 0, %s126
      %s130 = sphi 0, %s129
      %s146 = sphi 0, %s130
      %s156 = sphi 0, %s158
      %s159 = sphi 0, %s156
      %s160 = sphi 0, %s159
      %s176 = sphi 0, %s160
    $region4: #{image_encoder_forward.9} parent=1 // loop_header_branch
      %16 = sbr.rel (%p14) target = $region8
    $region5: #{image_encoder_forward.9} parent=1 // loop_body
      %s18 = ssub.s32 %s13, 1
      %s19 = ssub.s32 %s13, 2
      %s29 = sadd.s32 1, %s22
      %p30 = scmp.ge.s32.totalorder %s29, 1
      %s31 = scalar_select %p30, 0, %s29
      %s32 = sadd.s32 1, %s21
      %s33 = scalar_select %p30, %s32, %s21
      %p34 = scmp.ge.s32.totalorder %s33, 1
      %s35 = scalar_select %p34, 0, %s33
      %s36 = sadd.s32 1, %s20
      %s37 = scalar_select %p34, %s36, %s20
      %p38 = scmp.ge.s32.totalorder %s37, 2
      %s39 = scalar_select %p38, 0, %s37
      %s40 = ssub.s32 %s20, %s39
      %s41 = ssub.s32 %s21, %s35
      %s42 = sor.u32 %s40, %s41
      %p43 = scmp.eq.s32.totalorder %s42, 0
      %s45 = sadd.s32 %s44, 1
      %s46 = scalar_select %p43, %s44, %s45
      %p49 = pneg %p43
      %p50 = scmp.eq.s32.totalorder %s13, 1
      %p51 = por %p49, %p50
      %p52 = scmp.ne.s32.totalorder %s44, %s47
      %p53 = scmp.eq.s32.totalorder %s13, 0
      %p54 = por %p52, %p53
      %p55 = scmp.ne.s32.totalorder %s44, %s47
      %p56 = scmp.eq.s32.totalorder %s18, 1
      %p57 = por %p55, %p56
      %p58 = scmp.ne.s32.totalorder %s47, %s48
      %p59 = scmp.eq.s32.totalorder %s18, 0
      %p60 = por %p58, %p59
      %p61 = scmp.ne.s32.totalorder %s47, %s48
      %p62 = scmp.eq.s32.totalorder %s19, 1
      %p63 = por %p61, %p62
      %p65 = scmp.ne.s32.totalorder %s48, %s64
      %p66 = scmp.eq.s32.totalorder %s19, 0
      %p67 = por %p65, %p66
      %s68 = sadd.s32 %s21, 1
      %s69 = sadd.s32 %s35, 1
      %s70 = ssub.s32 %s20, %s39
      %s71 = ssub.s32 %s68, %s69
      %s72 = sor.u32 %s70, %s71
      %p73 = scmp.eq.s32.totalorder %s72, 0
      %s75 = sadd.s32 %s74, 1
      %s76 = scalar_select %p73, %s74, %s75
      %p79 = pneg %p73
      %p80 = scmp.eq.s32.totalorder %s13, 1
      %p81 = por %p79, %p80
      %p82 = scmp.ne.s32.totalorder %s74, %s77
      %p83 = scmp.eq.s32.totalorder %s13, 0
      %p84 = por %p82, %p83
      %p85 = scmp.ne.s32.totalorder %s74, %s77
      %p86 = scmp.eq.s32.totalorder %s18, 1
      %p87 = por %p85, %p86
      %p88 = scmp.ne.s32.totalorder %s77, %s78
      %p89 = scmp.eq.s32.totalorder %s18, 0
      %p90 = por %p88, %p89
      %p91 = scmp.ne.s32.totalorder %s77, %s78
      %p92 = scmp.eq.s32.totalorder %s19, 1
      %p93 = por %p91, %p92
      %p95 = scmp.ne.s32.totalorder %s78, %s94
      %p96 = scmp.eq.s32.totalorder %s19, 0
      %p97 = por %p95, %p96
      %s98 = ssub.s32 %s22, %s31
      %p99 = scmp.eq.s32.totalorder %s98, 0
      %s101 = sadd.s32 %s100, 1
      %s102 = scalar_select %p99, %s100, %s101
      %p105 = pneg %p99
      %p106 = scmp.eq.s32.totalorder %s13, 1
      %p107 = por %p105, %p106
      %p108 = scmp.ne.s32.totalorder %s100, %s103
      %p109 = scmp.eq.s32.totalorder %s13, 0
      %p110 = por %p108, %p109
      %p111 = scmp.ne.s32.totalorder %s100, %s103
      %p112 = scmp.eq.s32.totalorder %s18, 1
      %p113 = por %p111, %p112
      %p114 = scmp.ne.s32.totalorder %s103, %s104
      %p115 = scmp.eq.s32.totalorder %s18, 0
      %p116 = por %p114, %p115
      %p117 = scmp.ne.s32.totalorder %s103, %s104
      %p118 = scmp.eq.s32.totalorder %s19, 1
      %p119 = por %p117, %p118
      %p121 = scmp.ne.s32.totalorder %s104, %s120
      %p122 = scmp.eq.s32.totalorder %s19, 0
      %p123 = por %p121, %p122
      %s124 = ssub.s32 %s22, %s31
      %p125 = scmp.eq.s32.totalorder %s124, 0
      %s127 = sadd.s32 %s126, 1
      %s128 = scalar_select %p125, %s126, %s127
      %p131 = pneg %p125
      %p132 = scmp.eq.s32.totalorder %s13, 1
      %p133 = por %p131, %p132
      %p134 = scmp.ne.s32.totalorder %s126, %s129
      %p135 = scmp.eq.s32.totalorder %s13, 0
      %p136 = por %p134, %p135
      %p137 = scmp.ne.s32.totalorder %s126, %s129
      %p138 = scmp.eq.s32.totalorder %s18, 1
      %p139 = por %p137, %p138
      %p140 = scmp.ne.s32.totalorder %s129, %s130
      %p141 = scmp.eq.s32.totalorder %s18, 0
      %p142 = por %p140, %p141
      %p143 = scmp.ne.s32.totalorder %s129, %s130
      %p144 = scmp.eq.s32.totalorder %s19, 1
      %p145 = por %p143, %p144
      %p147 = scmp.ne.s32.totalorder %s130, %s146
      %p148 = scmp.eq.s32.totalorder %s19, 0
      %p149 = por %p147, %p148
      %s150 = ssub.s32 %s20, %s39
      %s151 = ssub.s32 %s21, %s35
      %s152 = sor.u32 %s150, %s151
      %s153 = ssub.s32 %s22, %s31
      %s154 = sor.u32 %s152, %s153
      %p155 = scmp.eq.s32.totalorder %s154, 0
      %s157 = sadd.s32 %s156, 1
      %s158 = scalar_select %p155, %s156, %s157
      %p161 = pneg %p155
      %p162 = scmp.eq.s32.totalorder %s13, 1
      %p163 = por %p161, %p162
      %p164 = scmp.ne.s32.totalorder %s156, %s159
      %p165 = scmp.eq.s32.totalorder %s13, 0
      %p166 = por %p164, %p165
      %p167 = scmp.ne.s32.totalorder %s156, %s159
      %p168 = scmp.eq.s32.totalorder %s18, 1
      %p169 = por %p167, %p168
      %p170 = scmp.ne.s32.totalorder %s159, %s160
      %p171 = scmp.eq.s32.totalorder %s18, 0
      %p172 = por %p170, %p171
      %p173 = scmp.ne.s32.totalorder %s159, %s160
      %p174 = scmp.eq.s32.totalorder %s19, 1
      %p175 = por %p173, %p174
      %p177 = scmp.ne.s32.totalorder %s160, %s176
      %p178 = scmp.eq.s32.totalorder %s19, 0
      %p179 = por %p177, %p178
      %p180 = scmp.le.s32.totalorder 1, %s13
      %p181 = scmp.lt.s32.totalorder %s13, 3
      %p182 = pnand %p180, %p181
      %p183 = pneg %p182
      // Predicated region
      $region9: #{image_encoder_forward.9} parent=5 // pred_check
        _
      $region10: #{image_encoder_forward.9} parent=5 // pred_check_branch
        %185 = sbr.rel (%p182) target = $region12
      $region11: #{image_encoder_forward.9} parent=5 // pred_region
        %s186 = ssub.s32 %s13, 1
        // Predicated region
        $region13: #{image_encoder_forward.9} parent=11 // pred_check
          %p187 = pneg %p116
        $region14: #{image_encoder_forward.9} parent=11 // pred_check_branch
          %189 = sbr.rel (%p187) target = $region16
        $region15: #{image_encoder_forward.9} parent=11 // pred_region
          %p190 = scmp.lt.s32.totalorder %s25, 0
          %s191 = scalar_select %p190, %s25, 0
          %s192 = smul.addr %s191, 4
          %s193 = scalar_lea.vmem %s2, %s192
        $region16: #{image_encoder_forward.9} parent=11 // pred_fallthru
          _
        // Predicated region
        $region17: #{image_encoder_forward.9} parent=11 // pred_check
          %p194 = pneg %p142
        $region18: #{image_encoder_forward.9} parent=11 // pred_check_branch
          %196 = sbr.rel (%p194) target = $region20
        $region19: #{image_encoder_forward.9} parent=11 // pred_region
          %p197 = scmp.lt.s32.totalorder %s25, 0
          %s198 = scalar_select %p197, %s25, 0
          %s199 = scalar_lea.vmem %s3, %s198
        $region20: #{image_encoder_forward.9} parent=11 // pred_fallthru
          _
      $region12: #{image_encoder_forward.9} parent=5 // pred_fallthru
        _
      %p200 = scmp.lt.s32.totalorder %s13, 2
      // Predicated region
      $region21: #{image_encoder_forward.9} parent=5 // pred_check
        %p201 = pneg %p200
      $region22: #{image_encoder_forward.9} parent=5 // pred_check_branch
        %203 = sbr.rel (%p201) target = $region24
      $region23: #{image_encoder_forward.9} parent=5 // pred_region
        // Predicated region
        $region25: #{image_encoder_forward.9} parent=23 // pred_check
          %p204 = pneg %p54
        $region26: #{image_encoder_forward.9} parent=23 // pred_check_branch
          %206 = sbr.rel (%p204) target = $region28
        $region27: #{image_encoder_forward.9} parent=23 // pred_region
          %s207 = smul.u32 2, %s21
          %p208 = scmp.lt.s32.totalorder %s20, 1
          %s209 = scalar_select %p208, %s20, 1
          %p210 = scmp.lt.s32.totalorder %s207, 3
          %s211 = scalar_select %p210, %s207, 3
          %s212 = smul.addr %s209, 4
          %s213 = sadd.s32 %s211, %s212
          %s214 = smul.addr %s213, 2
          %s215 = scalar_lea.vmem %s0, %s214
          %s216 = smul.u32 2, %s21
        $region28: #{image_encoder_forward.9} parent=23 // pred_fallthru
          _
        // Predicated region
        $region29: #{image_encoder_forward.9} parent=23 // pred_check
          %p217 = pneg %p84
        $region30: #{image_encoder_forward.9} parent=23 // pred_check_branch
          %219 = sbr.rel (%p217) target = $region32
        $region31: #{image_encoder_forward.9} parent=23 // pred_region
          %s220 = sadd.s32 %s21, 1
          %s221 = smul.u32 2, %s220
          %p222 = scmp.lt.s32.totalorder %s20, 1
          %s223 = scalar_select %p222, %s20, 1
          %p224 = scmp.lt.s32.totalorder %s221, 3
          %s225 = scalar_select %p224, %s221, 3
          %s226 = smul.addr %s223, 4
          %s227 = sadd.s32 %s225, %s226
          %s228 = smul.addr %s227, 2
          %s229 = scalar_lea.vmem %s1, %s228
          %s230 = sadd.s32 %s21, 1
          %s231 = smul.u32 2, %s230
        $region32: #{image_encoder_forward.9} parent=23 // pred_fallthru
          _
      $region24: #{image_encoder_forward.9} parent=5 // pred_fallthru
        _
      %p232 = scmp.le.s32.totalorder 1, %s13
      %p233 = scmp.lt.s32.totalorder %s13, 3
      %p234 = pnand %p232, %p233
      %p235 = pneg %p234
      // Predicated region
      $region33: #{image_encoder_forward.9} parent=5 // pred_check
        _
      $region34: #{image_encoder_forward.9} parent=5 // pred_check_branch
        %237 = sbr.rel (%p234) target = $region36
      $region35: #{image_encoder_forward.9} parent=5 // pred_region
        %s238 = ssub.s32 %s13, 1
        %s239 = smul.u32 2, %s24
        %p240 = scmp.lt.s32.totalorder %s23, 1
        %s241 = scalar_select %p240, %s23, 1
        %p242 = scmp.lt.s32.totalorder %s239, 3
        %s243 = scalar_select %p242, %s239, 3
        %s244 = smul.addr %s241, 4
        %s245 = sadd.s32 %s243, %s244
        %s246 = smul.addr %s245, 2
        %s247 = scalar_lea.vmem %s0, %s246
        %p248 = pneg %p60
        %p249 = pneg %p57
        %s250 = sadd.s32 %s24, 1
        %s251 = smul.u32 2, %s250
        %p252 = scmp.lt.s32.totalorder %s23, 1
        %s253 = scalar_select %p252, %s23, 1
        %p254 = scmp.lt.s32.totalorder %s251, 3
        %s255 = scalar_select %p254, %s251, 3
        %s256 = smul.addr %s253, 4
        %s257 = sadd.s32 %s255, %s256
        %s258 = smul.addr %s257, 2
        %s259 = scalar_lea.vmem %s1, %s258
        %p260 = pneg %p90
        %p261 = pneg %p87
        %p262 = scmp.lt.s32.totalorder %s25, 0
        %s263 = scalar_select %p262, %s25, 0
        %s264 = smul.addr %s263, 4
        %s265 = scalar_lea.vmem %s2, %s264
        %p266 = pneg %p116
        %p267 = pneg %p113
        %p268 = scmp.lt.s32.totalorder %s25, 0
        %s269 = scalar_select %p268, %s25, 0
        %s270 = scalar_lea.vmem %s3, %s269
        %p271 = pneg %p142
        %p272 = pneg %p139
        %p273 = pneg %p172
        %p274 = pneg %p169
        %s275 = sand.u32 %s159, 1
        %s276 = scalar_lea.sflag [#allocation3], %s275
        %s277 = sand.u32 %s159, 1
        %s278 = scalar_lea.vmem [#allocation2], %s277
        %s279 = smul.u32 2, %s24
        %p280 = scmp.lt.s32.totalorder %s23, 1
        %s281 = scalar_select %p280, %s23, 1
        %p282 = scmp.lt.s32.totalorder %s279, 3
        %s283 = scalar_select %p282, %s279, 3
        %s284 = smul.addr %s281, 4
        %s285 = sadd.s32 %s283, %s284
        %s286 = smul.addr %s285, 2
        %s287 = scalar_lea.vmem %s0, %s286
        %s288 = smul.u32 2, %s24
        %s289 = sadd.s32 %s24, 1
        %s290 = smul.u32 2, %s289
        %p291 = scmp.lt.s32.totalorder %s23, 1
        %s292 = scalar_select %p291, %s23, 1
        %p293 = scmp.lt.s32.totalorder %s290, 3
        %s294 = scalar_select %p293, %s290, 3
        %s295 = smul.addr %s292, 4
        %s296 = sadd.s32 %s294, %s295
        %s297 = smul.addr %s296, 2
        %s298 = scalar_lea.vmem %s1, %s297
        %s299 = sadd.s32 %s24, 1
        %s300 = smul.u32 2, %s299
        %p301 = scmp.lt.s32.totalorder %s25, 0
        %s302 = scalar_select %p301, %s25, 0
        %s303 = smul.addr %s302, 4
        %s304 = scalar_lea.vmem %s2, %s303
        %p305 = scmp.lt.s32.totalorder %s25, 0
        %s306 = scalar_select %p305, %s25, 0
        %s307 = scalar_lea.vmem %s3, %s306
        %v309 = vld [vmem:[%s287] sm:$0x3]
        %v310 = vld [vmem:[%s287 + $0x2] sm:$0x3]
        %v311 = vld [vmem:[%s298] sm:$0x3]
        %v312 = vld [vmem:[%s298 + $0x2] sm:$0x3]
        %v313 = vld [vmem:[%s304] sm:$0xf]
        %v314 = vld [vmem:[%s304 + $0x4] sm:$0xf]
        %v315 = vld [vmem:[%s304 + $0x8] sm:$0xf]
        %v316 = vld [vmem:[%s304 + $0xc] sm:$0xf]
        %v317 = vld [vmem:[%s304 + $0x10] sm:$0xf]
        %v318 = vld [vmem:[%s304 + $0x14] sm:$0xf]
        %v319 = vld [vmem:[%s304 + $0x18] sm:$0xf]
        %v320 = vld [vmem:[%s304 + $0x1c] sm:$0xf]
        %v321 = vld [vmem:[%s304 + $0x20] sm:$0xf]
        %v322 = vld [vmem:[%s304 + $0x24] sm:$0xf]
        %v323 = vld [vmem:[%s304 + $0x28] sm:$0xf]
        %v324 = vld [vmem:[%s304 + $0x2c] sm:$0xf]
        %v325 = vld [vmem:[%s304 + $0x30] sm:$0xf]
        %v326 = vld [vmem:[%s304 + $0x34] sm:$0xf]
        %v327 = vld [vmem:[%s304 + $0x38] sm:$0xf]
        %v328 = vld [vmem:[%s304 + $0x3c] sm:$0xf]
        %v329 = vpack.c.bf16 %v309, %v309
        %s330 = scalar_lea.vmem %s304, 64
        %v331 = vld [vmem:[%s330] sm:$0xf]
        %v332 = vld [vmem:[%s330 + $0x4] sm:$0xf]
        %v333 = vld [vmem:[%s330 + $0x8] sm:$0xf]
        %v334 = vld [vmem:[%s330 + $0xc] sm:$0xf]
        %v335 = vld [vmem:[%s330 + $0x10] sm:$0xf]
        %v336 = vld [vmem:[%s330 + $0x14] sm:$0xf]
        %v337 = vld [vmem:[%s330 + $0x18] sm:$0xf]
        %v338 = vld [vmem:[%s330 + $0x1c] sm:$0xf]
        %v339 = vld [vmem:[%s330 + $0x20] sm:$0xf]
        %v340 = vld [vmem:[%s330 + $0x24] sm:$0xf]
        %v341 = vld [vmem:[%s330 + $0x28] sm:$0xf]
        %v342 = vld [vmem:[%s330 + $0x2c] sm:$0xf]
        %v343 = vld [vmem:[%s330 + $0x30] sm:$0xf]
        %v344 = vld [vmem:[%s330 + $0x34] sm:$0xf]
        %v345 = vld [vmem:[%s330 + $0x38] sm:$0xf]
        %v346 = vld [vmem:[%s330 + $0x3c] sm:$0xf]
        %v348 = vshrl.u32 %v329, 16
        %v367 = vunpack.c.l.b16 %v331
        %v368 = vunpack.c.l.b16 %v332
        %v369 = vunpack.c.l.b16 %v333
        %v370 = vunpack.c.l.b16 %v334
        %v371 = vunpack.c.l.b16 %v335
        %v372 = vunpack.c.l.b16 %v336
        %v373 = vunpack.c.l.b16 %v337
        %v374 = vunpack.c.l.b16 %v338
        %v375 = vunpack.c.l.b16 %v339
        %v376 = vunpack.c.l.b16 %v340
        %v377 = vunpack.c.l.b16 %v341
        %v378 = vunpack.c.l.b16 %v342
        %v379 = vunpack.c.l.b16 %v343
        %v380 = vunpack.c.l.b16 %v344
        %v381 = vunpack.c.l.b16 %v345
        %v382 = vunpack.c.l.b16 %v346
        %v383 = vpack.c.b16 %v368, %v367
        %v384 = vpack.c.b16 %v370, %v369
        %v385 = vpack.c.b16 %v372, %v371
        %v386 = vpack.c.b16 %v374, %v373
        %v387 = vpack.c.b16 %v376, %v375
        %v388 = vpack.c.b16 %v378, %v377
        %v389 = vpack.c.b16 %v380, %v379
        %v390 = vpack.c.b16 %v382, %v381
        %399 = vmatprep.subr.bf16.mxu0 0
        %400 = vmatpush1.bf16.msra.mxu0 %v383
        %401 = vmatprep.subr.bf16.mxu0 0
        %402 = vmatpush1.bf16.msra.mxu0 %v384
        %403 = vmatprep.subr.bf16.mxu0 0
        %404 = vmatpush1.bf16.msra.mxu0 %v385
        %405 = vmatprep.subr.bf16.mxu0 0
        %406 = vmatpush1.bf16.msra.mxu0 %v386
        %407 = vmatprep.subr.bf16.mxu0 0
        %408 = vmatpush1.bf16.msra.mxu0 %v387
        %409 = vmatprep.subr.bf16.mxu0 0
        %410 = vmatpush1.bf16.msra.mxu0 %v388
        %411 = vmatprep.subr.bf16.mxu0 0
        %412 = vmatpush1.bf16.msra.mxu0 %v389
        %413 = vmatprep.subr.bf16.mxu0 0
        %414 = vmatpush1.bf16.msra.mxu0 %v390
        %415 = vmatprep.subr.bf16.mxu0 0
        %416 = vmatpush1.bf16.msra.mxu0 0
        %417 = vmatprep.subr.bf16.mxu0 0
        %418 = vmatpush1.bf16.msra.mxu0 0
        %419 = vmatprep.subr.bf16.mxu0 0
        %420 = vmatpush1.bf16.msra.mxu0 0
        %421 = vmatprep.subr.bf16.mxu0 0
        %422 = vmatpush1.bf16.msra.mxu0 0
        %423 = vmatprep.subr.bf16.mxu0 0
        %424 = vmatpush1.bf16.msra.mxu0 0
        %425 = vmatprep.subr.bf16.mxu0 0
        %426 = vmatpush1.bf16.msra.mxu0 0
        %427 = vmatprep.subr.bf16.mxu0 0
        %428 = vmatpush1.bf16.msra.mxu0 0
        %429 = vmatprep.subr.bf16.mxu0 0
        %430 = vmatpush1.bf16.msra.mxu0 0
        %431 = vmatprep.mubr.bf16.mxu0 0
        %432 = vmatmul.mubr.bf16.gmra.mrb[0].mxu0 %v348
        %v433 = vpop.f32.mrb[0].mxu0
        %v434 = vadd.f32 0.0, %v433
        %v435 = vpop.f32.mrb[0].mxu0
        %v436 = vpop.f32.mrb[0].mxu0
        %v437 = vpop.f32.mrb[0].mxu0
        %438 = vdwg.mxu0
        %v455 = vunpack.c.l.b16 %v313
        %v456 = vunpack.c.l.b16 %v314
        %v457 = vunpack.c.l.b16 %v315
        %v458 = vunpack.c.l.b16 %v316
        %v459 = vunpack.c.l.b16 %v317
        %v460 = vunpack.c.l.b16 %v318
        %v461 = vunpack.c.l.b16 %v319
        %v462 = vunpack.c.l.b16 %v320
        %v463 = vunpack.c.l.b16 %v321
        %v464 = vunpack.c.l.b16 %v322
        %v465 = vunpack.c.l.b16 %v323
        %v466 = vunpack.c.l.b16 %v324
        %v467 = vunpack.c.l.b16 %v325
        %v468 = vunpack.c.l.b16 %v326
        %v469 = vunpack.c.l.b16 %v327
        %v470 = vunpack.c.l.b16 %v328
        %v471 = vpack.c.b16 %v456, %v455
        %v472 = vpack.c.b16 %v458, %v457
        %v473 = vpack.c.b16 %v460, %v459
        %v474 = vpack.c.b16 %v462, %v461
        %v475 = vpack.c.b16 %v464, %v463
        %v476 = vpack.c.b16 %v466, %v465
        %v477 = vpack.c.b16 %v468, %v467
        %v478 = vpack.c.b16 %v470, %v469
        %487 = vmatprep.subr.bf16.mxu0 0
        %488 = vmatpush1.bf16.msra.mxu0 %v471
        %489 = vmatprep.subr.bf16.mxu0 0
        %490 = vmatpush1.bf16.msra.mxu0 %v472
        %491 = vmatprep.subr.bf16.mxu0 0
        %492 = vmatpush1.bf16.msra.mxu0 %v473
        %493 = vmatprep.subr.bf16.mxu0 0
        %494 = vmatpush1.bf16.msra.mxu0 %v474
        %495 = vmatprep.subr.bf16.mxu0 0
        %496 = vmatpush1.bf16.msra.mxu0 %v475
        %497 = vmatprep.subr.bf16.mxu0 0
        %498 = vmatpush1.bf16.msra.mxu0 %v476
        %499 = vmatprep.subr.bf16.mxu0 0
        %500 = vmatpush1.bf16.msra.mxu0 %v477
        %501 = vmatprep.subr.bf16.mxu0 0
        %502 = vmatpush1.bf16.msra.mxu0 %v478
        %503 = vmatprep.subr.bf16.mxu0 0
        %504 = vmatpush1.bf16.msra.mxu0 0
        %505 = vmatprep.subr.bf16.mxu0 0
        %506 = vmatpush1.bf16.msra.mxu0 0
        %507 = vmatprep.subr.bf16.mxu0 0
        %508 = vmatpush1.bf16.msra.mxu0 0
        %509 = vmatprep.subr.bf16.mxu0 0
        %510 = vmatpush1.bf16.msra.mxu0 0
        %511 = vmatprep.subr.bf16.mxu0 0
        %512 = vmatpush1.bf16.msra.mxu0 0
        %513 = vmatprep.subr.bf16.mxu0 0
        %514 = vmatpush1.bf16.msra.mxu0 0
        %515 = vmatprep.subr.bf16.mxu0 0
        %516 = vmatpush1.bf16.msra.mxu0 0
        %517 = vmatprep.subr.bf16.mxu0 0
        %518 = vmatpush1.bf16.msra.mxu0 0
        %519 = vmatprep.mubr.bf16.mxu0 0
        %520 = vmatmul.mubr.bf16.gmra.mrb[0].mxu0 %v329
        %v521 = vpop.f32.mrb[0].mxu0
        %v522 = vadd.f32 %v434, %v521
        %v523 = vpop.f32.mrb[0].mxu0
        %v524 = vpop.f32.mrb[0].mxu0
        %v525 = vpop.f32.mrb[0].mxu0
        %526 = vdwg.mxu0
        %s527 = scalar_lea.vmem %s304, 128
        %v528 = vld [vmem:[%s527] sm:$0xf]
        %v529 = vld [vmem:[%s527 + $0x4] sm:$0xf]
        %v530 = vld [vmem:[%s527 + $0x8] sm:$0xf]
        %v531 = vld [vmem:[%s527 + $0xc] sm:$0xf]
        %v532 = vld [vmem:[%s527 + $0x10] sm:$0xf]
        %v533 = vld [vmem:[%s527 + $0x14] sm:$0xf]
        %v534 = vld [vmem:[%s527 + $0x18] sm:$0xf]
        %v535 = vld [vmem:[%s527 + $0x1c] sm:$0xf]
        %v536 = vld [vmem:[%s527 + $0x20] sm:$0xf]
        %v537 = vld [vmem:[%s527 + $0x24] sm:$0xf]
        %v538 = vld [vmem:[%s527 + $0x28] sm:$0xf]
        %v539 = vld [vmem:[%s527 + $0x2c] sm:$0xf]
        %v540 = vld [vmem:[%s527 + $0x30] sm:$0xf]
        %v541 = vld [vmem:[%s527 + $0x34] sm:$0xf]
        %v542 = vld [vmem:[%s527 + $0x38] sm:$0xf]
        %v543 = vld [vmem:[%s527 + $0x3c] sm:$0xf]
        %v544 = vpack.c.bf16 %v310, %v310
        %v561 = vunpack.c.l.b16 %v528
        %v562 = vunpack.c.l.b16 %v529
        %v563 = vunpack.c.l.b16 %v530
        %v564 = vunpack.c.l.b16 %v531
        %v565 = vunpack.c.l.b16 %v532
        %v566 = vunpack.c.l.b16 %v533
        %v567 = vunpack.c.l.b16 %v534
        %v568 = vunpack.c.l.b16 %v535
        %v569 = vunpack.c.l.b16 %v536
        %v570 = vunpack.c.l.b16 %v537
        %v571 = vunpack.c.l.b16 %v538
        %v572 = vunpack.c.l.b16 %v539
        %v573 = vunpack.c.l.b16 %v540
        %v574 = vunpack.c.l.b16 %v541
        %v575 = vunpack.c.l.b16 %v542
        %v576 = vunpack.c.l.b16 %v543
        %v577 = vpack.c.b16 %v562, %v561
        %v578 = vpack.c.b16 %v564, %v563
        %v579 = vpack.c.b16 %v566, %v565
        %v580 = vpack.c.b16 %v568, %v567
        %v581 = vpack.c.b16 %v570, %v569
        %v582 = vpack.c.b16 %v572, %v571
        %v583 = vpack.c.b16 %v574, %v573
        %v584 = vpack.c.b16 %v576, %v575
        %593 = vmatprep.subr.bf16.mxu0 0
        %594 = vmatpush1.bf16.msra.mxu0 %v577
        %595 = vmatprep.subr.bf16.mxu0 0
        %596 = vmatpush1.bf16.msra.mxu0 %v578
        %597 = vmatprep.subr.bf16.mxu0 0
        %598 = vmatpush1.bf16.msra.mxu0 %v579
        %599 = vmatprep.subr.bf16.mxu0 0
        %600 = vmatpush1.bf16.msra.mxu0 %v580
        %601 = vmatprep.subr.bf16.mxu0 0
        %602 = vmatpush1.bf16.msra.mxu0 %v581
        %603 = vmatprep.subr.bf16.mxu0 0
        %604 = vmatpush1.bf16.msra.mxu0 %v582
        %605 = vmatprep.subr.bf16.mxu0 0
        %606 = vmatpush1.bf16.msra.mxu0 %v583
        %607 = vmatprep.subr.bf16.mxu0 0
        %608 = vmatpush1.bf16.msra.mxu0 %v584
        %609 = vmatprep.subr.bf16.mxu0 0
        %610 = vmatpush1.bf16.msra.mxu0 0
        %611 = vmatprep.subr.bf16.mxu0 0
        %612 = vmatpush1.bf16.msra.mxu0 0
        %613 = vmatprep.subr.bf16.mxu0 0
        %614 = vmatpush1.bf16.msra.mxu0 0
        %615 = vmatprep.subr.bf16.mxu0 0
        %616 = vmatpush1.bf16.msra.mxu0 0
        %617 = vmatprep.subr.bf16.mxu0 0
        %618 = vmatpush1.bf16.msra.mxu0 0
        %619 = vmatprep.subr.bf16.mxu0 0
        %620 = vmatpush1.bf16.msra.mxu0 0
        %621 = vmatprep.subr.bf16.mxu0 0
        %622 = vmatpush1.bf16.msra.mxu0 0
        %623 = vmatprep.subr.bf16.mxu0 0
        %624 = vmatpush1.bf16.msra.mxu0 0
        %625 = vmatprep.mubr.bf16.mxu0 0
        %626 = vmatmul.mubr.bf16.gmra.mrb[0].mxu0 %v544
        %v627 = vpop.f32.mrb[0].mxu0
        %v628 = vadd.f32 0.0, %v627
        %v629 = vpop.f32.mrb[0].mxu0
        %v630 = vpop.f32.mrb[0].mxu0
        %v631 = vpop.f32.mrb[0].mxu0
        %632 = vdwg.mxu0
        %v633 = vadd.f32 %v522, %v628
        %s634 = scalar_lea.vmem %s304, 192
        %v635 = vld [vmem:[%s634] sm:$0xf]
        %v636 = vld [vmem:[%s634 + $0x4] sm:$0xf]
        %v637 = vld [vmem:[%s634 + $0x8] sm:$0xf]
        %v638 = vld [vmem:[%s634 + $0xc] sm:$0xf]
        %v639 = vld [vmem:[%s634 + $0x10] sm:$0xf]
        %v640 = vld [vmem:[%s634 + $0x14] sm:$0xf]
        %v641 = vld [vmem:[%s634 + $0x18] sm:$0xf]
        %v642 = vld [vmem:[%s634 + $0x1c] sm:$0xf]
        %v643 = vld [vmem:[%s634 + $0x20] sm:$0xf]
        %v644 = vld [vmem:[%s634 + $0x24] sm:$0xf]
        %v645 = vld [vmem:[%s634 + $0x28] sm:$0xf]
        %v646 = vld [vmem:[%s634 + $0x2c] sm:$0xf]
        %v647 = vld [vmem:[%s634 + $0x30] sm:$0xf]
        %v648 = vld [vmem:[%s634 + $0x34] sm:$0xf]
        %v649 = vld [vmem:[%s634 + $0x38] sm:$0xf]
        %v650 = vld [vmem:[%s634 + $0x3c] sm:$0xf]
        %v652 = vshrl.u32 %v544, 16
        %v671 = vunpack.c.l.b16 %v635
        %v672 = vunpack.c.l.b16 %v636
        %v673 = vunpack.c.l.b16 %v637
        %v674 = vunpack.c.l.b16 %v638
        %v675 = vunpack.c.l.b16 %v639
        %v676 = vunpack.c.l.b16 %v640
        %v677 = vunpack.c.l.b16 %v641
        %v678 = vunpack.c.l.b16 %v642
        %v679 = vunpack.c.l.b16 %v643
        %v680 = vunpack.c.l.b16 %v644
        %v681 = vunpack.c.l.b16 %v645
        %v682 = vunpack.c.l.b16 %v646
        %v683 = vunpack.c.l.b16 %v647
        %v684 = vunpack.c.l.b16 %v648
        %v685 = vunpack.c.l.b16 %v649
        %v686 = vunpack.c.l.b16 %v650
        %v687 = vpack.c.b16 %v672, %v671
        %v688 = vpack.c.b16 %v674, %v673
        %v689 = vpack.c.b16 %v676, %v675
        %v690 = vpack.c.b16 %v678, %v677
        %v691 = vpack.c.b16 %v680, %v679
        %v692 = vpack.c.b16 %v682, %v681
        %v693 = vpack.c.b16 %v684, %v683
        %v694 = vpack.c.b16 %v686, %v685
        %703 = vmatprep.subr.bf16.mxu0 0
        %704 = vmatpush1.bf16.msra.mxu0 %v687
        %705 = vmatprep.subr.bf16.mxu0 0
        %706 = vmatpush1.bf16.msra.mxu0 %v688
        %707 = vmatprep.subr.bf16.mxu0 0
        %708 = vmatpush1.bf16.msra.mxu0 %v689
        %709 = vmatprep.subr.bf16.mxu0 0
        %710 = vmatpush1.bf16.msra.mxu0 %v690
        %711 = vmatprep.subr.bf16.mxu0 0
        %712 = vmatpush1.bf16.msra.mxu0 %v691
        %713 = vmatprep.subr.bf16.mxu0 0
        %714 = vmatpush1.bf16.msra.mxu0 %v692
        %715 = vmatprep.subr.bf16.mxu0 0
        %716 = vmatpush1.bf16.msra.mxu0 %v693
        %717 = vmatprep.subr.bf16.mxu0 0
        %718 = vmatpush1.bf16.msra.mxu0 %v694
        %719 = vmatprep.subr.bf16.mxu0 0
        %720 = vmatpush1.bf16.msra.mxu0 0
        %721 = vmatprep.subr.bf16.mxu0 0
        %722 = vmatpush1.bf16.msra.mxu0 0
        %723 = vmatprep.subr.bf16.mxu0 0
        %724 = vmatpush1.bf16.msra.mxu0 0
        %725 = vmatprep.subr.bf16.mxu0 0
        %726 = vmatpush1.bf16.msra.mxu0 0
        %727 = vmatprep.subr.bf16.mxu0 0
        %728 = vmatpush1.bf16.msra.mxu0 0
        %729 = vmatprep.subr.bf16.mxu0 0
        %730 = vmatpush1.bf16.msra.mxu0 0
        %731 = vmatprep.subr.bf16.mxu0 0
        %732 = vmatpush1.bf16.msra.mxu0 0
        %733 = vmatprep.subr.bf16.mxu0 0
        %734 = vmatpush1.bf16.msra.mxu0 0
        %735 = vmatprep.mubr.bf16.mxu0 0
        %736 = vmatmul.mubr.bf16.gmra.mrb[0].mxu0 %v652
        %v737 = vpop.f32.mrb[0].mxu0
        %v738 = vadd.f32 0.0, %v737
        %v739 = vpop.f32.mrb[0].mxu0
        %v740 = vpop.f32.mrb[0].mxu0
        %v741 = vpop.f32.mrb[0].mxu0
        %742 = vdwg.mxu0
        %v743 = vadd.f32 %v633, %v738
        %s744 = scalar_lea.vmem %s304, 256
        %v745 = vld [vmem:[%s744] sm:$0xf]
        %v746 = vld [vmem:[%s744 + $0x4] sm:$0xf]
        %v747 = vld [vmem:[%s744 + $0x8] sm:$0xf]
        %v748 = vld [vmem:[%s744 + $0xc] sm:$0xf]
        %v749 = vld [vmem:[%s744 + $0x10] sm:$0xf]
        %v750 = vld [vmem:[%s744 + $0x14] sm:$0xf]
        %v751 = vld [vmem:[%s744 + $0x18] sm:$0xf]
        %v752 = vld [vmem:[%s744 + $0x1c] sm:$0xf]
        %v753 = vld [vmem:[%s744 + $0x20] sm:$0xf]
        %v754 = vld [vmem:[%s744 + $0x24] sm:$0xf]
        %v755 = vld [vmem:[%s744 + $0x28] sm:$0xf]
        %v756 = vld [vmem:[%s744 + $0x2c] sm:$0xf]
        %v757 = vld [vmem:[%s744 + $0x30] sm:$0xf]
        %v758 = vld [vmem:[%s744 + $0x34] sm:$0xf]
        %v759 = vld [vmem:[%s744 + $0x38] sm:$0xf]
        %v760 = vld [vmem:[%s744 + $0x3c] sm:$0xf]
        %v761 = vpack.c.bf16 %v311, %v311
        %v778 = vunpack.c.l.b16 %v745
        %v779 = vunpack.c.l.b16 %v746
        %v780 = vunpack.c.l.b16 %v747
        %v781 = vunpack.c.l.b16 %v748
        %v782 = vunpack.c.l.b16 %v749
        %v783 = vunpack.c.l.b16 %v750
        %v784 = vunpack.c.l.b16 %v751
        %v785 = vunpack.c.l.b16 %v752
        %v786 = vunpack.c.l.b16 %v753
        %v787 = vunpack.c.l.b16 %v754
        %v788 = vunpack.c.l.b16 %v755
        %v789 = vunpack.c.l.b16 %v756
        %v790 = vunpack.c.l.b16 %v757
        %v791 = vunpack.c.l.b16 %v758
        %v792 = vunpack.c.l.b16 %v759
        %v793 = vunpack.c.l.b16 %v760
        %v794 = vpack.c.b16 %v779, %v778
        %v795 = vpack.c.b16 %v781, %v780
        %v796 = vpack.c.b16 %v783, %v782
        %v797 = vpack.c.b16 %v785, %v784
        %v798 = vpack.c.b16 %v787, %v786
        %v799 = vpack.c.b16 %v789, %v788
        %v800 = vpack.c.b16 %v791, %v790
        %v801 = vpack.c.b16 %v793, %v792
        %810 = vmatprep.subr.bf16.mxu0 0
        %811 = vmatpush1.bf16.msra.mxu0 %v794
        %812 = vmatprep.subr.bf16.mxu0 0
        %813 = vmatpush1.bf16.msra.mxu0 %v795
        %814 = vmatprep.subr.bf16.mxu0 0
        %815 = vmatpush1.bf16.msra.mxu0 %v796
        %816 = vmatprep.subr.bf16.mxu0 0
        %817 = vmatpush1.bf16.msra.mxu0 %v797
        %818 = vmatprep.subr.bf16.mxu0 0
        %819 = vmatpush1.bf16.msra.mxu0 %v798
        %820 = vmatprep.subr.bf16.mxu0 0
        %821 = vmatpush1.bf16.msra.mxu0 %v799
        %822 = vmatprep.subr.bf16.mxu0 0
        %823 = vmatpush1.bf16.msra.mxu0 %v800
        %824 = vmatprep.subr.bf16.mxu0 0
        %825 = vmatpush1.bf16.msra.mxu0 %v801
        %826 = vmatprep.subr.bf16.mxu0 0
        %827 = vmatpush1.bf16.msra.mxu0 0
        %828 = vmatprep.subr.bf16.mxu0 0
        %829 = vmatpush1.bf16.msra.mxu0 0
        %830 = vmatprep.subr.bf16.mxu0 0
        %831 = vmatpush1.bf16.msra.mxu0 0
        %832 = vmatprep.subr.bf16.mxu0 0
        %833 = vmatpush1.bf16.msra.mxu0 0
        %834 = vmatprep.subr.bf16.mxu0 0
        %835 = vmatpush1.bf16.msra.mxu0 0
        %836 = vmatprep.subr.bf16.mxu0 0
        %837 = vmatpush1.bf16.msra.mxu0 0
        %838 = vmatprep.subr.bf16.mxu0 0
        %839 = vmatpush1.bf16.msra.mxu0 0
        %840 = vmatprep.subr.bf16.mxu0 0
        %841 = vmatpush1.bf16.msra.mxu0 0
        %842 = vmatprep.mubr.bf16.mxu0 0
        %843 = vmatmul.mubr.bf16.gmra.mrb[0].mxu0 %v761
        %v844 = vpop.f32.mrb[0].mxu0
        %v845 = vadd.f32 0.0, %v844
        %v846 = vpop.f32.mrb[0].mxu0
        %v847 = vpop.f32.mrb[0].mxu0
        %v848 = vpop.f32.mrb[0].mxu0
        %849 = vdwg.mxu0
        %v850 = vadd.f32 %v743, %v845
        %s851 = scalar_lea.vmem %s304, 320
        %v852 = vld [vmem:[%s851] sm:$0xf]
        %v853 = vld [vmem:[%s851 + $0x4] sm:$0xf]
        %v854 = vld [vmem:[%s851 + $0x8] sm:$0xf]
        %v855 = vld [vmem:[%s851 + $0xc] sm:$0xf]
        %v856 = vld [vmem:[%s851 + $0x10] sm:$0xf]
        %v857 = vld [vmem:[%s851 + $0x14] sm:$0xf]
        %v858 = vld [vmem:[%s851 + $0x18] sm:$0xf]
        %v859 = vld [vmem:[%s851 + $0x1c] sm:$0xf]
        %v860 = vld [vmem:[%s851 + $0x20] sm:$0xf]
        %v861 = vld [vmem:[%s851 + $0x24] sm:$0xf]
        %v862 = vld [vmem:[%s851 + $0x28] sm:$0xf]
        %v863 = vld [vmem:[%s851 + $0x2c] sm:$0xf]
        %v864 = vld [vmem:[%s851 + $0x30] sm:$0xf]
        %v865 = vld [vmem:[%s851 + $0x34] sm:$0xf]
        %v866 = vld [vmem:[%s851 + $0x38] sm:$0xf]
        %v867 = vld [vmem:[%s851 + $0x3c] sm:$0xf]
        %v869 = vshrl.u32 %v761, 16
        %v888 = vunpack.c.l.b16 %v852
        %v889 = vunpack.c.l.b16 %v853
        %v890 = vunpack.c.l.b16 %v854
        %v891 = vunpack.c.l.b16 %v855
        %v892 = vunpack.c.l.b16 %v856
        %v893 = vunpack.c.l.b16 %v857
        %v894 = vunpack.c.l.b16 %v858
        %v895 = vunpack.c.l.b16 %v859
        %v896 = vunpack.c.l.b16 %v860
        %v897 = vunpack.c.l.b16 %v861
        %v898 = vunpack.c.l.b16 %v862
        %v899 = vunpack.c.l.b16 %v863
        %v900 = vunpack.c.l.b16 %v864
        %v901 = vunpack.c.l.b16 %v865
        %v902 = vunpack.c.l.b16 %v866
        %v903 = vunpack.c.l.b16 %v867
        %v904 = vpack.c.b16 %v889, %v888
        %v905 = vpack.c.b16 %v891, %v890
        %v906 = vpack.c.b16 %v893, %v892
        %v907 = vpack.c.b16 %v895, %v894
        %v908 = vpack.c.b16 %v897, %v896
        %v909 = vpack.c.b16 %v899, %v898
        %v910 = vpack.c.b16 %v901, %v900
        %v911 = vpack.c.b16 %v903, %v902
        %920 = vmatprep.subr.bf16.mxu0 0
        %921 = vmatpush1.bf16.msra.mxu0 %v904
        %922 = vmatprep.subr.bf16.mxu0 0
        %923 = vmatpush1.bf16.msra.mxu0 %v905
        %924 = vmatprep.subr.bf16.mxu0 0
        %925 = vmatpush1.bf16.msra.mxu0 %v906
        %926 = vmatprep.subr.bf16.mxu0 0
        %927 = vmatpush1.bf16.msra.mxu0 %v907
        %928 = vmatprep.subr.bf16.mxu0 0
        %929 = vmatpush1.bf16.msra.mxu0 %v908
        %930 = vmatprep.subr.bf16.mxu0 0
        %931 = vmatpush1.bf16.msra.mxu0 %v909
        %932 = vmatprep.subr.bf16.mxu0 0
        %933 = vmatpush1.bf16.msra.mxu0 %v910
        %934 = vmatprep.subr.bf16.mxu0 0
        %935 = vmatpush1.bf16.msra.mxu0 %v911
        %936 = vmatprep.subr.bf16.mxu0 0
        %937 = vmatpush1.bf16.msra.mxu0 0
        %938 = vmatprep.subr.bf16.mxu0 0
        %939 = vmatpush1.bf16.msra.mxu0 0
        %940 = vmatprep.subr.bf16.mxu0 0
        %941 = vmatpush1.bf16.msra.mxu0 0
        %942 = vmatprep.subr.bf16.mxu0 0
        %943 = vmatpush1.bf16.msra.mxu0 0
        %944 = vmatprep.subr.bf16.mxu0 0
        %945 = vmatpush1.bf16.msra.mxu0 0
        %946 = vmatprep.subr.bf16.mxu0 0
        %947 = vmatpush1.bf16.msra.mxu0 0
        %948 = vmatprep.subr.bf16.mxu0 0
        %949 = vmatpush1.bf16.msra.mxu0 0
        %950 = vmatprep.subr.bf16.mxu0 0
        %951 = vmatpush1.bf16.msra.mxu0 0
        %952 = vmatprep.mubr.bf16.mxu0 0
        %953 = vmatmul.mubr.bf16.gmra.mrb[0].mxu0 %v869
        %v954 = vpop.f32.mrb[0].mxu0
        %v955 = vadd.f32 0.0, %v954
        %v956 = vpop.f32.mrb[0].mxu0
        %v957 = vpop.f32.mrb[0].mxu0
        %v958 = vpop.f32.mrb[0].mxu0
        %959 = vdwg.mxu0
        %v960 = vadd.f32 %v850, %v955
        %s961 = scalar_lea.vmem %s304, 384
        %v962 = vld [vmem:[%s961] sm:$0xf]
        %v963 = vld [vmem:[%s961 + $0x4] sm:$0xf]
        %v964 = vld [vmem:[%s961 + $0x8] sm:$0xf]
        %v965 = vld [vmem:[%s961 + $0xc] sm:$0xf]
        %v966 = vld [vmem:[%s961 + $0x10] sm:$0xf]
        %v967 = vld [vmem:[%s961 + $0x14] sm:$0xf]
        %v968 = vld [vmem:[%s961 + $0x18] sm:$0xf]
        %v969 = vld [vmem:[%s961 + $0x1c] sm:$0xf]
        %v970 = vld [vmem:[%s961 + $0x20] sm:$0xf]
        %v971 = vld [vmem:[%s961 + $0x24] sm:$0xf]
        %v972 = vld [vmem:[%s961 + $0x28] sm:$0xf]
        %v973 = vld [vmem:[%s961 + $0x2c] sm:$0xf]
        %v974 = vld [vmem:[%s961 + $0x30] sm:$0xf]
        %v975 = vld [vmem:[%s961 + $0x34] sm:$0xf]
        %v976 = vld [vmem:[%s961 + $0x38] sm:$0xf]
        %v977 = vld [vmem:[%s961 + $0x3c] sm:$0xf]
        %v978 = vpack.c.bf16 %v312, %v312
        %v995 = vunpack.c.l.b16 %v962
        %v996 = vunpack.c.l.b16 %v963
        %v997 = vunpack.c.l.b16 %v964
        %v998 = vunpack.c.l.b16 %v965
        %v999 = vunpack.c.l.b16 %v966
        %v1000 = vunpack.c.l.b16 %v967
        %v1001 = vunpack.c.l.b16 %v968
        %v1002 = vunpack.c.l.b16 %v969
        %v1003 = vunpack.c.l.b16 %v970
        %v1004 = vunpack.c.l.b16 %v971
        %v1005 = vunpack.c.l.b16 %v972
        %v1006 = vunpack.c.l.b16 %v973
        %v1007 = vunpack.c.l.b16 %v974
        %v1008 = vunpack.c.l.b16 %v975
        %v1009 = vunpack.c.l.b16 %v976
        %v1010 = vunpack.c.l.b16 %v977
        %v1011 = vpack.c.b16 %v996, %v995
        %v1012 = vpack.c.b16 %v998, %v997
        %v1013 = vpack.c.b16 %v1000, %v999
        %v1014 = vpack.c.b16 %v1002, %v1001
        %v1015 = vpack.c.b16 %v1004, %v1003
        %v1016 = vpack.c.b16 %v1006, %v1005
        %v1017 = vpack.c.b16 %v1008, %v1007
        %v1018 = vpack.c.b16 %v1010, %v1009
        %1027 = vmatprep.subr.bf16.mxu0 0
        %1028 = vmatpush1.bf16.msra.mxu0 %v1011
        %1029 = vmatprep.subr.bf16.mxu0 0
        %1030 = vmatpush1.bf16.msra.mxu0 %v1012
        %1031 = vmatprep.subr.bf16.mxu0 0
        %1032 = vmatpush1.bf16.msra.mxu0 %v1013
        %1033 = vmatprep.subr.bf16.mxu0 0
        %1034 = vmatpush1.bf16.msra.mxu0 %v1014
        %1035 = vmatprep.subr.bf16.mxu0 0
        %1036 = vmatpush1.bf16.msra.mxu0 %v1015
        %1037 = vmatprep.subr.bf16.mxu0 0
        %1038 = vmatpush1.bf16.msra.mxu0 %v1016
        %1039 = vmatprep.subr.bf16.mxu0 0
        %1040 = vmatpush1.bf16.msra.mxu0 %v1017
        %1041 = vmatprep.subr.bf16.mxu0 0
        %1042 = vmatpush1.bf16.msra.mxu0 %v1018
        %1043 = vmatprep.subr.bf16.mxu0 0
        %1044 = vmatpush1.bf16.msra.mxu0 0
        %1045 = vmatprep.subr.bf16.mxu0 0
        %1046 = vmatpush1.bf16.msra.mxu0 0
        %1047 = vmatprep.subr.bf16.mxu0 0
        %1048 = vmatpush1.bf16.msra.mxu0 0
        %1049 = vmatprep.subr.bf16.mxu0 0
        %1050 = vmatpush1.bf16.msra.mxu0 0
        %1051 = vmatprep.subr.bf16.mxu0 0
        %1052 = vmatpush1.bf16.msra.mxu0 0
        %1053 = vmatprep.subr.bf16.mxu0 0
        %1054 = vmatpush1.bf16.msra.mxu0 0
        %1055 = vmatprep.subr.bf16.mxu0 0
        %1056 = vmatpush1.bf16.msra.mxu0 0
        %1057 = vmatprep.subr.bf16.mxu0 0
        %1058 = vmatpush1.bf16.msra.mxu0 0
        %1059 = vmatprep.mubr.bf16.mxu0 0
        %1060 = vmatmul.mubr.bf16.gmra.mrb[0].mxu0 %v978
        %v1061 = vpop.f32.mrb[0].mxu0
        %v1062 = vadd.f32 0.0, %v1061
        %v1063 = vpop.f32.mrb[0].mxu0
        %v1064 = vpop.f32.mrb[0].mxu0
        %v1065 = vpop.f32.mrb[0].mxu0
        %1066 = vdwg.mxu0
        %v1067 = vadd.f32 %v960, %v1062
        %s1068 = scalar_lea.vmem %s304, 448
        %v1069 = vld [vmem:[%s1068] sm:$0xf]
        %v1070 = vld [vmem:[%s1068 + $0x4] sm:$0xf]
        %v1071 = vld [vmem:[%s1068 + $0x8] sm:$0xf]
        %v1072 = vld [vmem:[%s1068 + $0xc] sm:$0xf]
        %v1073 = vld [vmem:[%s1068 + $0x10] sm:$0xf]
        %v1074 = vld [vmem:[%s1068 + $0x14] sm:$0xf]
        %v1075 = vld [vmem:[%s1068 + $0x18] sm:$0xf]
        %v1076 = vld [vmem:[%s1068 + $0x1c] sm:$0xf]
        %v1077 = vld [vmem:[%s1068 + $0x20] sm:$0xf]
        %v1078 = vld [vmem:[%s1068 + $0x24] sm:$0xf]
        %v1079 = vld [vmem:[%s1068 + $0x28] sm:$0xf]
        %v1080 = vld [vmem:[%s1068 + $0x2c] sm:$0xf]
        %v1081 = vld [vmem:[%s1068 + $0x30] sm:$0xf]
        %v1082 = vld [vmem:[%s1068 + $0x34] sm:$0xf]
        %v1083 = vld [vmem:[%s1068 + $0x38] sm:$0xf]
        %v1084 = vld [vmem:[%s1068 + $0x3c] sm:$0xf]
        %v1086 = vshrl.u32 %v978, 16
        %v1105 = vunpack.c.l.b16 %v1069
        %v1106 = vunpack.c.l.b16 %v1070
        %v1107 = vunpack.c.l.b16 %v1071
        %v1108 = vunpack.c.l.b16 %v1072
        %v1109 = vunpack.c.l.b16 %v1073
        %v1110 = vunpack.c.l.b16 %v1074
        %v1111 = vunpack.c.l.b16 %v1075
        %v1112 = vunpack.c.l.b16 %v1076
        %v1113 = vunpack.c.l.b16 %v1077
        %v1114 = vunpack.c.l.b16 %v1078
        %v1115 = vunpack.c.l.b16 %v1079
        %v1116 = vunpack.c.l.b16 %v1080
        %v1117 = vunpack.c.l.b16 %v1081
        %v1118 = vunpack.c.l.b16 %v1082
        %v1119 = vunpack.c.l.b16 %v1083
        %v1120 = vunpack.c.l.b16 %v1084
        %v1121 = vpack.c.b16 %v1106, %v1105
        %v1122 = vpack.c.b16 %v1108, %v1107
        %v1123 = vpack.c.b16 %v1110, %v1109
        %v1124 = vpack.c.b16 %v1112, %v1111
        %v1125 = vpack.c.b16 %v1114, %v1113
        %v1126 = vpack.c.b16 %v1116, %v1115
        %v1127 = vpack.c.b16 %v1118, %v1117
        %v1128 = vpack.c.b16 %v1120, %v1119
        %1137 = vmatprep.subr.bf16.mxu0 0
        %1138 = vmatpush1.bf16.msra.mxu0 %v1121
        %1139 = vmatprep.subr.bf16.mxu0 0
        %1140 = vmatpush1.bf16.msra.mxu0 %v1122
        %1141 = vmatprep.subr.bf16.mxu0 0
        %1142 = vmatpush1.bf16.msra.mxu0 %v1123
        %1143 = vmatprep.subr.bf16.mxu0 0
        %1144 = vmatpush1.bf16.msra.mxu0 %v1124
        %1145 = vmatprep.subr.bf16.mxu0 0
        %1146 = vmatpush1.bf16.msra.mxu0 %v1125
        %1147 = vmatprep.subr.bf16.mxu0 0
        %1148 = vmatpush1.bf16.msra.mxu0 %v1126
        %1149 = vmatprep.subr.bf16.mxu0 0
        %1150 = vmatpush1.bf16.msra.mxu0 %v1127
        %1151 = vmatprep.subr.bf16.mxu0 0
        %1152 = vmatpush1.bf16.msra.mxu0 %v1128
        %1153 = vmatprep.subr.bf16.mxu0 0
        %1154 = vmatpush1.bf16.msra.mxu0 0
        %1155 = vmatprep.subr.bf16.mxu0 0
        %1156 = vmatpush1.bf16.msra.mxu0 0
        %1157 = vmatprep.subr.bf16.mxu0 0
        %1158 = vmatpush1.bf16.msra.mxu0 0
        %1159 = vmatprep.subr.bf16.mxu0 0
        %1160 = vmatpush1.bf16.msra.mxu0 0
        %1161 = vmatprep.subr.bf16.mxu0 0
        %1162 = vmatpush1.bf16.msra.mxu0 0
        %1163 = vmatprep.subr.bf16.mxu0 0
        %1164 = vmatpush1.bf16.msra.mxu0 0
        %1165 = vmatprep.subr.bf16.mxu0 0
        %1166 = vmatpush1.bf16.msra.mxu0 0
        %1167 = vmatprep.subr.bf16.mxu0 0
        %1168 = vmatpush1.bf16.msra.mxu0 0
        %1169 = vmatprep.mubr.bf16.mxu0 0
        %1170 = vmatmul.mubr.bf16.gmra.mrb[0].mxu0 %v1086
        %v1171 = vpop.f32.mrb[0].mxu0
        %v1172 = vadd.f32 0.0, %v1171
        %v1173 = vpop.f32.mrb[0].mxu0
        %v1174 = vpop.f32.mrb[0].mxu0
        %v1175 = vpop.f32.mrb[0].mxu0
        %1176 = vdwg.mxu0
        %v1177 = vadd.f32 %v1067, %v1172
        %v1178 = vld [vmem:[%s307] sm:$0x1]
        %v1179 = vadd.f32 %v1177, %v1178
        %1180 = vst [vmem:[%s278] sm:$0x1] %v1179
        %s1181 = sand.u32 %s159, 1
        %s1182 = scalar_lea.sflag [#allocation3], %s1181
        %s1183 = sand.u32 %s159, 1
        %s1184 = scalar_lea.vmem [#allocation2], %s1183
        // Predicated region
        $region37: #{image_encoder_forward.9} parent=35 // pred_check
          %p1185 = pneg %p169
        $region38: #{image_encoder_forward.9} parent=35 // pred_check_branch
          %1187 = sbr.rel (%p1185) target = $region40
        $region39: #{image_encoder_forward.9} parent=35 // pred_region
          %s1189 = ssub.s32 16, 16
          %1190 = vsyncadd %s1182, %s1189
          %s1191 = sadd.s32 %s25, %s24
          %s1192 = sadd.s32 %s1191, %s23
          %s1193 = smul.addr %s1192, 16
          %s1194 = scalar_lea.hbm %s4, %s1193
          %s1196 = sshll.u32 %s1184, 4
          %s1197 = int_to_ptr.vmem [resolvable:$true] %s1196
          %1199 = dma.vmem_to_hbm [thread:$0]  %s1197, 16, %s1194, %s1182
        $region40: #{image_encoder_forward.9} parent=35 // pred_fallthru
          _
      $region36: #{image_encoder_forward.9} parent=5 // pred_fallthru
        _
      %p1200 = scmp.le.s32.totalorder 2, %s13
      // Predicated region
      $region41: #{image_encoder_forward.9} parent=5 // pred_check
        %p1201 = pneg %p1200
      $region42: #{image_encoder_forward.9} parent=5 // pred_check_branch
        %1203 = sbr.rel (%p1201) target = $region44
      $region43: #{image_encoder_forward.9} parent=5 // pred_region
        %s1204 = ssub.s32 %s13, 2
        // Predicated region
        $region45: #{image_encoder_forward.9} parent=43 // pred_check
          %p1205 = pneg %p175
        $region46: #{image_encoder_forward.9} parent=43 // pred_check_branch
          %1207 = sbr.rel (%p1205) target = $region48
        $region47: #{image_encoder_forward.9} parent=43 // pred_region
          %s1208 = sand.u32 %s160, 1
          %s1209 = scalar_lea.sflag [#allocation3], %s1208
          %s1210 = sand.u32 %s160, 1
          %s1211 = scalar_lea.vmem [#allocation2], %s1210
          %1212 = dma.done %s1209, 16
        $region48: #{image_encoder_forward.9} parent=43 // pred_fallthru
          _
      $region44: #{image_encoder_forward.9} parent=5 // pred_fallthru
        _
    $region6: #{image_encoder_forward.9} parent=1 // loop_footer
      %s17 = sadd.s32 1, %s13
    $region7: #{image_encoder_forward.9} parent=1 // loop_footer_branch
      %12 = sbr.rel target = $region3
    $region8: #{image_encoder_forward.9} parent=1 // loop_exit
      _
    %1213 = vsyncpa [#allocation3], 1
    %s1214 = scalar_lea.sflag [#allocation3], 1
    %1215 = vsyncpa %s1214, 1

</llo_original>
